<compile_context>
chip_gen: v6e
topology: v6e:2x2x1
jax: 0.10.0
libtpu: 0.0.40
codegen_flags: <defaults>
</compile_context>

<pallas_src>
import numpy as np
import jax
import jax.numpy as jnp
from jax import lax
from jax.experimental import pallas as pl
from jax.experimental.pallas import tpu as pltpu

NUM_KERNELS = 6
NUM_BRANCHES = NUM_KERNELS + 1      # 7 conv branches
MAX_PAD = NUM_KERNELS // 2          # 3 (largest padding among the branches)
NUM_TAPS = 2 * (2 * MAX_PAD + 1)    # 14 shifted-input taps (7 horizontal + 7 vertical)
LANE = 128


def _round_up(x, m):
    return (x + m - 1) // m * m


def _cdiv(a, b):
    return -(-a // b)


def _pick_cpad(out_channels):
    """Pad the output channel dim to 128 lanes only when it is cheap.

    Lane-dense stores help the store slot, but for small Cout the HBM write
    amplification (e.g. 8 -> 128 = 16x) dominates a bandwidth-bound kernel.
    """
    cp = _round_up(out_channels, LANE)
    return cp if cp <= 2 * out_channels else out_channels


def _vmem_limit_bytes():
    """Generation-aware VMEM limit: leave headroom on 64-MiB parts (v7x)."""
    try:
        cap = pltpu.get_tpu_info().vmem_capacity_bytes
    except Exception:
        cap = 128 * 1024 * 1024
    if cap <= 64 * 1024 * 1024:                      # v7x-class: 64 MiB physical
        return max(cap - 8 * 1024 * 1024, 16 * 1024 * 1024)
    return 64 * 1024 * 1024                          # v5e / v6e (128 MiB physical)


def _pick_row_tile(H, W, Cin, Cpad, N, resident_bytes, vmem_limit, fused):
    """Largest row tile whose true per-step VMEM fits, with ~1.5 MiB output
    tiles and enough grid steps for megacore balance at small batch."""
    slack = 2 * 1024 * 1024
    w_bytes = NUM_TAPS * Cin * Cpad * 2 + Cpad * 4   # weights (bf16) + bias (f32)
    avail = max(vmem_limit - 2 * resident_bytes - 2 * w_bytes - slack, 1 << 20)
    # per-row scratch: bf16 matmul operand (+live views) + f32 accumulator
    kb = (NUM_TAPS * Cin if fused else 2 * Cin) * 2
    target_tile = 1536 * 1024                        # ~1.5 MiB bf16 output tile

    def fits(th):
        out_tile = th * W * Cpad * 2                 # bf16, double-buffered
        scratch = th * W * (kb + Cpad * 4)
        return 2 * out_tile + scratch <= avail

    th = 1
    for cand in range(1, H + 1):
        if fits(cand) and cand * W * Cpad * 2 <= target_tile:
            th = cand
    # keep >= 4 grid steps when possible so both v7x TensorCores get work
    # at batch 1-2 and the pipeline has depth (per-step overhead ~0.35 us).
    while th > 1 and N * _cdiv(H, th) < 4:
        th = (th + 1) // 2
    return th


def _inception_kernel(xp_ref, w_ref, b_ref, o_ref):
    # xp_ref: (Hp2, Wp, Cin) bf16  zero-padded image of the current batch
    #                              element; block index constant over the
    #                              row-tile axis -> resident in VMEM.
    # w_ref : (14, Cin, Cpad) bf16 per-tap folded weights, pre-scaled by 1/7.
    # b_ref : (1, Cpad)       f32  mean bias.
    # o_ref : (TH, W, Cpad)        row tile of the output (bf16 by default).
    TH, W, Cpad = o_ref.shape
    Cin = xp_ref.shape[-1]
    P = MAX_PAD

    rt = pl.program_id(1)
    r0 = rt * TH                      # first output row of this tile
    if TH % 8 == 0:
        r0 = pl.multiple_of(r0, 8)

    views = []
    # horizontal taps: shifts along W (1x3 / 1x5 / 1x7 branches + 1x1 at off=0)
    for off in range(-P, P + 1):
        views.append(xp_ref[pl.ds(r0 + P, TH), pl.ds(P + off, W), :])
    # vertical taps: shifts along H (3x1 / 5x1 / 7x1 branches)
    for off in range(-P, P + 1):
        views.append(xp_ref[pl.ds(r0 + P + off, TH), pl.ds(P, W), :])

    if Cin % LANE == 0:
        # Fused path: concat is lane-tile-exact, one big MXU matmul.
        xcat = jnp.concatenate(views, axis=-1).reshape(TH * W, NUM_TAPS * Cin)
        w_flat = w_ref[...].reshape(NUM_TAPS * Cin, Cpad)
        acc = jnp.dot(xcat, w_flat, preferred_element_type=jnp.float32)
    else:
        # Small-Cin path: per-tap matmuls avoid the cross-lane concat relayout
        # (the MXU is nearly idle here anyway; layout work was the bottleneck).
        acc = jnp.zeros((TH * W, Cpad), jnp.float32)
        for t in range(NUM_TAPS):
            acc += jnp.dot(views[t].reshape(TH * W, Cin), w_ref[t],
                           preferred_element_type=jnp.float32)

    res = acc + b_ref[...]            # bias already = mean over the 7 branches
    o_ref[...] = res.reshape(TH, W, Cpad).astype(o_ref.dtype)


def inception_block_v2(x_nchw, w_taps, b_pad, out_channels, out_dtype=jnp.bfloat16):
    """x_nchw: (N, Cin, H, W) -> (N, Cout, H, W), matching the PyTorch module."""
    N, Cin, H, W = x_nchw.shape
    NT, _, Cpad = w_taps.shape
    P = MAX_PAD

    vmem_limit = _vmem_limit_bytes()
    fused = (Cin % LANE == 0)

    # NHWC inside the kernel; bf16 cast fuses with the pad into one XLA op.
    # TODO(synk): keep NHWC (and the true channel count) end-to-end in the host
    # graph and fold the spatial pad into halo-windowed input DMAs to remove
    # the remaining wrapper-side HBM passes for very large activations.
    x = jnp.transpose(x_nchw, (0, 2, 3, 1)).astype(jnp.bfloat16)

    Wp = W + 2 * P
    resident = (H + 2 * P) * Wp * Cin * 2            # bf16 resident padded image
    TH = _pick_row_tile(H, W, Cin, Cpad, N, resident, vmem_limit, fused)
    RT = _cdiv(H, TH)
    Hrows = RT * TH                                  # pad rows so all loads stay in bounds
    xp = jnp.pad(x, ((0, 0), (P, Hrows - H + P), (P, P), (0, 0)))
    Hp2 = Hrows + 2 * P

    # TODO(synk): when 2 * Hp2 * Wp * Cin bytes exceeds the v7x VMEM budget,
    # switch the input to pl.ANY + manual double-buffered halo-row DMAs (P4)
    # instead of keeping the whole padded image resident.

    flops = 2 * N * H * W * NT * Cin * Cpad
    bytes_accessed = xp.size * 2 + w_taps.size * 2 + b_pad.size * 4 + N * H * W * Cpad * 2

    out = pl.pallas_call(
        _inception_kernel,
        out_shape=jax.ShapeDtypeStruct((N, H, W, Cpad), out_dtype),
        grid=(N, RT),
        in_specs=[
            pl.BlockSpec((None, Hp2, Wp, Cin), lambda b, rt: (b, 0, 0, 0)),
            pl.BlockSpec((NT, Cin, Cpad), lambda b, rt: (0, 0, 0)),
            pl.BlockSpec((1, Cpad), lambda b, rt: (0, 0)),
        ],
        out_specs=pl.BlockSpec((None, TH, W, Cpad), lambda b, rt: (b, rt, 0, 0)),
        compiler_params=pltpu.CompilerParams(
            dimension_semantics=("parallel", "parallel"),
            vmem_limit_bytes=vmem_limit,
        ),
        cost_estimate=pl.CostEstimate(flops=flops, transcendentals=0,
                                      bytes_accessed=bytes_accessed),
    )(xp, w_taps, b_pad)

    if Cpad != out_channels:
        out = out[..., :out_channels]
    return jnp.transpose(out, (0, 3, 1, 2))


# ---------------- parameter setup (plain host-side glue) ----------------

def init_params(key, in_channels, out_channels, num_kernels=NUM_KERNELS):
    """Deterministic kaiming_normal(fan_out) weights, zero biases (as in the module)."""
    specs = []
    for i in range(num_kernels // 2):
        specs.append((1, 2 * i + 3))   # horizontal branch, pad (0, i+1)
        specs.append((2 * i + 3, 1))   # vertical branch,   pad (i+1, 0)
    specs.append((1, 1))               # pointwise branch
    weights, biases = [], []
    for (kh, kw) in specs:
        key, sub = jax.random.split(key)
        fan_out = out_channels * kh * kw
        std = (2.0 / fan_out) ** 0.5
        w = jax.random.normal(sub, (kh, kw, in_channels, out_channels), jnp.float32) * std
        weights.append(w)                                  # HWIO
        biases.append(jnp.zeros((out_channels,), jnp.float32))
    return specs, weights, biases


def prepare_params(specs, weights, biases, in_channels, out_channels):
    """Fold all 7 same-padded branches into per-offset taps, pre-scale by 1/7,
    pack into a (14, Cin, Cpad) bf16 operand, pad bias to Cpad."""
    P = MAX_PAD
    # The tap fold is only valid for odd 1-D "same"-padded, stride-1 branches
    # no wider than 2*MAX_PAD+1 (zero padding mode). Guard against spec drift.
    assert len(specs) == NUM_BRANCHES
    for (kh, kw) in specs:
        assert (kh == 1 or kw == 1) and kh % 2 == 1 and kw % 2 == 1
        assert max(kh, kw) <= 2 * P + 1

    taps = np.zeros((NUM_TAPS, in_channels, out_channels), np.float32)
    # taps[0:7]  -> horizontal offsets -P..P (1xk branches, 1x1 at center)
    # taps[7:14] -> vertical offsets   -P..P (kx1 branches)
    for i in range(P):
        w_h = np.asarray(weights[2 * i])        # (1, 2i+3, Cin, Cout)
        w_v = np.asarray(weights[2 * i + 1])    # (2i+3, 1, Cin, Cout)
        for t in range(2 * i + 3):
            off = t - (i + 1)
            taps[off + P] += w_h[0, t]
            taps[(2 * P + 1) + off + P] += w_v[t, 0]
    taps[P] += np.asarray(weights[-1])[0, 0]    # 1x1 conv -> horizontal center tap
    taps *= 1.0 / NUM_BRANCHES                  # fold the mean over the 7 branches

    cpad = _pick_cpad(out_channels)
    w_taps = np.zeros((NUM_TAPS, in_channels, cpad), np.float32)
    w_taps[..., :out_channels] = taps

    bias_mean = np.mean(np.stack([np.asarray(b) for b in biases], 0), 0)
    b_pad = np.zeros((1, cpad), np.float32)
    b_pad[0, :out_channels] = bias_mean
    return jnp.asarray(w_taps, jnp.bfloat16), jnp.asarray(b_pad, jnp.float32)


# ---------------- pure-JAX reference for verification ----------------

def reference(x_nhwc, specs, weights, biases):
    outs = []
    for (kh, kw), w, b in zip(specs, weights, biases):
        ph, pw = (kh - 1) // 2, (kw - 1) // 2
        y = lax.conv_general_dilated(
            x_nhwc, w, window_strides=(1, 1),
            padding=[(ph, ph), (pw, pw)],
            dimension_numbers=('NHWC', 'HWIO', 'NHWC'),
            precision=lax.Precision.HIGHEST)
        outs.append(y + b)
    return jnp.mean(jnp.stack(outs, axis=-1), axis=-1)


if __name__ == "__main__":
    key = jax.random.PRNGKey(0)
    N, Cin, Cout, H, W = 2, 4, 8, 16, 16

    key, xk = jax.random.split(key)
    x = jax.random.normal(xk, (N, Cin, H, W), jnp.float32)   # PyTorch NCHW convention

    specs, weights, biases = init_params(key, Cin, Cout)
    w_taps, b_pad = prepare_params(specs, weights, biases, Cin, Cout)

    out = inception_block_v2(x, w_taps, b_pad, Cout)
    out = jax.block_until_ready(out)

    ref = reference(jnp.transpose(x, (0, 2, 3, 1)), specs, weights, biases)
    ref = jnp.transpose(ref, (0, 3, 1, 2))

    assert out.shape == (N, Cout, H, W)
    np.testing.assert_allclose(np.asarray(out.astype(jnp.float32)),
                               np.asarray(ref), rtol=2e-2, atol=2e-2)
    print("KERNEL_OK")
</pallas_src>

<mosaic_0001>
module attributes {stable_mosaic.version = 11 : i64} {
  func.func @_inception_kernel(%arg0: i32, %arg1: i32, %arg2: memref<1x22x22x4xbf16, #tpu.memory_space<vmem>>, %arg3: memref<14x4x8xbf16, #tpu.memory_space<vmem>>, %arg4: memref<1x8xf32, #tpu.memory_space<vmem>>, %arg5: memref<1x8x16x8xbf16, #tpu.memory_space<vmem>>) attributes {dimension_semantics = [#tpu.dimension_semantics<parallel>, #tpu.dimension_semantics<parallel>], iteration_bounds = array<i64: 2, 2>, scalar_prefetch = 0 : i64, scratch_operands = 0 : i64, tpu.core_type = #tpu.core_type<tc>, window_params = [{transform_indices = @transform_0, window_bounds = array<i64: 1, 22, 22, 4>}, {pipeline_mode = #tpu.pipeline_mode<synchronous>, transform_indices = @transform_1, window_bounds = array<i64: 14, 4, 8>}, {pipeline_mode = #tpu.pipeline_mode<synchronous>, transform_indices = @transform_2, window_bounds = array<i64: 1, 8>}, {transform_indices = @transform_3, window_bounds = array<i64: 1, 8, 16, 8>}]} {
    %c8_i32 = arith.constant 8 : i32
    %0 = arith.muli %arg1, %c8_i32 : i32
    %1 = tpu.assume_multiple %0, 8 : i32
    %c3_i32 = arith.constant 3 : i32
    %2 = arith.addi %1, %c3_i32 : i32
    %c0 = arith.constant 0 : index
    %3 = arith.index_cast %2 : i32 to index
    %c0_0 = arith.constant 0 : index
    %c0_1 = arith.constant 0 : index
    %4 = vector.load %arg2[%c0, %3, %c0_0, %c0_1] : memref<1x22x22x4xbf16, #tpu.memory_space<vmem>>, vector<1x8x16x4xbf16>
    %5 = vector.shape_cast %4 : vector<1x8x16x4xbf16> to vector<8x16x4xbf16>
    %c3_i32_2 = arith.constant 3 : i32
    %6 = arith.addi %1, %c3_i32_2 : i32
    %c0_3 = arith.constant 0 : index
    %7 = arith.index_cast %6 : i32 to index
    %c1 = arith.constant 1 : index
    %c0_4 = arith.constant 0 : index
    %8 = vector.load %arg2[%c0_3, %7, %c1, %c0_4] : memref<1x22x22x4xbf16, #tpu.memory_space<vmem>>, vector<1x8x16x4xbf16>
    %9 = vector.shape_cast %8 : vector<1x8x16x4xbf16> to vector<8x16x4xbf16>
    %c3_i32_5 = arith.constant 3 : i32
    %10 = arith.addi %1, %c3_i32_5 : i32
    %c0_6 = arith.constant 0 : index
    %11 = arith.index_cast %10 : i32 to index
    %c2 = arith.constant 2 : index
    %c0_7 = arith.constant 0 : index
    %12 = vector.load %arg2[%c0_6, %11, %c2, %c0_7] : memref<1x22x22x4xbf16, #tpu.memory_space<vmem>>, vector<1x8x16x4xbf16>
    %13 = vector.shape_cast %12 : vector<1x8x16x4xbf16> to vector<8x16x4xbf16>
    %c3_i32_8 = arith.constant 3 : i32
    %14 = arith.addi %1, %c3_i32_8 : i32
    %c0_9 = arith.constant 0 : index
    %15 = arith.index_cast %14 : i32 to index
    %c3 = arith.constant 3 : index
    %c0_10 = arith.constant 0 : index
    %16 = vector.load %arg2[%c0_9, %15, %c3, %c0_10] : memref<1x22x22x4xbf16, #tpu.memory_space<vmem>>, vector<1x8x16x4xbf16>
    %17 = vector.shape_cast %16 : vector<1x8x16x4xbf16> to vector<8x16x4xbf16>
    %c3_i32_11 = arith.constant 3 : i32
    %18 = arith.addi %1, %c3_i32_11 : i32
    %c0_12 = arith.constant 0 : index
    %19 = arith.index_cast %18 : i32 to index
    %c4 = arith.constant 4 : index
    %c0_13 = arith.constant 0 : index
    %20 = vector.load %arg2[%c0_12, %19, %c4, %c0_13] : memref<1x22x22x4xbf16, #tpu.memory_space<vmem>>, vector<1x8x16x4xbf16>
    %21 = vector.shape_cast %20 : vector<1x8x16x4xbf16> to vector<8x16x4xbf16>
    %c3_i32_14 = arith.constant 3 : i32
    %22 = arith.addi %1, %c3_i32_14 : i32
    %c0_15 = arith.constant 0 : index
    %23 = arith.index_cast %22 : i32 to index
    %c5 = arith.constant 5 : index
    %c0_16 = arith.constant 0 : index
    %24 = vector.load %arg2[%c0_15, %23, %c5, %c0_16] : memref<1x22x22x4xbf16, #tpu.memory_space<vmem>>, vector<1x8x16x4xbf16>
    %25 = vector.shape_cast %24 : vector<1x8x16x4xbf16> to vector<8x16x4xbf16>
    %c3_i32_17 = arith.constant 3 : i32
    %26 = arith.addi %1, %c3_i32_17 : i32
    %c0_18 = arith.constant 0 : index
    %27 = arith.index_cast %26 : i32 to index
    %c6 = arith.constant 6 : index
    %c0_19 = arith.constant 0 : index
    %28 = vector.load %arg2[%c0_18, %27, %c6, %c0_19] : memref<1x22x22x4xbf16, #tpu.memory_space<vmem>>, vector<1x8x16x4xbf16>
    %29 = vector.shape_cast %28 : vector<1x8x16x4xbf16> to vector<8x16x4xbf16>
    %c3_i32_20 = arith.constant 3 : i32
    %30 = arith.addi %1, %c3_i32_20 : i32
    %c-3_i32 = arith.constant -3 : i32
    %31 = arith.addi %30, %c-3_i32 : i32
    %c0_21 = arith.constant 0 : index
    %32 = arith.index_cast %31 : i32 to index
    %c3_22 = arith.constant 3 : index
    %c0_23 = arith.constant 0 : index
    %33 = vector.load %arg2[%c0_21, %32, %c3_22, %c0_23] : memref<1x22x22x4xbf16, #tpu.memory_space<vmem>>, vector<1x8x16x4xbf16>
    %34 = vector.shape_cast %33 : vector<1x8x16x4xbf16> to vector<8x16x4xbf16>
    %c3_i32_24 = arith.constant 3 : i32
    %35 = arith.addi %1, %c3_i32_24 : i32
    %c-2_i32 = arith.constant -2 : i32
    %36 = arith.addi %35, %c-2_i32 : i32
    %c0_25 = arith.constant 0 : index
    %37 = arith.index_cast %36 : i32 to index
    %c3_26 = arith.constant 3 : index
    %c0_27 = arith.constant 0 : index
    %38 = vector.load %arg2[%c0_25, %37, %c3_26, %c0_27] : memref<1x22x22x4xbf16, #tpu.memory_space<vmem>>, vector<1x8x16x4xbf16>
    %39 = vector.shape_cast %38 : vector<1x8x16x4xbf16> to vector<8x16x4xbf16>
    %c3_i32_28 = arith.constant 3 : i32
    %40 = arith.addi %1, %c3_i32_28 : i32
    %c-1_i32 = arith.constant -1 : i32
    %41 = arith.addi %40, %c-1_i32 : i32
    %c0_29 = arith.constant 0 : index
    %42 = arith.index_cast %41 : i32 to index
    %c3_30 = arith.constant 3 : index
    %c0_31 = arith.constant 0 : index
    %43 = vector.load %arg2[%c0_29, %42, %c3_30, %c0_31] : memref<1x22x22x4xbf16, #tpu.memory_space<vmem>>, vector<1x8x16x4xbf16>
    %44 = vector.shape_cast %43 : vector<1x8x16x4xbf16> to vector<8x16x4xbf16>
    %c3_i32_32 = arith.constant 3 : i32
    %45 = arith.addi %1, %c3_i32_32 : i32
    %c0_i32 = arith.constant 0 : i32
    %46 = arith.addi %45, %c0_i32 : i32
    %c0_33 = arith.constant 0 : index
    %47 = arith.index_cast %46 : i32 to index
    %c3_34 = arith.constant 3 : index
    %c0_35 = arith.constant 0 : index
    %48 = vector.load %arg2[%c0_33, %47, %c3_34, %c0_35] : memref<1x22x22x4xbf16, #tpu.memory_space<vmem>>, vector<1x8x16x4xbf16>
    %49 = vector.shape_cast %48 : vector<1x8x16x4xbf16> to vector<8x16x4xbf16>
    %c3_i32_36 = arith.constant 3 : i32
    %50 = arith.addi %1, %c3_i32_36 : i32
    %c1_i32 = arith.constant 1 : i32
    %51 = arith.addi %50, %c1_i32 : i32
    %c0_37 = arith.constant 0 : index
    %52 = arith.index_cast %51 : i32 to index
    %c3_38 = arith.constant 3 : index
    %c0_39 = arith.constant 0 : index
    %53 = vector.load %arg2[%c0_37, %52, %c3_38, %c0_39] : memref<1x22x22x4xbf16, #tpu.memory_space<vmem>>, vector<1x8x16x4xbf16>
    %54 = vector.shape_cast %53 : vector<1x8x16x4xbf16> to vector<8x16x4xbf16>
    %c3_i32_40 = arith.constant 3 : i32
    %55 = arith.addi %1, %c3_i32_40 : i32
    %c2_i32 = arith.constant 2 : i32
    %56 = arith.addi %55, %c2_i32 : i32
    %c0_41 = arith.constant 0 : index
    %57 = arith.index_cast %56 : i32 to index
    %c3_42 = arith.constant 3 : index
    %c0_43 = arith.constant 0 : index
    %58 = vector.load %arg2[%c0_41, %57, %c3_42, %c0_43] : memref<1x22x22x4xbf16, #tpu.memory_space<vmem>>, vector<1x8x16x4xbf16>
    %59 = vector.shape_cast %58 : vector<1x8x16x4xbf16> to vector<8x16x4xbf16>
    %c3_i32_44 = arith.constant 3 : i32
    %60 = arith.addi %1, %c3_i32_44 : i32
    %c3_i32_45 = arith.constant 3 : i32
    %61 = arith.addi %60, %c3_i32_45 : i32
    %c0_46 = arith.constant 0 : index
    %62 = arith.index_cast %61 : i32 to index
    %c3_47 = arith.constant 3 : index
    %c0_48 = arith.constant 0 : index
    %63 = vector.load %arg2[%c0_46, %62, %c3_47, %c0_48] : memref<1x22x22x4xbf16, #tpu.memory_space<vmem>>, vector<1x8x16x4xbf16>
    %64 = vector.shape_cast %63 : vector<1x8x16x4xbf16> to vector<8x16x4xbf16>
    %cst = arith.constant 0.000000e+00 : f32
    %65 = vector.broadcast %cst : f32 to vector<128x8xf32>
    %66 = vector.shape_cast %5 : vector<8x16x4xbf16> to vector<128x4xbf16>
    %c0_49 = arith.constant 0 : index
    %c0_50 = arith.constant 0 : index
    %c0_51 = arith.constant 0 : index
    %67 = vector.load %arg3[%c0_49, %c0_50, %c0_51] : memref<14x4x8xbf16, #tpu.memory_space<vmem>>, vector<1x4x8xbf16>
    %68 = vector.shape_cast %67 : vector<1x4x8xbf16> to vector<4x8xbf16>
    %cst_52 = arith.constant dense<0.000000e+00> : vector<128x8xf32>
    %69 = tpu.matmul %66, %68, %cst_52 {dimension_numbers = #tpu.dot_dimension_numbers<[1], [0], [0], [1], [0, 0, 1, 1], [], []>} : vector<128x4xbf16>, vector<4x8xbf16>, vector<128x8xf32> -> vector<128x8xf32>
    %70 = arith.addf %65, %69 : vector<128x8xf32>
    %71 = vector.shape_cast %9 : vector<8x16x4xbf16> to vector<128x4xbf16>
    %c1_53 = arith.constant 1 : index
    %c0_54 = arith.constant 0 : index
    %c0_55 = arith.constant 0 : index
    %72 = vector.load %arg3[%c1_53, %c0_54, %c0_55] : memref<14x4x8xbf16, #tpu.memory_space<vmem>>, vector<1x4x8xbf16>
    %73 = vector.shape_cast %72 : vector<1x4x8xbf16> to vector<4x8xbf16>
    %cst_56 = arith.constant dense<0.000000e+00> : vector<128x8xf32>
    %74 = tpu.matmul %71, %73, %cst_56 {dimension_numbers = #tpu.dot_dimension_numbers<[1], [0], [0], [1], [0, 0, 1, 1], [], []>} : vector<128x4xbf16>, vector<4x8xbf16>, vector<128x8xf32> -> vector<128x8xf32>
    %75 = arith.addf %70, %74 : vector<128x8xf32>
    %76 = vector.shape_cast %13 : vector<8x16x4xbf16> to vector<128x4xbf16>
    %c2_57 = arith.constant 2 : index
    %c0_58 = arith.constant 0 : index
    %c0_59 = arith.constant 0 : index
    %77 = vector.load %arg3[%c2_57, %c0_58, %c0_59] : memref<14x4x8xbf16, #tpu.memory_space<vmem>>, vector<1x4x8xbf16>
    %78 = vector.shape_cast %77 : vector<1x4x8xbf16> to vector<4x8xbf16>
    %cst_60 = arith.constant dense<0.000000e+00> : vector<128x8xf32>
    %79 = tpu.matmul %76, %78, %cst_60 {dimension_numbers = #tpu.dot_dimension_numbers<[1], [0], [0], [1], [0, 0, 1, 1], [], []>} : vector<128x4xbf16>, vector<4x8xbf16>, vector<128x8xf32> -> vector<128x8xf32>
    %80 = arith.addf %75, %79 : vector<128x8xf32>
    %81 = vector.shape_cast %17 : vector<8x16x4xbf16> to vector<128x4xbf16>
    %c3_61 = arith.constant 3 : index
    %c0_62 = arith.constant 0 : index
    %c0_63 = arith.constant 0 : index
    %82 = vector.load %arg3[%c3_61, %c0_62, %c0_63] : memref<14x4x8xbf16, #tpu.memory_space<vmem>>, vector<1x4x8xbf16>
    %83 = vector.shape_cast %82 : vector<1x4x8xbf16> to vector<4x8xbf16>
    %cst_64 = arith.constant dense<0.000000e+00> : vector<128x8xf32>
    %84 = tpu.matmul %81, %83, %cst_64 {dimension_numbers = #tpu.dot_dimension_numbers<[1], [0], [0], [1], [0, 0, 1, 1], [], []>} : vector<128x4xbf16>, vector<4x8xbf16>, vector<128x8xf32> -> vector<128x8xf32>
    %85 = arith.addf %80, %84 : vector<128x8xf32>
    %86 = vector.shape_cast %21 : vector<8x16x4xbf16> to vector<128x4xbf16>
    %c4_65 = arith.constant 4 : index
    %c0_66 = arith.constant 0 : index
    %c0_67 = arith.constant 0 : index
    %87 = vector.load %arg3[%c4_65, %c0_66, %c0_67] : memref<14x4x8xbf16, #tpu.memory_space<vmem>>, vector<1x4x8xbf16>
    %88 = vector.shape_cast %87 : vector<1x4x8xbf16> to vector<4x8xbf16>
    %cst_68 = arith.constant dense<0.000000e+00> : vector<128x8xf32>
    %89 = tpu.matmul %86, %88, %cst_68 {dimension_numbers = #tpu.dot_dimension_numbers<[1], [0], [0], [1], [0, 0, 1, 1], [], []>} : vector<128x4xbf16>, vector<4x8xbf16>, vector<128x8xf32> -> vector<128x8xf32>
    %90 = arith.addf %85, %89 : vector<128x8xf32>
    %91 = vector.shape_cast %25 : vector<8x16x4xbf16> to vector<128x4xbf16>
    %c5_69 = arith.constant 5 : index
    %c0_70 = arith.constant 0 : index
    %c0_71 = arith.constant 0 : index
    %92 = vector.load %arg3[%c5_69, %c0_70, %c0_71] : memref<14x4x8xbf16, #tpu.memory_space<vmem>>, vector<1x4x8xbf16>
    %93 = vector.shape_cast %92 : vector<1x4x8xbf16> to vector<4x8xbf16>
    %cst_72 = arith.constant dense<0.000000e+00> : vector<128x8xf32>
    %94 = tpu.matmul %91, %93, %cst_72 {dimension_numbers = #tpu.dot_dimension_numbers<[1], [0], [0], [1], [0, 0, 1, 1], [], []>} : vector<128x4xbf16>, vector<4x8xbf16>, vector<128x8xf32> -> vector<128x8xf32>
    %95 = arith.addf %90, %94 : vector<128x8xf32>
    %96 = vector.shape_cast %29 : vector<8x16x4xbf16> to vector<128x4xbf16>
    %c6_73 = arith.constant 6 : index
    %c0_74 = arith.constant 0 : index
    %c0_75 = arith.constant 0 : index
    %97 = vector.load %arg3[%c6_73, %c0_74, %c0_75] : memref<14x4x8xbf16, #tpu.memory_space<vmem>>, vector<1x4x8xbf16>
    %98 = vector.shape_cast %97 : vector<1x4x8xbf16> to vector<4x8xbf16>
    %cst_76 = arith.constant dense<0.000000e+00> : vector<128x8xf32>
    %99 = tpu.matmul %96, %98, %cst_76 {dimension_numbers = #tpu.dot_dimension_numbers<[1], [0], [0], [1], [0, 0, 1, 1], [], []>} : vector<128x4xbf16>, vector<4x8xbf16>, vector<128x8xf32> -> vector<128x8xf32>
    %100 = arith.addf %95, %99 : vector<128x8xf32>
    %101 = vector.shape_cast %34 : vector<8x16x4xbf16> to vector<128x4xbf16>
    %c7 = arith.constant 7 : index
    %c0_77 = arith.constant 0 : index
    %c0_78 = arith.constant 0 : index
    %102 = vector.load %arg3[%c7, %c0_77, %c0_78] : memref<14x4x8xbf16, #tpu.memory_space<vmem>>, vector<1x4x8xbf16>
    %103 = vector.shape_cast %102 : vector<1x4x8xbf16> to vector<4x8xbf16>
    %cst_79 = arith.constant dense<0.000000e+00> : vector<128x8xf32>
    %104 = tpu.matmul %101, %103, %cst_79 {dimension_numbers = #tpu.dot_dimension_numbers<[1], [0], [0], [1], [0, 0, 1, 1], [], []>} : vector<128x4xbf16>, vector<4x8xbf16>, vector<128x8xf32> -> vector<128x8xf32>
    %105 = arith.addf %100, %104 : vector<128x8xf32>
    %106 = vector.shape_cast %39 : vector<8x16x4xbf16> to vector<128x4xbf16>
    %c8 = arith.constant 8 : index
    %c0_80 = arith.constant 0 : index
    %c0_81 = arith.constant 0 : index
    %107 = vector.load %arg3[%c8, %c0_80, %c0_81] : memref<14x4x8xbf16, #tpu.memory_space<vmem>>, vector<1x4x8xbf16>
    %108 = vector.shape_cast %107 : vector<1x4x8xbf16> to vector<4x8xbf16>
    %cst_82 = arith.constant dense<0.000000e+00> : vector<128x8xf32>
    %109 = tpu.matmul %106, %108, %cst_82 {dimension_numbers = #tpu.dot_dimension_numbers<[1], [0], [0], [1], [0, 0, 1, 1], [], []>} : vector<128x4xbf16>, vector<4x8xbf16>, vector<128x8xf32> -> vector<128x8xf32>
    %110 = arith.addf %105, %109 : vector<128x8xf32>
    %111 = vector.shape_cast %44 : vector<8x16x4xbf16> to vector<128x4xbf16>
    %c9 = arith.constant 9 : index
    %c0_83 = arith.constant 0 : index
    %c0_84 = arith.constant 0 : index
    %112 = vector.load %arg3[%c9, %c0_83, %c0_84] : memref<14x4x8xbf16, #tpu.memory_space<vmem>>, vector<1x4x8xbf16>
    %113 = vector.shape_cast %112 : vector<1x4x8xbf16> to vector<4x8xbf16>
    %cst_85 = arith.constant dense<0.000000e+00> : vector<128x8xf32>
    %114 = tpu.matmul %111, %113, %cst_85 {dimension_numbers = #tpu.dot_dimension_numbers<[1], [0], [0], [1], [0, 0, 1, 1], [], []>} : vector<128x4xbf16>, vector<4x8xbf16>, vector<128x8xf32> -> vector<128x8xf32>
    %115 = arith.addf %110, %114 : vector<128x8xf32>
    %116 = vector.shape_cast %49 : vector<8x16x4xbf16> to vector<128x4xbf16>
    %c10 = arith.constant 10 : index
    %c0_86 = arith.constant 0 : index
    %c0_87 = arith.constant 0 : index
    %117 = vector.load %arg3[%c10, %c0_86, %c0_87] : memref<14x4x8xbf16, #tpu.memory_space<vmem>>, vector<1x4x8xbf16>
    %118 = vector.shape_cast %117 : vector<1x4x8xbf16> to vector<4x8xbf16>
    %cst_88 = arith.constant dense<0.000000e+00> : vector<128x8xf32>
    %119 = tpu.matmul %116, %118, %cst_88 {dimension_numbers = #tpu.dot_dimension_numbers<[1], [0], [0], [1], [0, 0, 1, 1], [], []>} : vector<128x4xbf16>, vector<4x8xbf16>, vector<128x8xf32> -> vector<128x8xf32>
    %120 = arith.addf %115, %119 : vector<128x8xf32>
    %121 = vector.shape_cast %54 : vector<8x16x4xbf16> to vector<128x4xbf16>
    %c11 = arith.constant 11 : index
    %c0_89 = arith.constant 0 : index
    %c0_90 = arith.constant 0 : index
    %122 = vector.load %arg3[%c11, %c0_89, %c0_90] : memref<14x4x8xbf16, #tpu.memory_space<vmem>>, vector<1x4x8xbf16>
    %123 = vector.shape_cast %122 : vector<1x4x8xbf16> to vector<4x8xbf16>
    %cst_91 = arith.constant dense<0.000000e+00> : vector<128x8xf32>
    %124 = tpu.matmul %121, %123, %cst_91 {dimension_numbers = #tpu.dot_dimension_numbers<[1], [0], [0], [1], [0, 0, 1, 1], [], []>} : vector<128x4xbf16>, vector<4x8xbf16>, vector<128x8xf32> -> vector<128x8xf32>
    %125 = arith.addf %120, %124 : vector<128x8xf32>
    %126 = vector.shape_cast %59 : vector<8x16x4xbf16> to vector<128x4xbf16>
    %c12 = arith.constant 12 : index
    %c0_92 = arith.constant 0 : index
    %c0_93 = arith.constant 0 : index
    %127 = vector.load %arg3[%c12, %c0_92, %c0_93] : memref<14x4x8xbf16, #tpu.memory_space<vmem>>, vector<1x4x8xbf16>
    %128 = vector.shape_cast %127 : vector<1x4x8xbf16> to vector<4x8xbf16>
    %cst_94 = arith.constant dense<0.000000e+00> : vector<128x8xf32>
    %129 = tpu.matmul %126, %128, %cst_94 {dimension_numbers = #tpu.dot_dimension_numbers<[1], [0], [0], [1], [0, 0, 1, 1], [], []>} : vector<128x4xbf16>, vector<4x8xbf16>, vector<128x8xf32> -> vector<128x8xf32>
    %130 = arith.addf %125, %129 : vector<128x8xf32>
    %131 = vector.shape_cast %64 : vector<8x16x4xbf16> to vector<128x4xbf16>
    %c13 = arith.constant 13 : index
    %c0_95 = arith.constant 0 : index
    %c0_96 = arith.constant 0 : index
    %132 = vector.load %arg3[%c13, %c0_95, %c0_96] : memref<14x4x8xbf16, #tpu.memory_space<vmem>>, vector<1x4x8xbf16>
    %133 = vector.shape_cast %132 : vector<1x4x8xbf16> to vector<4x8xbf16>
    %cst_97 = arith.constant dense<0.000000e+00> : vector<128x8xf32>
    %134 = tpu.matmul %131, %133, %cst_97 {dimension_numbers = #tpu.dot_dimension_numbers<[1], [0], [0], [1], [0, 0, 1, 1], [], []>} : vector<128x4xbf16>, vector<4x8xbf16>, vector<128x8xf32> -> vector<128x8xf32>
    %135 = arith.addf %130, %134 : vector<128x8xf32>
    %c0_98 = arith.constant 0 : index
    %c0_99 = arith.constant 0 : index
    %136 = vector.load %arg4[%c0_98, %c0_99] : memref<1x8xf32, #tpu.memory_space<vmem>>, vector<1x8xf32>
    %137 = vector.broadcast %136 : vector<1x8xf32> to vector<128x8xf32>
    %138 = arith.addf %135, %137 : vector<128x8xf32>
    %139 = vector.shape_cast %138 : vector<128x8xf32> to vector<8x16x8xf32>
    %140 = arith.truncf %139 : vector<8x16x8xf32> to vector<8x16x8xbf16>
    %c0_100 = arith.constant 0 : index
    %c0_101 = arith.constant 0 : index
    %c0_102 = arith.constant 0 : index
    %c0_103 = arith.constant 0 : index
    %141 = vector.load %arg5[%c0_100, %c0_101, %c0_102, %c0_103] : memref<1x8x16x8xbf16, #tpu.memory_space<vmem>>, vector<1x8x16x8xbf16>
    %142 = vector.shape_cast %141 : vector<1x8x16x8xbf16> to vector<8x16x8xbf16>
    %143 = vector.shape_cast %140 : vector<8x16x8xbf16> to vector<1x8x16x8xbf16>
    tpu.vector_store %arg5[%c0_100, %c0_101, %c0_102, %c0_103], %143 {strides = array<i32>} : memref<1x8x16x8xbf16, #tpu.memory_space<vmem>>, vector<1x8x16x8xbf16>,
    return
  }
  func.func @transform_0(%arg0: i32, %arg1: i32) -> (i32, i32, i32, i32) {
    %c0_i32 = arith.constant 0 : i32
    %c0_i32_0 = arith.constant 0 : i32
    %c0_i32_1 = arith.constant 0 : i32
    %c0_i32_2 = arith.constant 0 : i32
    return %arg0, %c0_i32, %c0_i32_0, %c0_i32_1 : i32, i32, i32, i32
  }
  func.func @transform_1(%arg0: i32, %arg1: i32) -> (i32, i32, i32) {
    %c0_i32 = arith.constant 0 : i32
    %c0_i32_0 = arith.constant 0 : i32
    %c0_i32_1 = arith.constant 0 : i32
    %c0_i32_2 = arith.constant 0 : i32
    return %c0_i32, %c0_i32_0, %c0_i32_1 : i32, i32, i32
  }
  func.func @transform_2(%arg0: i32, %arg1: i32) -> (i32, i32) {
    %c0_i32 = arith.constant 0 : i32
    %c0_i32_0 = arith.constant 0 : i32
    %c0_i32_1 = arith.constant 0 : i32
    return %c0_i32, %c0_i32_0 : i32, i32
  }
  func.func @transform_3(%arg0: i32, %arg1: i32) -> (i32, i32, i32, i32) {
    %c0_i32 = arith.constant 0 : i32
    %c0_i32_0 = arith.constant 0 : i32
    %c0_i32_1 = arith.constant 0 : i32
    return %arg0, %arg1, %c0_i32, %c0_i32_0 : i32, i32, i32, i32
  }
}

</mosaic_0001>

<llo_original>
// kernel: tpu_custom_call.1
$region0: #{tpu_custom_call.1}
  #allocation0 [shape = 'u32[]', space=smem, size = 0x4, offset = 0x4, fixed_abs, tag = 'smem constant byte address 0x4 - core index']
  #allocation1 [shape = 'u32[144,128]{1,0:T(1,128)}', space=vmem, size = 0x12000, scoped, tag = 'internal scratch']
  %s0 = inlined_call_operand.vmem [shape: bf16[2,22,22,4], index: 0, kind: input, shape index: {}]
  %s1 = inlined_call_operand.vmem [shape: bf16[14,4,8], index: 1, kind: input, shape index: {}]
  %s2 = inlined_call_operand.vmem [shape: f32[1,8], index: 2, kind: input, shape index: {}]
  %s3 = inlined_call_operand.vmem [shape: bf16[2,16,16,8], index: 3, kind: output, shape index: {}]
  %s4 = sld [smem:[#allocation0]]
  $region45: #{tpu_custom_call.1} parent=0
    _
  %s6 = ssub.s32 1, %s4
  %s7 = scalar_select 0, %s6, %s4
  loop: start=0, step=1, limit=6
  $region2: #{tpu_custom_call.1} parent=0 // loop_pre_header
    _
  $region3: #{tpu_custom_call.1} parent=0 // loop_header
    %s9 = sphi 0, %s13
    %p10 = scmp.ge.s32.totalorder %s9, 6
    %s16 = sphi 0, %s28
    %s17 = sphi 0, %s24
    %s18 = sphi 0, %s16
    %s19 = sphi 0, %s17
    %s20 = sphi 0, %s18
    %s21 = sphi 0, %s19
    %s31 = sphi 0, %s33
    %s34 = sphi 0, %s31
    %s35 = sphi 0, %s34
    %s51 = sphi 0, %s35
    %s55 = sphi 0, %s55
    %s57 = sphi 0, %s55
    %s58 = sphi 0, %s57
    %s72 = sphi 0, %s58
    %s76 = sphi 0, %s76
    %s78 = sphi 0, %s76
    %s79 = sphi 0, %s78
    %s93 = sphi 0, %s79
    %s101 = sphi 0, %s103
    %s104 = sphi 0, %s101
    %s105 = sphi 0, %s104
    %s121 = sphi 0, %s105
  $region4: #{tpu_custom_call.1} parent=0 // loop_header_branch
    %12 = sbr.rel (%p10) target = $region8
  $region5: #{tpu_custom_call.1} parent=0 // loop_body
    %s14 = ssub.s32 %s9, 1
    %s15 = ssub.s32 %s9, 2
    %s22 = sadd.s32 1, %s17
    %p23 = scmp.ge.s32.totalorder %s22, 2
    %s24 = scalar_select %p23, 0, %s22
    %s25 = sadd.s32 1, %s16
    %s26 = scalar_select %p23, %s25, %s16
    %p27 = scmp.ge.s32.totalorder %s26, 2
    %s28 = scalar_select %p27, 0, %s26
    %s29 = ssub.s32 %s16, %s28
    %p30 = scmp.eq.s32.totalorder %s29, 0
    %s32 = sadd.s32 %s31, 1
    %s33 = scalar_select %p30, %s31, %s32
    %p36 = pneg %p30
    %p37 = scmp.eq.s32.totalorder %s9, 3
    %p38 = por %p36, %p37
    %p39 = scmp.ne.s32.totalorder %s31, %s34
    %p40 = scmp.eq.s32.totalorder %s9, 0
    %p41 = por %p39, %p40
    %p42 = scmp.ne.s32.totalorder %s31, %s34
    %p43 = scmp.eq.s32.totalorder %s14, 3
    %p44 = por %p42, %p43
    %p45 = scmp.ne.s32.totalorder %s34, %s35
    %p46 = scmp.eq.s32.totalorder %s14, 0
    %p47 = por %p45, %p46
    %p48 = scmp.ne.s32.totalorder %s34, %s35
    %p49 = scmp.eq.s32.totalorder %s15, 3
    %p50 = por %p48, %p49
    %p52 = scmp.ne.s32.totalorder %s35, %s51
    %p53 = scmp.eq.s32.totalorder %s15, 0
    %p54 = por %p52, %p53
    %s56 = sadd.s32 %s55, 1
    %p59 = scmp.eq.s32.totalorder %s9, 3
    %p60 = scmp.ne.s32.totalorder %s55, %s57
    %p61 = scmp.eq.s32.totalorder %s9, 0
    %p62 = por %p60, %p61
    %p63 = scmp.ne.s32.totalorder %s55, %s57
    %p64 = scmp.eq.s32.totalorder %s14, 3
    %p65 = por %p63, %p64
    %p66 = scmp.ne.s32.totalorder %s57, %s58
    %p67 = scmp.eq.s32.totalorder %s14, 0
    %p68 = por %p66, %p67
    %p69 = scmp.ne.s32.totalorder %s57, %s58
    %p70 = scmp.eq.s32.totalorder %s15, 3
    %p71 = por %p69, %p70
    %p73 = scmp.ne.s32.totalorder %s58, %s72
    %p74 = scmp.eq.s32.totalorder %s15, 0
    %p75 = por %p73, %p74
    %s77 = sadd.s32 %s76, 1
    %p80 = scmp.eq.s32.totalorder %s9, 3
    %p81 = scmp.ne.s32.totalorder %s76, %s78
    %p82 = scmp.eq.s32.totalorder %s9, 0
    %p83 = por %p81, %p82
    %p84 = scmp.ne.s32.totalorder %s76, %s78
    %p85 = scmp.eq.s32.totalorder %s14, 3
    %p86 = por %p84, %p85
    %p87 = scmp.ne.s32.totalorder %s78, %s79
    %p88 = scmp.eq.s32.totalorder %s14, 0
    %p89 = por %p87, %p88
    %p90 = scmp.ne.s32.totalorder %s78, %s79
    %p91 = scmp.eq.s32.totalorder %s15, 3
    %p92 = por %p90, %p91
    %p94 = scmp.ne.s32.totalorder %s79, %s93
    %p95 = scmp.eq.s32.totalorder %s15, 0
    %p96 = por %p94, %p95
    %s97 = ssub.s32 %s16, %s28
    %s98 = ssub.s32 %s17, %s24
    %s99 = sor.u32 %s97, %s98
    %p100 = scmp.eq.s32.totalorder %s99, 0
    %s102 = sadd.s32 %s101, 1
    %s103 = scalar_select %p100, %s101, %s102
    %p106 = pneg %p100
    %p107 = scmp.eq.s32.totalorder %s9, 3
    %p108 = por %p106, %p107
    %p109 = scmp.ne.s32.totalorder %s101, %s104
    %p110 = scmp.eq.s32.totalorder %s9, 0
    %p111 = por %p109, %p110
    %p112 = scmp.ne.s32.totalorder %s101, %s104
    %p113 = scmp.eq.s32.totalorder %s14, 3
    %p114 = por %p112, %p113
    %p115 = scmp.ne.s32.totalorder %s104, %s105
    %p116 = scmp.eq.s32.totalorder %s14, 0
    %p117 = por %p115, %p116
    %p118 = scmp.ne.s32.totalorder %s104, %s105
    %p119 = scmp.eq.s32.totalorder %s15, 3
    %p120 = por %p118, %p119
    %p122 = scmp.ne.s32.totalorder %s105, %s121
    %p123 = scmp.eq.s32.totalorder %s15, 0
    %p124 = por %p122, %p123
    %p125 = scmp.le.s32.totalorder 1, %s9
    %p126 = scmp.lt.s32.totalorder %s9, 5
    %p127 = pnand %p125, %p126
    %p128 = pneg %p127
    // Predicated region
    $region9: #{tpu_custom_call.1} parent=5 // pred_check
      _
    $region10: #{tpu_custom_call.1} parent=5 // pred_check_branch
      %130 = sbr.rel (%p127) target = $region12
    $region11: #{tpu_custom_call.1} parent=5 // pred_region
      %s131 = ssub.s32 %s9, 1
      // Predicated region
      $region13: #{tpu_custom_call.1} parent=11 // pred_check
        %p132 = pneg %p68
      $region14: #{tpu_custom_call.1} parent=11 // pred_check_branch
        %134 = sbr.rel (%p132) target = $region16
      $region15: #{tpu_custom_call.1} parent=11 // pred_region
        _
      $region16: #{tpu_custom_call.1} parent=11 // pred_fallthru
        _
      // Predicated region
      $region17: #{tpu_custom_call.1} parent=11 // pred_check
        %p135 = pneg %p89
      $region18: #{tpu_custom_call.1} parent=11 // pred_check_branch
        %137 = sbr.rel (%p135) target = $region20
      $region19: #{tpu_custom_call.1} parent=11 // pred_region
        _
      $region20: #{tpu_custom_call.1} parent=11 // pred_fallthru
        _
    $region12: #{tpu_custom_call.1} parent=5 // pred_fallthru
      _
    %p138 = scmp.lt.s32.totalorder %s9, 4
    // Predicated region
    $region21: #{tpu_custom_call.1} parent=5 // pred_check
      %p139 = pneg %p138
    $region22: #{tpu_custom_call.1} parent=5 // pred_check_branch
      %141 = sbr.rel (%p139) target = $region24
    $region23: #{tpu_custom_call.1} parent=5 // pred_region
      // Predicated region
      $region25: #{tpu_custom_call.1} parent=23 // pred_check
        %p142 = pneg %p41
      $region26: #{tpu_custom_call.1} parent=23 // pred_check_branch
        %144 = sbr.rel (%p142) target = $region28
      $region27: #{tpu_custom_call.1} parent=23 // pred_region
        %p145 = scmp.lt.s32.totalorder %s16, 1
        %s146 = scalar_select %p145, %s16, 1
        %s147 = smul.addr %s146, 66
        %s148 = smul.addr %s147, 4
        %s149 = scalar_lea.vmem %s0, %s148
      $region28: #{tpu_custom_call.1} parent=23 // pred_fallthru
        _
    $region24: #{tpu_custom_call.1} parent=5 // pred_fallthru
      _
    %p150 = scmp.le.s32.totalorder 1, %s9
    %p151 = scmp.lt.s32.totalorder %s9, 5
    %p152 = pnand %p150, %p151
    %p153 = pneg %p152
    // Predicated region
    $region29: #{tpu_custom_call.1} parent=5 // pred_check
      _
    $region30: #{tpu_custom_call.1} parent=5 // pred_check_branch
      %155 = sbr.rel (%p152) target = $region32
    $region31: #{tpu_custom_call.1} parent=5 // pred_region
      %s156 = ssub.s32 %s9, 1
      %p157 = scmp.lt.s32.totalorder %s18, 1
      %s158 = scalar_select %p157, %s18, 1
      %s159 = smul.addr %s158, 66
      %s160 = smul.addr %s159, 4
      %s161 = scalar_lea.vmem %s0, %s160
      %p162 = pneg %p47
      %p163 = pneg %p44
      %p164 = pneg %p68
      %p165 = pneg %p65
      %p166 = pneg %p89
      %p167 = pneg %p86
      %p168 = pneg %p117
      %p169 = pneg %p114
      %s170 = smul.u32 8, %s19
      %p171 = scmp.lt.s32.totalorder %s18, 1
      %s172 = scalar_select %p171, %s18, 1
      %p173 = scmp.lt.s32.totalorder %s170, 15
      %s174 = scalar_select %p173, %s170, 15
      %s175 = smul.addr %s174, 2
      %s176 = smul.addr %s172, 32
      %s177 = sadd.s32 %s175, %s176
      %s178 = smul.addr %s177, 4
      %s179 = scalar_lea.vmem %s3, %s178
      %p180 = scmp.lt.s32.totalorder %s18, 1
      %s181 = scalar_select %p180, %s18, 1
      %s182 = smul.addr %s181, 66
      %s183 = smul.addr %s182, 4
      %s184 = scalar_lea.vmem %s0, %s183
      %s185 = smul.u32 8, %s19
      %p186 = scmp.lt.s32.totalorder %s18, 1
      %s187 = scalar_select %p186, %s18, 1
      %p188 = scmp.lt.s32.totalorder %s185, 15
      %s189 = scalar_select %p188, %s185, 15
      %s190 = smul.addr %s189, 2
      %s191 = smul.addr %s187, 32
      %s192 = sadd.s32 %s190, %s191
      %s193 = smul.addr %s192, 4
      %s194 = scalar_lea.vmem %s3, %s193
      %s195 = smul.u32 8, %s19
      %s197 = smul.u32 %s19, 8
      %s198 = sadd.s32 %s197, 3
      %s199 = smul.u32 %s198, 3
      %s200 = smul.addr %s199, 4
      %s201 = scalar_lea.vmem %s184, %s200
      %v202 = vld [vmem:[%s201] sm:$0xf]
      %v203 = vld [vmem:[%s201 + $0x4] sm:$0xf]
      %v204 = vld [vmem:[%s201 + $0xc] sm:$0xf]
      %v205 = vld [vmem:[%s201 + $0x10] sm:$0xf]
      %v206 = vld [vmem:[%s201 + $0x18] sm:$0xf]
      %v207 = vld [vmem:[%s201 + $0x1c] sm:$0xf]
      %v208 = vld [vmem:[%s201 + $0x24] sm:$0xf]
      %v209 = vld [vmem:[%s201 + $0x28] sm:$0xf]
      %v210 = vld [vmem:[%s201 + $0x30] sm:$0xf]
      %v211 = vld [vmem:[%s201 + $0x34] sm:$0xf]
      %v212 = vld [vmem:[%s201 + $0x3c] sm:$0xf]
      %v213 = vld [vmem:[%s201 + $0x40] sm:$0xf]
      %v214 = vld [vmem:[%s201 + $0x48] sm:$0xf]
      %v215 = vld [vmem:[%s201 + $0x4c] sm:$0xf]
      %v216 = vld [vmem:[%s201 + $0x54] sm:$0xf]
      %v217 = vld [vmem:[%s201 + $0x58] sm:$0xf]
      %v218 = vld [vmem:[%s201 + $0x8] sm:$0x1]
      %v219 = vld [vmem:[%s201 + $0x14] sm:$0x1]
      %v220 = vld [vmem:[%s201 + $0x20] sm:$0x1]
      %v221 = vld [vmem:[%s201 + $0x2c] sm:$0x1]
      %v222 = vld [vmem:[%s201 + $0x38] sm:$0x1]
      %v223 = vld [vmem:[%s201 + $0x44] sm:$0x1]
      %v224 = vld [vmem:[%s201 + $0x50] sm:$0x1]
      %v225 = vld [vmem:[%s201 + $0x5c] sm:$0x1]
      %v226 = vld [vmem:[%s201] sm:$0xe]
      %v227 = vld [vmem:[%s201 + $0xc] sm:$0xe]
      %v228 = vld [vmem:[%s201 + $0x18] sm:$0xe]
      %v229 = vld [vmem:[%s201 + $0x24] sm:$0xe]
      %v230 = vld [vmem:[%s201 + $0x30] sm:$0xe]
      %v231 = vld [vmem:[%s201 + $0x3c] sm:$0xe]
      %v232 = vld [vmem:[%s201 + $0x48] sm:$0xe]
      %v233 = vld [vmem:[%s201 + $0x54] sm:$0xe]
      %v234 = vld [vmem:[%s201 + $0x8] sm:$0x3]
      %v235 = vld [vmem:[%s201 + $0x14] sm:$0x3]
      %v236 = vld [vmem:[%s201 + $0x20] sm:$0x3]
      %v237 = vld [vmem:[%s201 + $0x2c] sm:$0x3]
      %v238 = vld [vmem:[%s201 + $0x38] sm:$0x3]
      %v239 = vld [vmem:[%s201 + $0x44] sm:$0x3]
      %v240 = vld [vmem:[%s201 + $0x50] sm:$0x3]
      %v241 = vld [vmem:[%s201 + $0x5c] sm:$0x3]
      %v242 = vld [vmem:[%s201] sm:$0xc]
      %v243 = vld [vmem:[%s201 + $0xc] sm:$0xc]
      %v244 = vld [vmem:[%s201 + $0x18] sm:$0xc]
      %v245 = vld [vmem:[%s201 + $0x24] sm:$0xc]
      %v246 = vld [vmem:[%s201 + $0x30] sm:$0xc]
      %v247 = vld [vmem:[%s201 + $0x3c] sm:$0xc]
      %v248 = vld [vmem:[%s201 + $0x48] sm:$0xc]
      %v249 = vld [vmem:[%s201 + $0x54] sm:$0xc]
      %v250 = vld [vmem:[%s201 + $0x8] sm:$0x7]
      %v251 = vld [vmem:[%s201 + $0x14] sm:$0x7]
      %v252 = vld [vmem:[%s201 + $0x20] sm:$0x7]
      %v253 = vld [vmem:[%s201 + $0x2c] sm:$0x7]
      %v254 = vld [vmem:[%s201 + $0x38] sm:$0x7]
      %v255 = vld [vmem:[%s201 + $0x44] sm:$0x7]
      %v256 = vld [vmem:[%s201 + $0x50] sm:$0x7]
      %v257 = vld [vmem:[%s201 + $0x5c] sm:$0x7]
      %v258 = vld [vmem:[%s201] sm:$0x8]
      %v259 = vld [vmem:[%s201 + $0xc] sm:$0x8]
      %v260 = vld [vmem:[%s201 + $0x18] sm:$0x8]
      %v261 = vld [vmem:[%s201 + $0x24] sm:$0x8]
      %v262 = vld [vmem:[%s201 + $0x30] sm:$0x8]
      %v263 = vld [vmem:[%s201 + $0x3c] sm:$0x8]
      %v264 = vld [vmem:[%s201 + $0x48] sm:$0x8]
      %v265 = vld [vmem:[%s201 + $0x54] sm:$0x8]
      %s266 = smul.u32 %s197, 3
      %s267 = smul.addr %s266, 4
      %s268 = scalar_lea.vmem %s184, %s267
      %v269 = vld [vmem:[%s268] sm:$0xe]
      %v270 = vld [vmem:[%s268 + $0x4] sm:$0xf]
      %v271 = vld [vmem:[%s268 + $0x8] sm:$0x3]
      %v272 = vld [vmem:[%s268 + $0xc] sm:$0xe]
      %v273 = vld [vmem:[%s268 + $0x10] sm:$0xf]
      %v274 = vld [vmem:[%s268 + $0x14] sm:$0x3]
      %v275 = vld [vmem:[%s268 + $0x18] sm:$0xe]
      %v276 = vld [vmem:[%s268 + $0x1c] sm:$0xf]
      %v277 = vld [vmem:[%s268 + $0x20] sm:$0x3]
      %v278 = vld [vmem:[%s268 + $0x24] sm:$0xe]
      %v279 = vld [vmem:[%s268 + $0x28] sm:$0xf]
      %v280 = vld [vmem:[%s268 + $0x2c] sm:$0x3]
      %v281 = vld [vmem:[%s268 + $0x30] sm:$0xe]
      %v282 = vld [vmem:[%s268 + $0x34] sm:$0xf]
      %v283 = vld [vmem:[%s268 + $0x38] sm:$0x3]
      %v284 = vld [vmem:[%s268 + $0x3c] sm:$0xe]
      %v285 = vld [vmem:[%s268 + $0x40] sm:$0xf]
      %v286 = vld [vmem:[%s268 + $0x44] sm:$0x3]
      %v287 = vld [vmem:[%s268 + $0x48] sm:$0xe]
      %v288 = vld [vmem:[%s268 + $0x4c] sm:$0xf]
      %v289 = vld [vmem:[%s268 + $0x50] sm:$0x3]
      %v290 = vld [vmem:[%s268 + $0x54] sm:$0xe]
      %v291 = vld [vmem:[%s268 + $0x58] sm:$0xf]
      %v292 = vld [vmem:[%s268 + $0x5c] sm:$0x3]
      %s293 = sadd.s32 %s197, 1
      %s294 = smul.u32 %s293, 3
      %s295 = smul.addr %s294, 4
      %s296 = scalar_lea.vmem %s184, %s295
      %v297 = vld [vmem:[%s296] sm:$0xe]
      %v298 = vld [vmem:[%s296 + $0x4] sm:$0xf]
      %v299 = vld [vmem:[%s296 + $0x8] sm:$0x3]
      %v300 = vld [vmem:[%s296 + $0xc] sm:$0xe]
      %v301 = vld [vmem:[%s296 + $0x10] sm:$0xf]
      %v302 = vld [vmem:[%s296 + $0x14] sm:$0x3]
      %v303 = vld [vmem:[%s296 + $0x18] sm:$0xe]
      %v304 = vld [vmem:[%s296 + $0x1c] sm:$0xf]
      %v305 = vld [vmem:[%s296 + $0x20] sm:$0x3]
      %v306 = vld [vmem:[%s296 + $0x24] sm:$0xe]
      %v307 = vld [vmem:[%s296 + $0x28] sm:$0xf]
      %v308 = vld [vmem:[%s296 + $0x2c] sm:$0x3]
      %v309 = vld [vmem:[%s296 + $0x30] sm:$0xe]
      %v310 = vld [vmem:[%s296 + $0x34] sm:$0xf]
      %v311 = vld [vmem:[%s296 + $0x38] sm:$0x3]
      %v312 = vld [vmem:[%s296 + $0x3c] sm:$0xe]
      %v313 = vld [vmem:[%s296 + $0x40] sm:$0xf]
      %v314 = vld [vmem:[%s296 + $0x44] sm:$0x3]
      %v315 = vld [vmem:[%s296 + $0x48] sm:$0xe]
      %v316 = vld [vmem:[%s296 + $0x4c] sm:$0xf]
      %v317 = vld [vmem:[%s296 + $0x50] sm:$0x3]
      %v318 = vld [vmem:[%s296 + $0x54] sm:$0xe]
      %v319 = vld [vmem:[%s296 + $0x58] sm:$0xf]
      %v320 = vld [vmem:[%s296 + $0x5c] sm:$0x3]
      %s321 = sadd.s32 %s197, 2
      %s322 = smul.u32 %s321, 3
      %s323 = smul.addr %s322, 4
      %s324 = scalar_lea.vmem %s184, %s323
      %v325 = vld [vmem:[%s324] sm:$0xe]
      %v326 = vld [vmem:[%s324 + $0x4] sm:$0xf]
      %v327 = vld [vmem:[%s324 + $0x8] sm:$0x3]
      %v328 = vld [vmem:[%s324 + $0xc] sm:$0xe]
      %v329 = vld [vmem:[%s324 + $0x10] sm:$0xf]
      %v330 = vld [vmem:[%s324 + $0x14] sm:$0x3]
      %v331 = vld [vmem:[%s324 + $0x18] sm:$0xe]
      %v332 = vld [vmem:[%s324 + $0x1c] sm:$0xf]
      %v333 = vld [vmem:[%s324 + $0x20] sm:$0x3]
      %v334 = vld [vmem:[%s324 + $0x24] sm:$0xe]
      %v335 = vld [vmem:[%s324 + $0x28] sm:$0xf]
      %v336 = vld [vmem:[%s324 + $0x2c] sm:$0x3]
      %v337 = vld [vmem:[%s324 + $0x30] sm:$0xe]
      %v338 = vld [vmem:[%s324 + $0x34] sm:$0xf]
      %v339 = vld [vmem:[%s324 + $0x38] sm:$0x3]
      %v340 = vld [vmem:[%s324 + $0x3c] sm:$0xe]
      %v341 = vld [vmem:[%s324 + $0x40] sm:$0xf]
      %v342 = vld [vmem:[%s324 + $0x44] sm:$0x3]
      %v343 = vld [vmem:[%s324 + $0x48] sm:$0xe]
      %v344 = vld [vmem:[%s324 + $0x4c] sm:$0xf]
      %v345 = vld [vmem:[%s324 + $0x50] sm:$0x3]
      %v346 = vld [vmem:[%s324 + $0x54] sm:$0xe]
      %v347 = vld [vmem:[%s324 + $0x58] sm:$0xf]
      %v348 = vld [vmem:[%s324 + $0x5c] sm:$0x3]
      %s349 = sadd.s32 %s197, 4
      %s350 = smul.u32 %s349, 3
      %s351 = smul.addr %s350, 4
      %s352 = scalar_lea.vmem %s184, %s351
      %v353 = vld [vmem:[%s352] sm:$0xe]
      %v354 = vld [vmem:[%s352 + $0x4] sm:$0xf]
      %v355 = vld [vmem:[%s352 + $0x8] sm:$0x3]
      %v356 = vld [vmem:[%s352 + $0xc] sm:$0xe]
      %v357 = vld [vmem:[%s352 + $0x10] sm:$0xf]
      %v358 = vld [vmem:[%s352 + $0x14] sm:$0x3]
      %v359 = vld [vmem:[%s352 + $0x18] sm:$0xe]
      %v360 = vld [vmem:[%s352 + $0x1c] sm:$0xf]
      %v361 = vld [vmem:[%s352 + $0x20] sm:$0x3]
      %v362 = vld [vmem:[%s352 + $0x24] sm:$0xe]
      %v363 = vld [vmem:[%s352 + $0x28] sm:$0xf]
      %v364 = vld [vmem:[%s352 + $0x2c] sm:$0x3]
      %v365 = vld [vmem:[%s352 + $0x30] sm:$0xe]
      %v366 = vld [vmem:[%s352 + $0x34] sm:$0xf]
      %v367 = vld [vmem:[%s352 + $0x38] sm:$0x3]
      %v368 = vld [vmem:[%s352 + $0x3c] sm:$0xe]
      %v369 = vld [vmem:[%s352 + $0x40] sm:$0xf]
      %v370 = vld [vmem:[%s352 + $0x44] sm:$0x3]
      %v371 = vld [vmem:[%s352 + $0x48] sm:$0xe]
      %v372 = vld [vmem:[%s352 + $0x4c] sm:$0xf]
      %v373 = vld [vmem:[%s352 + $0x50] sm:$0x3]
      %v374 = vld [vmem:[%s352 + $0x54] sm:$0xe]
      %v375 = vld [vmem:[%s352 + $0x58] sm:$0xf]
      %v376 = vld [vmem:[%s352 + $0x5c] sm:$0x3]
      %s377 = sadd.s32 %s197, 5
      %s378 = smul.u32 %s377, 3
      %s379 = smul.addr %s378, 4
      %s380 = scalar_lea.vmem %s184, %s379
      %v381 = vld [vmem:[%s380] sm:$0xe]
      %v382 = vld [vmem:[%s380 + $0x4] sm:$0xf]
      %v383 = vld [vmem:[%s380 + $0x8] sm:$0x3]
      %v384 = vld [vmem:[%s380 + $0xc] sm:$0xe]
      %v385 = vld [vmem:[%s380 + $0x10] sm:$0xf]
      %v386 = vld [vmem:[%s380 + $0x14] sm:$0x3]
      %v387 = vld [vmem:[%s380 + $0x18] sm:$0xe]
      %v388 = vld [vmem:[%s380 + $0x1c] sm:$0xf]
      %v389 = vld [vmem:[%s380 + $0x20] sm:$0x3]
      %v390 = vld [vmem:[%s380 + $0x24] sm:$0xe]
      %v391 = vld [vmem:[%s380 + $0x28] sm:$0xf]
      %v392 = vld [vmem:[%s380 + $0x2c] sm:$0x3]
      %v393 = vld [vmem:[%s380 + $0x30] sm:$0xe]
      %v394 = vld [vmem:[%s380 + $0x34] sm:$0xf]
      %v395 = vld [vmem:[%s380 + $0x38] sm:$0x3]
      %v396 = vld [vmem:[%s380 + $0x3c] sm:$0xe]
      %v397 = vld [vmem:[%s380 + $0x40] sm:$0xf]
      %v398 = vld [vmem:[%s380 + $0x44] sm:$0x3]
      %v399 = vld [vmem:[%s380 + $0x48] sm:$0xe]
      %v400 = vld [vmem:[%s380 + $0x4c] sm:$0xf]
      %v401 = vld [vmem:[%s380 + $0x50] sm:$0x3]
      %v402 = vld [vmem:[%s380 + $0x54] sm:$0xe]
      %v403 = vld [vmem:[%s380 + $0x58] sm:$0xf]
      %v404 = vld [vmem:[%s380 + $0x5c] sm:$0x3]
      %s405 = sadd.s32 %s197, 6
      %s406 = smul.u32 %s405, 3
      %s407 = smul.addr %s406, 4
      %s408 = scalar_lea.vmem %s184, %s407
      %v409 = vld [vmem:[%s408] sm:$0xe]
      %v410 = vld [vmem:[%s408 + $0x4] sm:$0xf]
      %v411 = vld [vmem:[%s408 + $0x8] sm:$0x3]
      %v412 = vld [vmem:[%s408 + $0xc] sm:$0xe]
      %v413 = vld [vmem:[%s408 + $0x10] sm:$0xf]
      %v414 = vld [vmem:[%s408 + $0x14] sm:$0x3]
      %v415 = vld [vmem:[%s408 + $0x18] sm:$0xe]
      %v416 = vld [vmem:[%s408 + $0x1c] sm:$0xf]
      %v417 = vld [vmem:[%s408 + $0x20] sm:$0x3]
      %v418 = vld [vmem:[%s408 + $0x24] sm:$0xe]
      %v419 = vld [vmem:[%s408 + $0x28] sm:$0xf]
      %v420 = vld [vmem:[%s408 + $0x2c] sm:$0x3]
      %v421 = vld [vmem:[%s408 + $0x30] sm:$0xe]
      %v422 = vld [vmem:[%s408 + $0x34] sm:$0xf]
      %v423 = vld [vmem:[%s408 + $0x38] sm:$0x3]
      %v424 = vld [vmem:[%s408 + $0x3c] sm:$0xe]
      %v425 = vld [vmem:[%s408 + $0x40] sm:$0xf]
      %v426 = vld [vmem:[%s408 + $0x44] sm:$0x3]
      %v427 = vld [vmem:[%s408 + $0x48] sm:$0xe]
      %v428 = vld [vmem:[%s408 + $0x4c] sm:$0xf]
      %v429 = vld [vmem:[%s408 + $0x50] sm:$0x3]
      %v430 = vld [vmem:[%s408 + $0x54] sm:$0xe]
      %v431 = vld [vmem:[%s408 + $0x58] sm:$0xf]
      %v432 = vld [vmem:[%s408 + $0x5c] sm:$0x3]
      %v433 = vld [vmem:[%s1] sm:$0x3]
      %vm434 = vsmask.f32 3328
      %vm435 = vsmask.f32 7440
      %vm436 = vmor %vm434, %vm435
      %v438 = vshrl.u32 %v202, 16
      %v440 = vrot.slane %v438, 4
      %v441 = vshll.u32 %v202, 16
      %v443 = vrot.slane %v441, 5
      %v444 = vor.u32 %v440, %v443
      %v445 = vrot.slane %v444, 4
      %v447 = vshll.u32 %v203, 16
      %v449 = vrot.slane %v447, 5
      %v450 = vsel %vm436, %v445, %v449
      %v451 = vshrl.u32 %v203, 16
      %v453 = vrot.slane %v451, 4
      %v454 = vor.u32 %v453, %v449
      %v455 = vrot.slane %v454, 4
      %v457 = vshll.u32 %v218, 16
      %v459 = vrot.slane %v457, 5
      %v460 = vsel %vm436, %v455, %v459
      %v462 = vshrl.u32 %v204, 16
      %v464 = vrot.slane %v462, 4
      %v465 = vshll.u32 %v204, 16
      %v467 = vrot.slane %v465, 5
      %v468 = vor.u32 %v464, %v467
      %v469 = vrot.slane %v468, 4
      %v471 = vshll.u32 %v205, 16
      %v473 = vrot.slane %v471, 5
      %v474 = vsel %vm436, %v469, %v473
      %v475 = vshrl.u32 %v205, 16
      %v477 = vrot.slane %v475, 4
      %v478 = vor.u32 %v477, %v473
      %v479 = vrot.slane %v478, 4
      %v481 = vshll.u32 %v219, 16
      %v483 = vrot.slane %v481, 5
      %v484 = vsel %vm436, %v479, %v483
      %v486 = vshrl.u32 %v206, 16
      %v488 = vrot.slane %v486, 4
      %v489 = vshll.u32 %v206, 16
      %v491 = vrot.slane %v489, 5
      %v492 = vor.u32 %v488, %v491
      %v493 = vrot.slane %v492, 4
      %v495 = vshll.u32 %v207, 16
      %v497 = vrot.slane %v495, 5
      %v498 = vsel %vm436, %v493, %v497
      %v499 = vshrl.u32 %v207, 16
      %v501 = vrot.slane %v499, 4
      %v502 = vor.u32 %v501, %v497
      %v503 = vrot.slane %v502, 4
      %v505 = vshll.u32 %v220, 16
      %v507 = vrot.slane %v505, 5
      %v508 = vsel %vm436, %v503, %v507
      %v510 = vshrl.u32 %v208, 16
      %v512 = vrot.slane %v510, 4
      %v513 = vshll.u32 %v208, 16
      %v515 = vrot.slane %v513, 5
      %v516 = vor.u32 %v512, %v515
      %v517 = vrot.slane %v516, 4
      %v519 = vshll.u32 %v209, 16
      %v521 = vrot.slane %v519, 5
      %v522 = vsel %vm436, %v517, %v521
      %v523 = vshrl.u32 %v209, 16
      %v525 = vrot.slane %v523, 4
      %v526 = vor.u32 %v525, %v521
      %v527 = vrot.slane %v526, 4
      %v529 = vshll.u32 %v221, 16
      %v531 = vrot.slane %v529, 5
      %v532 = vsel %vm436, %v527, %v531
      %v534 = vshrl.u32 %v210, 16
      %v536 = vrot.slane %v534, 4
      %v537 = vshll.u32 %v210, 16
      %v539 = vrot.slane %v537, 5
      %v540 = vor.u32 %v536, %v539
      %v541 = vrot.slane %v540, 4
      %v543 = vshll.u32 %v211, 16
      %v545 = vrot.slane %v543, 5
      %v546 = vsel %vm436, %v541, %v545
      %v547 = vshrl.u32 %v211, 16
      %v549 = vrot.slane %v547, 4
      %v550 = vor.u32 %v549, %v545
      %v551 = vrot.slane %v550, 4
      %v553 = vshll.u32 %v222, 16
      %v555 = vrot.slane %v553, 5
      %v556 = vsel %vm436, %v551, %v555
      %v558 = vshrl.u32 %v212, 16
      %v560 = vrot.slane %v558, 4
      %v561 = vshll.u32 %v212, 16
      %v563 = vrot.slane %v561, 5
      %v564 = vor.u32 %v560, %v563
      %v565 = vrot.slane %v564, 4
      %v567 = vshll.u32 %v213, 16
      %v569 = vrot.slane %v567, 5
      %v570 = vsel %vm436, %v565, %v569
      %v571 = vshrl.u32 %v213, 16
      %v573 = vrot.slane %v571, 4
      %v574 = vor.u32 %v573, %v569
      %v575 = vrot.slane %v574, 4
      %v577 = vshll.u32 %v223, 16
      %v579 = vrot.slane %v577, 5
      %v580 = vsel %vm436, %v575, %v579
      %v582 = vshrl.u32 %v214, 16
      %v584 = vrot.slane %v582, 4
      %v585 = vshll.u32 %v214, 16
      %v587 = vrot.slane %v585, 5
      %v588 = vor.u32 %v584, %v587
      %v589 = vrot.slane %v588, 4
      %v591 = vshll.u32 %v215, 16
      %v593 = vrot.slane %v591, 5
      %v594 = vsel %vm436, %v589, %v593
      %v595 = vshrl.u32 %v215, 16
      %v597 = vrot.slane %v595, 4
      %v598 = vor.u32 %v597, %v593
      %v599 = vrot.slane %v598, 4
      %v601 = vshll.u32 %v224, 16
      %v603 = vrot.slane %v601, 5
      %v604 = vsel %vm436, %v599, %v603
      %v606 = vshrl.u32 %v216, 16
      %v608 = vrot.slane %v606, 4
      %v609 = vshll.u32 %v216, 16
      %v611 = vrot.slane %v609, 5
      %v612 = vor.u32 %v608, %v611
      %v613 = vrot.slane %v612, 4
      %v615 = vshll.u32 %v217, 16
      %v617 = vrot.slane %v615, 5
      %v618 = vsel %vm436, %v613, %v617
      %v619 = vshrl.u32 %v217, 16
      %v621 = vrot.slane %v619, 4
      %v622 = vor.u32 %v621, %v617
      %v623 = vrot.slane %v622, 4
      %v625 = vshll.u32 %v225, 16
      %v627 = vrot.slane %v625, 5
      %v628 = vsel %vm436, %v623, %v627
      %s629 = scalar_lea.vmem %s1, 2
      %v630 = vld [vmem:[%s629] sm:$0x3]
      %v631 = vunpack.c.l.b16 %v450
      %v632 = vunpack.c.l.b16 %v460
      %v633 = vunpack.c.l.b16 %v474
      %v634 = vunpack.c.l.b16 %v484
      %v635 = vunpack.c.l.b16 %v498
      %v636 = vunpack.c.l.b16 %v508
      %v637 = vunpack.c.l.b16 %v522
      %v638 = vunpack.c.l.b16 %v532
      %v639 = vunpack.c.l.b16 %v546
      %v640 = vunpack.c.l.b16 %v556
      %v641 = vunpack.c.l.b16 %v570
      %v642 = vunpack.c.l.b16 %v580
      %v643 = vunpack.c.l.b16 %v594
      %v644 = vunpack.c.l.b16 %v604
      %v645 = vunpack.c.l.b16 %v618
      %v646 = vunpack.c.l.b16 %v628
      %v647 = vpack.c.b16 %v632, %v631
      %v648 = vpack.c.b16 %v634, %v633
      %v649 = vpack.c.b16 %v636, %v635
      %v650 = vpack.c.b16 %v638, %v637
      %v651 = vpack.c.b16 %v640, %v639
      %v652 = vpack.c.b16 %v642, %v641
      %v653 = vpack.c.b16 %v644, %v643
      %v654 = vpack.c.b16 %v646, %v645
      %vm655 = vcmask 31744
      %v657 = vsel %vm655, %v647, 0
      %v660 = vsel %vm655, %v648, 0
      %v663 = vsel %vm655, %v649, 0
      %v666 = vsel %vm655, %v650, 0
      %v669 = vsel %vm655, %v651, 0
      %v672 = vsel %vm655, %v652, 0
      %v675 = vsel %vm655, %v653, 0
      %v678 = vsel %vm655, %v654, 0
      %vm680 = vcmask 1041408
      %v682 = vsel %vm680, %v630, 0
      %684 = vmatprep.subr.bf16.mxu0 0
      %685 = vmatpush1.bf16.msra.mxu0 0
      %686 = vmatprep.subr.bf16.mxu0 0
      %687 = vmatpush1.bf16.msra.mxu0 0
      %688 = vmatprep.subr.bf16.mxu0 0
      %689 = vmatpush1.bf16.msra.mxu0 0
      %690 = vmatprep.subr.bf16.mxu0 0
      %691 = vmatpush1.bf16.msra.mxu0 0
      %692 = vmatprep.subr.bf16.mxu0 0
      %693 = vmatpush1.bf16.msra.mxu0 0
      %694 = vmatprep.subr.bf16.mxu0 0
      %695 = vmatpush1.bf16.msra.mxu0 0
      %696 = vmatprep.subr.bf16.mxu0 0
      %697 = vmatpush1.bf16.msra.mxu0 0
      %698 = vmatprep.subr.bf16.mxu0 0
      %699 = vmatpush1.bf16.msra.mxu0 %v682
      %700 = vmatprep.subr.bf16.mxu0 0
      %701 = vmatpush2.bf16.msra.mxu0 0
      %702 = vmatprep.subr.bf16.mxu0 0
      %703 = vmatpush2.bf16.msra.mxu0 0
      %704 = vmatprep.subr.bf16.mxu0 0
      %705 = vmatpush2.bf16.msra.mxu0 0
      %706 = vmatprep.subr.bf16.mxu0 0
      %707 = vmatpush2.bf16.msra.mxu0 0
      %708 = vmatprep.subr.bf16.mxu0 0
      %709 = vmatpush2.bf16.msra.mxu0 0
      %710 = vmatprep.subr.bf16.mxu0 0
      %711 = vmatpush2.bf16.msra.mxu0 0
      %712 = vmatprep.subr.bf16.mxu0 0
      %713 = vmatpush2.bf16.msra.mxu0 0
      %714 = vmatprep.subr.bf16.mxu0 0
      %715 = vmatpush2.bf16.msra.mxu0 0
      %716 = vmatprep.mubr.bf16.mxu0 0
      %717 = vmatmul.mubr.bf16.gmra.mxu0 %v657
      %v718 = vpop.f32.mrf.mxu0
      %v719 = vadd.f32 0.0, %v718
      %v720 = vpop.f32.mrf.mxu0
      %v721 = vpop.f32.mrf.mxu0
      %v722 = vadd.f32 0.0, %v721
      %v723 = vpop.f32.mrf.mxu0
      %724 = vmatprep.mubr.bf16.mxu0 0
      %725 = vmatmul.mubr.bf16.gmra.mxu0 %v660
      %v726 = vpop.f32.mrf.mxu0
      %v727 = vadd.f32 0.0, %v726
      %v728 = vpop.f32.mrf.mxu0
      %v729 = vpop.f32.mrf.mxu0
      %v730 = vadd.f32 0.0, %v729
      %v731 = vpop.f32.mrf.mxu0
      %732 = vmatprep.mubr.bf16.mxu0 0
      %733 = vmatmul.mubr.bf16.gmra.mxu0 %v663
      %v734 = vpop.f32.mrf.mxu0
      %v735 = vadd.f32 0.0, %v734
      %v736 = vpop.f32.mrf.mxu0
      %v737 = vpop.f32.mrf.mxu0
      %v738 = vadd.f32 0.0, %v737
      %v739 = vpop.f32.mrf.mxu0
      %740 = vmatprep.mubr.bf16.mxu0 0
      %741 = vmatmul.mubr.bf16.gmra.mxu0 %v666
      %v742 = vpop.f32.mrf.mxu0
      %v743 = vadd.f32 0.0, %v742
      %v744 = vpop.f32.mrf.mxu0
      %v745 = vpop.f32.mrf.mxu0
      %v746 = vadd.f32 0.0, %v745
      %v747 = vpop.f32.mrf.mxu0
      %748 = vmatprep.mubr.bf16.mxu0 0
      %749 = vmatmul.mubr.bf16.gmra.mxu0 %v669
      %v750 = vpop.f32.mrf.mxu0
      %v751 = vadd.f32 0.0, %v750
      %v752 = vpop.f32.mrf.mxu0
      %v753 = vpop.f32.mrf.mxu0
      %v754 = vadd.f32 0.0, %v753
      %v755 = vpop.f32.mrf.mxu0
      %756 = vmatprep.mubr.bf16.mxu0 0
      %757 = vmatmul.mubr.bf16.gmra.mxu0 %v672
      %v758 = vpop.f32.mrf.mxu0
      %v759 = vadd.f32 0.0, %v758
      %v760 = vpop.f32.mrf.mxu0
      %v761 = vpop.f32.mrf.mxu0
      %v762 = vadd.f32 0.0, %v761
      %v763 = vpop.f32.mrf.mxu0
      %764 = vmatprep.mubr.bf16.mxu0 0
      %765 = vmatmul.mubr.bf16.gmra.mxu0 %v675
      %v766 = vpop.f32.mrf.mxu0
      %v767 = vadd.f32 0.0, %v766
      %v768 = vpop.f32.mrf.mxu0
      %v769 = vpop.f32.mrf.mxu0
      %v770 = vadd.f32 0.0, %v769
      %v771 = vpop.f32.mrf.mxu0
      %772 = vmatprep.mubr.bf16.mxu0 0
      %773 = vmatmul.mubr.bf16.gmra.mxu0 %v678
      %v774 = vpop.f32.mrf.mxu0
      %v775 = vadd.f32 0.0, %v774
      %v776 = vpop.f32.mrf.mxu0
      %v777 = vpop.f32.mrf.mxu0
      %v778 = vadd.f32 0.0, %v777
      %v779 = vpop.f32.mrf.mxu0
      %780 = vdwg.mxu0
      %v797 = vunpack.c.l.b16 %v202
      %v798 = vunpack.c.l.b16 %v203
      %v799 = vunpack.c.l.b16 %v204
      %v800 = vunpack.c.l.b16 %v205
      %v801 = vunpack.c.l.b16 %v206
      %v802 = vunpack.c.l.b16 %v207
      %v803 = vunpack.c.l.b16 %v208
      %v804 = vunpack.c.l.b16 %v209
      %v805 = vunpack.c.l.b16 %v210
      %v806 = vunpack.c.l.b16 %v211
      %v807 = vunpack.c.l.b16 %v212
      %v808 = vunpack.c.l.b16 %v213
      %v809 = vunpack.c.l.b16 %v214
      %v810 = vunpack.c.l.b16 %v215
      %v811 = vunpack.c.l.b16 %v216
      %v812 = vunpack.c.l.b16 %v217
      %v813 = vpack.c.b16 %v798, %v797
      %v814 = vpack.c.b16 %v800, %v799
      %v815 = vpack.c.b16 %v802, %v801
      %v816 = vpack.c.b16 %v804, %v803
      %v817 = vpack.c.b16 %v806, %v805
      %v818 = vpack.c.b16 %v808, %v807
      %v819 = vpack.c.b16 %v810, %v809
      %v820 = vpack.c.b16 %v812, %v811
      %v822 = vsel %vm655, %v813, 0
      %v825 = vsel %vm655, %v814, 0
      %v828 = vsel %vm655, %v815, 0
      %v831 = vsel %vm655, %v816, 0
      %v834 = vsel %vm655, %v817, 0
      %v837 = vsel %vm655, %v818, 0
      %v840 = vsel %vm655, %v819, 0
      %v843 = vsel %vm655, %v820, 0
      %v846 = vsel %vm680, %v433, 0
      %848 = vmatprep.subr.bf16.mxu0 0
      %849 = vmatpush1.bf16.msra.mxu0 0
      %850 = vmatprep.subr.bf16.mxu0 0
      %851 = vmatpush1.bf16.msra.mxu0 0
      %852 = vmatprep.subr.bf16.mxu0 0
      %853 = vmatpush1.bf16.msra.mxu0 0
      %854 = vmatprep.subr.bf16.mxu0 0
      %855 = vmatpush1.bf16.msra.mxu0 0
      %856 = vmatprep.subr.bf16.mxu0 0
      %857 = vmatpush1.bf16.msra.mxu0 0
      %858 = vmatprep.subr.bf16.mxu0 0
      %859 = vmatpush1.bf16.msra.mxu0 0
      %860 = vmatprep.subr.bf16.mxu0 0
      %861 = vmatpush1.bf16.msra.mxu0 0
      %862 = vmatprep.subr.bf16.mxu0 0
      %863 = vmatpush1.bf16.msra.mxu0 %v846
      %864 = vmatprep.subr.bf16.mxu0 0
      %865 = vmatpush2.bf16.msra.mxu0 0
      %866 = vmatprep.subr.bf16.mxu0 0
      %867 = vmatpush2.bf16.msra.mxu0 0
      %868 = vmatprep.subr.bf16.mxu0 0
      %869 = vmatpush2.bf16.msra.mxu0 0
      %870 = vmatprep.subr.bf16.mxu0 0
      %871 = vmatpush2.bf16.msra.mxu0 0
      %872 = vmatprep.subr.bf16.mxu0 0
      %873 = vmatpush2.bf16.msra.mxu0 0
      %874 = vmatprep.subr.bf16.mxu0 0
      %875 = vmatpush2.bf16.msra.mxu0 0
      %876 = vmatprep.subr.bf16.mxu0 0
      %877 = vmatpush2.bf16.msra.mxu0 0
      %878 = vmatprep.subr.bf16.mxu0 0
      %879 = vmatpush2.bf16.msra.mxu0 0
      %880 = vmatprep.mubr.bf16.mxu0 0
      %881 = vmatmul.mubr.bf16.gmra.mxu0 %v822
      %v882 = vpop.f32.mrf.mxu0
      %v883 = vadd.f32 %v719, %v882
      %v884 = vpop.f32.mrf.mxu0
      %v885 = vpop.f32.mrf.mxu0
      %v886 = vadd.f32 %v722, %v885
      %v887 = vpop.f32.mrf.mxu0
      %888 = vmatprep.mubr.bf16.mxu0 0
      %889 = vmatmul.mubr.bf16.gmra.mxu0 %v825
      %v890 = vpop.f32.mrf.mxu0
      %v891 = vadd.f32 %v727, %v890
      %v892 = vpop.f32.mrf.mxu0
      %v893 = vpop.f32.mrf.mxu0
      %v894 = vadd.f32 %v730, %v893
      %v895 = vpop.f32.mrf.mxu0
      %896 = vmatprep.mubr.bf16.mxu0 0
      %897 = vmatmul.mubr.bf16.gmra.mxu0 %v828
      %v898 = vpop.f32.mrf.mxu0
      %v899 = vadd.f32 %v735, %v898
      %v900 = vpop.f32.mrf.mxu0
      %v901 = vpop.f32.mrf.mxu0
      %v902 = vadd.f32 %v738, %v901
      %v903 = vpop.f32.mrf.mxu0
      %904 = vmatprep.mubr.bf16.mxu0 0
      %905 = vmatmul.mubr.bf16.gmra.mxu0 %v831
      %v906 = vpop.f32.mrf.mxu0
      %v907 = vadd.f32 %v743, %v906
      %v908 = vpop.f32.mrf.mxu0
      %v909 = vpop.f32.mrf.mxu0
      %v910 = vadd.f32 %v746, %v909
      %v911 = vpop.f32.mrf.mxu0
      %912 = vmatprep.mubr.bf16.mxu0 0
      %913 = vmatmul.mubr.bf16.gmra.mxu0 %v834
      %v914 = vpop.f32.mrf.mxu0
      %v915 = vadd.f32 %v751, %v914
      %v916 = vpop.f32.mrf.mxu0
      %v917 = vpop.f32.mrf.mxu0
      %v918 = vadd.f32 %v754, %v917
      %v919 = vpop.f32.mrf.mxu0
      %920 = vmatprep.mubr.bf16.mxu0 0
      %921 = vmatmul.mubr.bf16.gmra.mxu0 %v837
      %v922 = vpop.f32.mrf.mxu0
      %v923 = vadd.f32 %v759, %v922
      %v924 = vpop.f32.mrf.mxu0
      %v925 = vpop.f32.mrf.mxu0
      %v926 = vadd.f32 %v762, %v925
      %v927 = vpop.f32.mrf.mxu0
      %928 = vmatprep.mubr.bf16.mxu0 0
      %929 = vmatmul.mubr.bf16.gmra.mxu0 %v840
      %v930 = vpop.f32.mrf.mxu0
      %v931 = vadd.f32 %v767, %v930
      %v932 = vpop.f32.mrf.mxu0
      %v933 = vpop.f32.mrf.mxu0
      %v934 = vadd.f32 %v770, %v933
      %v935 = vpop.f32.mrf.mxu0
      %936 = vmatprep.mubr.bf16.mxu0 0
      %937 = vmatmul.mubr.bf16.gmra.mxu0 %v843
      %v938 = vpop.f32.mrf.mxu0
      %v939 = vadd.f32 %v775, %v938
      %v940 = vpop.f32.mrf.mxu0
      %v941 = vpop.f32.mrf.mxu0
      %v942 = vadd.f32 %v778, %v941
      %v943 = vpop.f32.mrf.mxu0
      %944 = vdwg.mxu0
      %vm961 = vcmask 1042432
      %vm962 = vcmask 1046532
      %vm963 = vmor %vm961, %vm962
      %v964 = vrot.slane %v226, 5
      %v965 = vrot.slane %v964, 4
      %v966 = vrot.slane %v203, 5
      %v967 = vsel %vm963, %v965, %v966
      %v968 = vrot.slane %v966, 4
      %v969 = vrot.slane %v218, 5
      %v970 = vsel %vm963, %v968, %v969
      %v971 = vrot.slane %v227, 5
      %v972 = vrot.slane %v971, 4
      %v973 = vrot.slane %v205, 5
      %v974 = vsel %vm963, %v972, %v973
      %v975 = vrot.slane %v973, 4
      %v976 = vrot.slane %v219, 5
      %v977 = vsel %vm963, %v975, %v976
      %v978 = vrot.slane %v228, 5
      %v979 = vrot.slane %v978, 4
      %v980 = vrot.slane %v207, 5
      %v981 = vsel %vm963, %v979, %v980
      %v982 = vrot.slane %v980, 4
      %v983 = vrot.slane %v220, 5
      %v984 = vsel %vm963, %v982, %v983
      %v985 = vrot.slane %v229, 5
      %v986 = vrot.slane %v985, 4
      %v987 = vrot.slane %v209, 5
      %v988 = vsel %vm963, %v986, %v987
      %v989 = vrot.slane %v987, 4
      %v990 = vrot.slane %v221, 5
      %v991 = vsel %vm963, %v989, %v990
      %v992 = vrot.slane %v230, 5
      %v993 = vrot.slane %v992, 4
      %v994 = vrot.slane %v211, 5
      %v995 = vsel %vm963, %v993, %v994
      %v996 = vrot.slane %v994, 4
      %v997 = vrot.slane %v222, 5
      %v998 = vsel %vm963, %v996, %v997
      %v999 = vrot.slane %v231, 5
      %v1000 = vrot.slane %v999, 4
      %v1001 = vrot.slane %v213, 5
      %v1002 = vsel %vm963, %v1000, %v1001
      %v1003 = vrot.slane %v1001, 4
      %v1004 = vrot.slane %v223, 5
      %v1005 = vsel %vm963, %v1003, %v1004
      %v1006 = vrot.slane %v232, 5
      %v1007 = vrot.slane %v1006, 4
      %v1008 = vrot.slane %v215, 5
      %v1009 = vsel %vm963, %v1007, %v1008
      %v1010 = vrot.slane %v1008, 4
      %v1011 = vrot.slane %v224, 5
      %v1012 = vsel %vm963, %v1010, %v1011
      %v1013 = vrot.slane %v233, 5
      %v1014 = vrot.slane %v1013, 4
      %v1015 = vrot.slane %v217, 5
      %v1016 = vsel %vm963, %v1014, %v1015
      %v1017 = vrot.slane %v1015, 4
      %v1018 = vrot.slane %v225, 5
      %v1019 = vsel %vm963, %v1017, %v1018
      %s1020 = scalar_lea.vmem %s1, 4
      %v1021 = vld [vmem:[%s1020] sm:$0x3]
      %v1022 = vunpack.c.l.b16 %v967
      %v1023 = vunpack.c.l.b16 %v970
      %v1024 = vunpack.c.l.b16 %v974
      %v1025 = vunpack.c.l.b16 %v977
      %v1026 = vunpack.c.l.b16 %v981
      %v1027 = vunpack.c.l.b16 %v984
      %v1028 = vunpack.c.l.b16 %v988
      %v1029 = vunpack.c.l.b16 %v991
      %v1030 = vunpack.c.l.b16 %v995
      %v1031 = vunpack.c.l.b16 %v998
      %v1032 = vunpack.c.l.b16 %v1002
      %v1033 = vunpack.c.l.b16 %v1005
      %v1034 = vunpack.c.l.b16 %v1009
      %v1035 = vunpack.c.l.b16 %v1012
      %v1036 = vunpack.c.l.b16 %v1016
      %v1037 = vunpack.c.l.b16 %v1019
      %v1038 = vpack.c.b16 %v1023, %v1022
      %v1039 = vpack.c.b16 %v1025, %v1024
      %v1040 = vpack.c.b16 %v1027, %v1026
      %v1041 = vpack.c.b16 %v1029, %v1028
      %v1042 = vpack.c.b16 %v1031, %v1030
      %v1043 = vpack.c.b16 %v1033, %v1032
      %v1044 = vpack.c.b16 %v1035, %v1034
      %v1045 = vpack.c.b16 %v1037, %v1036
      %v1047 = vsel %vm655, %v1038, 0
      %v1050 = vsel %vm655, %v1039, 0
      %v1053 = vsel %vm655, %v1040, 0
      %v1056 = vsel %vm655, %v1041, 0
      %v1059 = vsel %vm655, %v1042, 0
      %v1062 = vsel %vm655, %v1043, 0
      %v1065 = vsel %vm655, %v1044, 0
      %v1068 = vsel %vm655, %v1045, 0
      %v1071 = vsel %vm680, %v1021, 0
      %1073 = vmatprep.subr.bf16.mxu0 0
      %1074 = vmatpush1.bf16.msra.mxu0 0
      %1075 = vmatprep.subr.bf16.mxu0 0
      %1076 = vmatpush1.bf16.msra.mxu0 0
      %1077 = vmatprep.subr.bf16.mxu0 0
      %1078 = vmatpush1.bf16.msra.mxu0 0
      %1079 = vmatprep.subr.bf16.mxu0 0
      %1080 = vmatpush1.bf16.msra.mxu0 0
      %1081 = vmatprep.subr.bf16.mxu0 0
      %1082 = vmatpush1.bf16.msra.mxu0 0
      %1083 = vmatprep.subr.bf16.mxu0 0
      %1084 = vmatpush1.bf16.msra.mxu0 0
      %1085 = vmatprep.subr.bf16.mxu0 0
      %1086 = vmatpush1.bf16.msra.mxu0 0
      %1087 = vmatprep.subr.bf16.mxu0 0
      %1088 = vmatpush1.bf16.msra.mxu0 %v1071
      %1089 = vmatprep.subr.bf16.mxu0 0
      %1090 = vmatpush2.bf16.msra.mxu0 0
      %1091 = vmatprep.subr.bf16.mxu0 0
      %1092 = vmatpush2.bf16.msra.mxu0 0
      %1093 = vmatprep.subr.bf16.mxu0 0
      %1094 = vmatpush2.bf16.msra.mxu0 0
      %1095 = vmatprep.subr.bf16.mxu0 0
      %1096 = vmatpush2.bf16.msra.mxu0 0
      %1097 = vmatprep.subr.bf16.mxu0 0
      %1098 = vmatpush2.bf16.msra.mxu0 0
      %1099 = vmatprep.subr.bf16.mxu0 0
      %1100 = vmatpush2.bf16.msra.mxu0 0
      %1101 = vmatprep.subr.bf16.mxu0 0
      %1102 = vmatpush2.bf16.msra.mxu0 0
      %1103 = vmatprep.subr.bf16.mxu0 0
      %1104 = vmatpush2.bf16.msra.mxu0 0
      %1105 = vmatprep.mubr.bf16.mxu0 0
      %1106 = vmatmul.mubr.bf16.gmra.mxu0 %v1047
      %v1107 = vpop.f32.mrf.mxu0
      %v1108 = vadd.f32 0.0, %v1107
      %v1109 = vpop.f32.mrf.mxu0
      %v1110 = vpop.f32.mrf.mxu0
      %v1111 = vadd.f32 0.0, %v1110
      %v1112 = vpop.f32.mrf.mxu0
      %1113 = vmatprep.mubr.bf16.mxu0 0
      %1114 = vmatmul.mubr.bf16.gmra.mxu0 %v1050
      %v1115 = vpop.f32.mrf.mxu0
      %v1116 = vadd.f32 0.0, %v1115
      %v1117 = vpop.f32.mrf.mxu0
      %v1118 = vpop.f32.mrf.mxu0
      %v1119 = vadd.f32 0.0, %v1118
      %v1120 = vpop.f32.mrf.mxu0
      %1121 = vmatprep.mubr.bf16.mxu0 0
      %1122 = vmatmul.mubr.bf16.gmra.mxu0 %v1053
      %v1123 = vpop.f32.mrf.mxu0
      %v1124 = vadd.f32 0.0, %v1123
      %v1125 = vpop.f32.mrf.mxu0
      %v1126 = vpop.f32.mrf.mxu0
      %v1127 = vadd.f32 0.0, %v1126
      %v1128 = vpop.f32.mrf.mxu0
      %1129 = vmatprep.mubr.bf16.mxu0 0
      %1130 = vmatmul.mubr.bf16.gmra.mxu0 %v1056
      %v1131 = vpop.f32.mrf.mxu0
      %v1132 = vadd.f32 0.0, %v1131
      %v1133 = vpop.f32.mrf.mxu0
      %v1134 = vpop.f32.mrf.mxu0
      %v1135 = vadd.f32 0.0, %v1134
      %v1136 = vpop.f32.mrf.mxu0
      %1137 = vmatprep.mubr.bf16.mxu0 0
      %1138 = vmatmul.mubr.bf16.gmra.mxu0 %v1059
      %v1139 = vpop.f32.mrf.mxu0
      %v1140 = vadd.f32 0.0, %v1139
      %v1141 = vpop.f32.mrf.mxu0
      %v1142 = vpop.f32.mrf.mxu0
      %v1143 = vadd.f32 0.0, %v1142
      %v1144 = vpop.f32.mrf.mxu0
      %1145 = vmatprep.mubr.bf16.mxu0 0
      %1146 = vmatmul.mubr.bf16.gmra.mxu0 %v1062
      %v1147 = vpop.f32.mrf.mxu0
      %v1148 = vadd.f32 0.0, %v1147
      %v1149 = vpop.f32.mrf.mxu0
      %v1150 = vpop.f32.mrf.mxu0
      %v1151 = vadd.f32 0.0, %v1150
      %v1152 = vpop.f32.mrf.mxu0
      %1153 = vmatprep.mubr.bf16.mxu0 0
      %1154 = vmatmul.mubr.bf16.gmra.mxu0 %v1065
      %v1155 = vpop.f32.mrf.mxu0
      %v1156 = vadd.f32 0.0, %v1155
      %v1157 = vpop.f32.mrf.mxu0
      %v1158 = vpop.f32.mrf.mxu0
      %v1159 = vadd.f32 0.0, %v1158
      %v1160 = vpop.f32.mrf.mxu0
      %1161 = vmatprep.mubr.bf16.mxu0 0
      %1162 = vmatmul.mubr.bf16.gmra.mxu0 %v1068
      %v1163 = vpop.f32.mrf.mxu0
      %v1164 = vadd.f32 0.0, %v1163
      %v1165 = vpop.f32.mrf.mxu0
      %v1166 = vpop.f32.mrf.mxu0
      %v1167 = vadd.f32 0.0, %v1166
      %v1168 = vpop.f32.mrf.mxu0
      %1169 = vdwg.mxu0
      %v1170 = vadd.f32 %v883, %v1108
      %v1171 = vadd.f32 %v886, %v1111
      %v1172 = vadd.f32 %v891, %v1116
      %v1173 = vadd.f32 %v894, %v1119
      %v1174 = vadd.f32 %v899, %v1124
      %v1175 = vadd.f32 %v902, %v1127
      %v1176 = vadd.f32 %v907, %v1132
      %v1177 = vadd.f32 %v910, %v1135
      %v1178 = vadd.f32 %v915, %v1140
      %v1179 = vadd.f32 %v918, %v1143
      %v1180 = vadd.f32 %v923, %v1148
      %v1181 = vadd.f32 %v926, %v1151
      %v1182 = vadd.f32 %v931, %v1156
      %v1183 = vadd.f32 %v934, %v1159
      %v1184 = vadd.f32 %v939, %v1164
      %v1185 = vadd.f32 %v942, %v1167
      %vm1186 = vsmask.f32 2304
      %vm1187 = vsmask.f32 6416
      %vm1188 = vmor %vm1186, %vm1187
      %v1190 = vshrl.u32 %v226, 16
      %v1192 = vrot.slane %v1190, 5
      %v1193 = vshll.u32 %v226, 16
      %v1195 = vrot.slane %v1193, 6
      %v1196 = vor.u32 %v1192, %v1195
      %v1197 = vrot.slane %v1196, 4
      %v1198 = vrot.slane %v451, 5
      %v1199 = vrot.slane %v447, 6
      %v1200 = vor.u32 %v1198, %v1199
      %v1201 = vsel %vm1188, %v1197, %v1200
      %v1202 = vrot.slane %v1200, 4
      %v1204 = vshrl.u32 %v234, 16
      %v1206 = vrot.slane %v1204, 5
      %v1207 = vshll.u32 %v234, 16
      %v1209 = vrot.slane %v1207, 6
      %v1210 = vor.u32 %v1206, %v1209
      %v1211 = vsel %vm1188, %v1202, %v1210
      %v1213 = vshrl.u32 %v227, 16
      %v1215 = vrot.slane %v1213, 5
      %v1216 = vshll.u32 %v227, 16
      %v1218 = vrot.slane %v1216, 6
      %v1219 = vor.u32 %v1215, %v1218
      %v1220 = vrot.slane %v1219, 4
      %v1221 = vrot.slane %v475, 5
      %v1222 = vrot.slane %v471, 6
      %v1223 = vor.u32 %v1221, %v1222
      %v1224 = vsel %vm1188, %v1220, %v1223
      %v1225 = vrot.slane %v1223, 4
      %v1227 = vshrl.u32 %v235, 16
      %v1229 = vrot.slane %v1227, 5
      %v1230 = vshll.u32 %v235, 16
      %v1232 = vrot.slane %v1230, 6
      %v1233 = vor.u32 %v1229, %v1232
      %v1234 = vsel %vm1188, %v1225, %v1233
      %v1236 = vshrl.u32 %v228, 16
      %v1238 = vrot.slane %v1236, 5
      %v1239 = vshll.u32 %v228, 16
      %v1241 = vrot.slane %v1239, 6
      %v1242 = vor.u32 %v1238, %v1241
      %v1243 = vrot.slane %v1242, 4
      %v1244 = vrot.slane %v499, 5
      %v1245 = vrot.slane %v495, 6
      %v1246 = vor.u32 %v1244, %v1245
      %v1247 = vsel %vm1188, %v1243, %v1246
      %v1248 = vrot.slane %v1246, 4
      %v1250 = vshrl.u32 %v236, 16
      %v1252 = vrot.slane %v1250, 5
      %v1253 = vshll.u32 %v236, 16
      %v1255 = vrot.slane %v1253, 6
      %v1256 = vor.u32 %v1252, %v1255
      %v1257 = vsel %vm1188, %v1248, %v1256
      %v1259 = vshrl.u32 %v229, 16
      %v1261 = vrot.slane %v1259, 5
      %v1262 = vshll.u32 %v229, 16
      %v1264 = vrot.slane %v1262, 6
      %v1265 = vor.u32 %v1261, %v1264
      %v1266 = vrot.slane %v1265, 4
      %v1267 = vrot.slane %v523, 5
      %v1268 = vrot.slane %v519, 6
      %v1269 = vor.u32 %v1267, %v1268
      %v1270 = vsel %vm1188, %v1266, %v1269
      %v1271 = vrot.slane %v1269, 4
      %v1273 = vshrl.u32 %v237, 16
      %v1275 = vrot.slane %v1273, 5
      %v1276 = vshll.u32 %v237, 16
      %v1278 = vrot.slane %v1276, 6
      %v1279 = vor.u32 %v1275, %v1278
      %v1280 = vsel %vm1188, %v1271, %v1279
      %v1282 = vshrl.u32 %v230, 16
      %v1284 = vrot.slane %v1282, 5
      %v1285 = vshll.u32 %v230, 16
      %v1287 = vrot.slane %v1285, 6
      %v1288 = vor.u32 %v1284, %v1287
      %v1289 = vrot.slane %v1288, 4
      %v1290 = vrot.slane %v547, 5
      %v1291 = vrot.slane %v543, 6
      %v1292 = vor.u32 %v1290, %v1291
      %v1293 = vsel %vm1188, %v1289, %v1292
      %v1294 = vrot.slane %v1292, 4
      %v1296 = vshrl.u32 %v238, 16
      %v1298 = vrot.slane %v1296, 5
      %v1299 = vshll.u32 %v238, 16
      %v1301 = vrot.slane %v1299, 6
      %v1302 = vor.u32 %v1298, %v1301
      %v1303 = vsel %vm1188, %v1294, %v1302
      %v1305 = vshrl.u32 %v231, 16
      %v1307 = vrot.slane %v1305, 5
      %v1308 = vshll.u32 %v231, 16
      %v1310 = vrot.slane %v1308, 6
      %v1311 = vor.u32 %v1307, %v1310
      %v1312 = vrot.slane %v1311, 4
      %v1313 = vrot.slane %v571, 5
      %v1314 = vrot.slane %v567, 6
      %v1315 = vor.u32 %v1313, %v1314
      %v1316 = vsel %vm1188, %v1312, %v1315
      %v1317 = vrot.slane %v1315, 4
      %v1319 = vshrl.u32 %v239, 16
      %v1321 = vrot.slane %v1319, 5
      %v1322 = vshll.u32 %v239, 16
      %v1324 = vrot.slane %v1322, 6
      %v1325 = vor.u32 %v1321, %v1324
      %v1326 = vsel %vm1188, %v1317, %v1325
      %v1328 = vshrl.u32 %v232, 16
      %v1330 = vrot.slane %v1328, 5
      %v1331 = vshll.u32 %v232, 16
      %v1333 = vrot.slane %v1331, 6
      %v1334 = vor.u32 %v1330, %v1333
      %v1335 = vrot.slane %v1334, 4
      %v1336 = vrot.slane %v595, 5
      %v1337 = vrot.slane %v591, 6
      %v1338 = vor.u32 %v1336, %v1337
      %v1339 = vsel %vm1188, %v1335, %v1338
      %v1340 = vrot.slane %v1338, 4
      %v1342 = vshrl.u32 %v240, 16
      %v1344 = vrot.slane %v1342, 5
      %v1345 = vshll.u32 %v240, 16
      %v1347 = vrot.slane %v1345, 6
      %v1348 = vor.u32 %v1344, %v1347
      %v1349 = vsel %vm1188, %v1340, %v1348
      %v1351 = vshrl.u32 %v233, 16
      %v1353 = vrot.slane %v1351, 5
      %v1354 = vshll.u32 %v233, 16
      %v1356 = vrot.slane %v1354, 6
      %v1357 = vor.u32 %v1353, %v1356
      %v1358 = vrot.slane %v1357, 4
      %v1359 = vrot.slane %v619, 5
      %v1360 = vrot.slane %v615, 6
      %v1361 = vor.u32 %v1359, %v1360
      %v1362 = vsel %vm1188, %v1358, %v1361
      %v1363 = vrot.slane %v1361, 4
      %v1365 = vshrl.u32 %v241, 16
      %v1367 = vrot.slane %v1365, 5
      %v1368 = vshll.u32 %v241, 16
      %v1370 = vrot.slane %v1368, 6
      %v1371 = vor.u32 %v1367, %v1370
      %v1372 = vsel %vm1188, %v1363, %v1371
      %s1373 = scalar_lea.vmem %s1, 6
      %v1374 = vld [vmem:[%s1373] sm:$0x3]
      %v1375 = vunpack.c.l.b16 %v1201
      %v1376 = vunpack.c.l.b16 %v1211
      %v1377 = vunpack.c.l.b16 %v1224
      %v1378 = vunpack.c.l.b16 %v1234
      %v1379 = vunpack.c.l.b16 %v1247
      %v1380 = vunpack.c.l.b16 %v1257
      %v1381 = vunpack.c.l.b16 %v1270
      %v1382 = vunpack.c.l.b16 %v1280
      %v1383 = vunpack.c.l.b16 %v1293
      %v1384 = vunpack.c.l.b16 %v1303
      %v1385 = vunpack.c.l.b16 %v1316
      %v1386 = vunpack.c.l.b16 %v1326
      %v1387 = vunpack.c.l.b16 %v1339
      %v1388 = vunpack.c.l.b16 %v1349
      %v1389 = vunpack.c.l.b16 %v1362
      %v1390 = vunpack.c.l.b16 %v1372
      %v1391 = vpack.c.b16 %v1376, %v1375
      %v1392 = vpack.c.b16 %v1378, %v1377
      %v1393 = vpack.c.b16 %v1380, %v1379
      %v1394 = vpack.c.b16 %v1382, %v1381
      %v1395 = vpack.c.b16 %v1384, %v1383
      %v1396 = vpack.c.b16 %v1386, %v1385
      %v1397 = vpack.c.b16 %v1388, %v1387
      %v1398 = vpack.c.b16 %v1390, %v1389
      %v1400 = vsel %vm655, %v1391, 0
      %v1403 = vsel %vm655, %v1392, 0
      %v1406 = vsel %vm655, %v1393, 0
      %v1409 = vsel %vm655, %v1394, 0
      %v1412 = vsel %vm655, %v1395, 0
      %v1415 = vsel %vm655, %v1396, 0
      %v1418 = vsel %vm655, %v1397, 0
      %v1421 = vsel %vm655, %v1398, 0
      %v1424 = vsel %vm680, %v1374, 0
      %1426 = vmatprep.subr.bf16.mxu0 0
      %1427 = vmatpush1.bf16.msra.mxu0 0
      %1428 = vmatprep.subr.bf16.mxu0 0
      %1429 = vmatpush1.bf16.msra.mxu0 0
      %1430 = vmatprep.subr.bf16.mxu0 0
      %1431 = vmatpush1.bf16.msra.mxu0 0
      %1432 = vmatprep.subr.bf16.mxu0 0
      %1433 = vmatpush1.bf16.msra.mxu0 0
      %1434 = vmatprep.subr.bf16.mxu0 0
      %1435 = vmatpush1.bf16.msra.mxu0 0
      %1436 = vmatprep.subr.bf16.mxu0 0
      %1437 = vmatpush1.bf16.msra.mxu0 0
      %1438 = vmatprep.subr.bf16.mxu0 0
      %1439 = vmatpush1.bf16.msra.mxu0 0
      %1440 = vmatprep.subr.bf16.mxu0 0
      %1441 = vmatpush1.bf16.msra.mxu0 %v1424
      %1442 = vmatprep.subr.bf16.mxu0 0
      %1443 = vmatpush2.bf16.msra.mxu0 0
      %1444 = vmatprep.subr.bf16.mxu0 0
      %1445 = vmatpush2.bf16.msra.mxu0 0
      %1446 = vmatprep.subr.bf16.mxu0 0
      %1447 = vmatpush2.bf16.msra.mxu0 0
      %1448 = vmatprep.subr.bf16.mxu0 0
      %1449 = vmatpush2.bf16.msra.mxu0 0
      %1450 = vmatprep.subr.bf16.mxu0 0
      %1451 = vmatpush2.bf16.msra.mxu0 0
      %1452 = vmatprep.subr.bf16.mxu0 0
      %1453 = vmatpush2.bf16.msra.mxu0 0
      %1454 = vmatprep.subr.bf16.mxu0 0
      %1455 = vmatpush2.bf16.msra.mxu0 0
      %1456 = vmatprep.subr.bf16.mxu0 0
      %1457 = vmatpush2.bf16.msra.mxu0 0
      %1458 = vmatprep.mubr.bf16.mxu0 0
      %1459 = vmatmul.mubr.bf16.gmra.mxu0 %v1400
      %v1460 = vpop.f32.mrf.mxu0
      %v1461 = vadd.f32 0.0, %v1460
      %v1462 = vpop.f32.mrf.mxu0
      %v1463 = vpop.f32.mrf.mxu0
      %v1464 = vadd.f32 0.0, %v1463
      %v1465 = vpop.f32.mrf.mxu0
      %1466 = vmatprep.mubr.bf16.mxu0 0
      %1467 = vmatmul.mubr.bf16.gmra.mxu0 %v1403
      %v1468 = vpop.f32.mrf.mxu0
      %v1469 = vadd.f32 0.0, %v1468
      %v1470 = vpop.f32.mrf.mxu0
      %v1471 = vpop.f32.mrf.mxu0
      %v1472 = vadd.f32 0.0, %v1471
      %v1473 = vpop.f32.mrf.mxu0
      %1474 = vmatprep.mubr.bf16.mxu0 0
      %1475 = vmatmul.mubr.bf16.gmra.mxu0 %v1406
      %v1476 = vpop.f32.mrf.mxu0
      %v1477 = vadd.f32 0.0, %v1476
      %v1478 = vpop.f32.mrf.mxu0
      %v1479 = vpop.f32.mrf.mxu0
      %v1480 = vadd.f32 0.0, %v1479
      %v1481 = vpop.f32.mrf.mxu0
      %1482 = vmatprep.mubr.bf16.mxu0 0
      %1483 = vmatmul.mubr.bf16.gmra.mxu0 %v1409
      %v1484 = vpop.f32.mrf.mxu0
      %v1485 = vadd.f32 0.0, %v1484
      %v1486 = vpop.f32.mrf.mxu0
      %v1487 = vpop.f32.mrf.mxu0
      %v1488 = vadd.f32 0.0, %v1487
      %v1489 = vpop.f32.mrf.mxu0
      %1490 = vmatprep.mubr.bf16.mxu0 0
      %1491 = vmatmul.mubr.bf16.gmra.mxu0 %v1412
      %v1492 = vpop.f32.mrf.mxu0
      %v1493 = vadd.f32 0.0, %v1492
      %v1494 = vpop.f32.mrf.mxu0
      %v1495 = vpop.f32.mrf.mxu0
      %v1496 = vadd.f32 0.0, %v1495
      %v1497 = vpop.f32.mrf.mxu0
      %1498 = vmatprep.mubr.bf16.mxu0 0
      %1499 = vmatmul.mubr.bf16.gmra.mxu0 %v1415
      %v1500 = vpop.f32.mrf.mxu0
      %v1501 = vadd.f32 0.0, %v1500
      %v1502 = vpop.f32.mrf.mxu0
      %v1503 = vpop.f32.mrf.mxu0
      %v1504 = vadd.f32 0.0, %v1503
      %v1505 = vpop.f32.mrf.mxu0
      %1506 = vmatprep.mubr.bf16.mxu0 0
      %1507 = vmatmul.mubr.bf16.gmra.mxu0 %v1418
      %v1508 = vpop.f32.mrf.mxu0
      %v1509 = vadd.f32 0.0, %v1508
      %v1510 = vpop.f32.mrf.mxu0
      %v1511 = vpop.f32.mrf.mxu0
      %v1512 = vadd.f32 0.0, %v1511
      %v1513 = vpop.f32.mrf.mxu0
      %1514 = vmatprep.mubr.bf16.mxu0 0
      %1515 = vmatmul.mubr.bf16.gmra.mxu0 %v1421
      %v1516 = vpop.f32.mrf.mxu0
      %v1517 = vadd.f32 0.0, %v1516
      %v1518 = vpop.f32.mrf.mxu0
      %v1519 = vpop.f32.mrf.mxu0
      %v1520 = vadd.f32 0.0, %v1519
      %v1521 = vpop.f32.mrf.mxu0
      %1522 = vdwg.mxu0
      %v1523 = vadd.f32 %v1170, %v1461
      %v1524 = vadd.f32 %v1171, %v1464
      %v1525 = vadd.f32 %v1172, %v1469
      %v1526 = vadd.f32 %v1173, %v1472
      %v1527 = vadd.f32 %v1174, %v1477
      %v1528 = vadd.f32 %v1175, %v1480
      %v1529 = vadd.f32 %v1176, %v1485
      %v1530 = vadd.f32 %v1177, %v1488
      %v1531 = vadd.f32 %v1178, %v1493
      %v1532 = vadd.f32 %v1179, %v1496
      %v1533 = vadd.f32 %v1180, %v1501
      %v1534 = vadd.f32 %v1181, %v1504
      %v1535 = vadd.f32 %v1182, %v1509
      %v1536 = vadd.f32 %v1183, %v1512
      %v1537 = vadd.f32 %v1184, %v1517
      %v1538 = vadd.f32 %v1185, %v1520
      %vm1555 = vcmask 1041408
      %vm1556 = vcmask 1045508
      %vm1557 = vmor %vm1555, %vm1556
      %v1558 = vrot.slane %v242, 6
      %v1559 = vrot.slane %v1558, 4
      %v1560 = vrot.slane %v203, 6
      %v1561 = vsel %vm1557, %v1559, %v1560
      %v1562 = vrot.slane %v1560, 4
      %v1563 = vrot.slane %v234, 6
      %v1564 = vsel %vm1557, %v1562, %v1563
      %v1565 = vrot.slane %v243, 6
      %v1566 = vrot.slane %v1565, 4
      %v1567 = vrot.slane %v205, 6
      %v1568 = vsel %vm1557, %v1566, %v1567
      %v1569 = vrot.slane %v1567, 4
      %v1570 = vrot.slane %v235, 6
      %v1571 = vsel %vm1557, %v1569, %v1570
      %v1572 = vrot.slane %v244, 6
      %v1573 = vrot.slane %v1572, 4
      %v1574 = vrot.slane %v207, 6
      %v1575 = vsel %vm1557, %v1573, %v1574
      %v1576 = vrot.slane %v1574, 4
      %v1577 = vrot.slane %v236, 6
      %v1578 = vsel %vm1557, %v1576, %v1577
      %v1579 = vrot.slane %v245, 6
      %v1580 = vrot.slane %v1579, 4
      %v1581 = vrot.slane %v209, 6
      %v1582 = vsel %vm1557, %v1580, %v1581
      %v1583 = vrot.slane %v1581, 4
      %v1584 = vrot.slane %v237, 6
      %v1585 = vsel %vm1557, %v1583, %v1584
      %v1586 = vrot.slane %v246, 6
      %v1587 = vrot.slane %v1586, 4
      %v1588 = vrot.slane %v211, 6
      %v1589 = vsel %vm1557, %v1587, %v1588
      %v1590 = vrot.slane %v1588, 4
      %v1591 = vrot.slane %v238, 6
      %v1592 = vsel %vm1557, %v1590, %v1591
      %v1593 = vrot.slane %v247, 6
      %v1594 = vrot.slane %v1593, 4
      %v1595 = vrot.slane %v213, 6
      %v1596 = vsel %vm1557, %v1594, %v1595
      %v1597 = vrot.slane %v1595, 4
      %v1598 = vrot.slane %v239, 6
      %v1599 = vsel %vm1557, %v1597, %v1598
      %v1600 = vrot.slane %v248, 6
      %v1601 = vrot.slane %v1600, 4
      %v1602 = vrot.slane %v215, 6
      %v1603 = vsel %vm1557, %v1601, %v1602
      %v1604 = vrot.slane %v1602, 4
      %v1605 = vrot.slane %v240, 6
      %v1606 = vsel %vm1557, %v1604, %v1605
      %v1607 = vrot.slane %v249, 6
      %v1608 = vrot.slane %v1607, 4
      %v1609 = vrot.slane %v217, 6
      %v1610 = vsel %vm1557, %v1608, %v1609
      %v1611 = vrot.slane %v1609, 4
      %v1612 = vrot.slane %v241, 6
      %v1613 = vsel %vm1557, %v1611, %v1612
      %s1614 = scalar_lea.vmem %s1, 8
      %v1615 = vld [vmem:[%s1614] sm:$0x3]
      %v1616 = vunpack.c.l.b16 %v1561
      %v1617 = vunpack.c.l.b16 %v1564
      %v1618 = vunpack.c.l.b16 %v1568
      %v1619 = vunpack.c.l.b16 %v1571
      %v1620 = vunpack.c.l.b16 %v1575
      %v1621 = vunpack.c.l.b16 %v1578
      %v1622 = vunpack.c.l.b16 %v1582
      %v1623 = vunpack.c.l.b16 %v1585
      %v1624 = vunpack.c.l.b16 %v1589
      %v1625 = vunpack.c.l.b16 %v1592
      %v1626 = vunpack.c.l.b16 %v1596
      %v1627 = vunpack.c.l.b16 %v1599
      %v1628 = vunpack.c.l.b16 %v1603
      %v1629 = vunpack.c.l.b16 %v1606
      %v1630 = vunpack.c.l.b16 %v1610
      %v1631 = vunpack.c.l.b16 %v1613
      %v1632 = vpack.c.b16 %v1617, %v1616
      %v1633 = vpack.c.b16 %v1619, %v1618
      %v1634 = vpack.c.b16 %v1621, %v1620
      %v1635 = vpack.c.b16 %v1623, %v1622
      %v1636 = vpack.c.b16 %v1625, %v1624
      %v1637 = vpack.c.b16 %v1627, %v1626
      %v1638 = vpack.c.b16 %v1629, %v1628
      %v1639 = vpack.c.b16 %v1631, %v1630
      %v1641 = vsel %vm655, %v1632, 0
      %v1644 = vsel %vm655, %v1633, 0
      %v1647 = vsel %vm655, %v1634, 0
      %v1650 = vsel %vm655, %v1635, 0
      %v1653 = vsel %vm655, %v1636, 0
      %v1656 = vsel %vm655, %v1637, 0
      %v1659 = vsel %vm655, %v1638, 0
      %v1662 = vsel %vm655, %v1639, 0
      %v1665 = vsel %vm680, %v1615, 0
      %1667 = vmatprep.subr.bf16.mxu0 0
      %1668 = vmatpush1.bf16.msra.mxu0 0
      %1669 = vmatprep.subr.bf16.mxu0 0
      %1670 = vmatpush1.bf16.msra.mxu0 0
      %1671 = vmatprep.subr.bf16.mxu0 0
      %1672 = vmatpush1.bf16.msra.mxu0 0
      %1673 = vmatprep.subr.bf16.mxu0 0
      %1674 = vmatpush1.bf16.msra.mxu0 0
      %1675 = vmatprep.subr.bf16.mxu0 0
      %1676 = vmatpush1.bf16.msra.mxu0 0
      %1677 = vmatprep.subr.bf16.mxu0 0
      %1678 = vmatpush1.bf16.msra.mxu0 0
      %1679 = vmatprep.subr.bf16.mxu0 0
      %1680 = vmatpush1.bf16.msra.mxu0 0
      %1681 = vmatprep.subr.bf16.mxu0 0
      %1682 = vmatpush1.bf16.msra.mxu0 %v1665
      %1683 = vmatprep.subr.bf16.mxu0 0
      %1684 = vmatpush2.bf16.msra.mxu0 0
      %1685 = vmatprep.subr.bf16.mxu0 0
      %1686 = vmatpush2.bf16.msra.mxu0 0
      %1687 = vmatprep.subr.bf16.mxu0 0
      %1688 = vmatpush2.bf16.msra.mxu0 0
      %1689 = vmatprep.subr.bf16.mxu0 0
      %1690 = vmatpush2.bf16.msra.mxu0 0
      %1691 = vmatprep.subr.bf16.mxu0 0
      %1692 = vmatpush2.bf16.msra.mxu0 0
      %1693 = vmatprep.subr.bf16.mxu0 0
      %1694 = vmatpush2.bf16.msra.mxu0 0
      %1695 = vmatprep.subr.bf16.mxu0 0
      %1696 = vmatpush2.bf16.msra.mxu0 0
      %1697 = vmatprep.subr.bf16.mxu0 0
      %1698 = vmatpush2.bf16.msra.mxu0 0
      %1699 = vmatprep.mubr.bf16.mxu0 0
      %1700 = vmatmul.mubr.bf16.gmra.mxu0 %v1641
      %v1701 = vpop.f32.mrf.mxu0
      %v1702 = vadd.f32 0.0, %v1701
      %v1703 = vpop.f32.mrf.mxu0
      %v1704 = vpop.f32.mrf.mxu0
      %v1705 = vadd.f32 0.0, %v1704
      %v1706 = vpop.f32.mrf.mxu0
      %1707 = vmatprep.mubr.bf16.mxu0 0
      %1708 = vmatmul.mubr.bf16.gmra.mxu0 %v1644
      %v1709 = vpop.f32.mrf.mxu0
      %v1710 = vadd.f32 0.0, %v1709
      %v1711 = vpop.f32.mrf.mxu0
      %v1712 = vpop.f32.mrf.mxu0
      %v1713 = vadd.f32 0.0, %v1712
      %v1714 = vpop.f32.mrf.mxu0
      %1715 = vmatprep.mubr.bf16.mxu0 0
      %1716 = vmatmul.mubr.bf16.gmra.mxu0 %v1647
      %v1717 = vpop.f32.mrf.mxu0
      %v1718 = vadd.f32 0.0, %v1717
      %v1719 = vpop.f32.mrf.mxu0
      %v1720 = vpop.f32.mrf.mxu0
      %v1721 = vadd.f32 0.0, %v1720
      %v1722 = vpop.f32.mrf.mxu0
      %1723 = vmatprep.mubr.bf16.mxu0 0
      %1724 = vmatmul.mubr.bf16.gmra.mxu0 %v1650
      %v1725 = vpop.f32.mrf.mxu0
      %v1726 = vadd.f32 0.0, %v1725
      %v1727 = vpop.f32.mrf.mxu0
      %v1728 = vpop.f32.mrf.mxu0
      %v1729 = vadd.f32 0.0, %v1728
      %v1730 = vpop.f32.mrf.mxu0
      %1731 = vmatprep.mubr.bf16.mxu0 0
      %1732 = vmatmul.mubr.bf16.gmra.mxu0 %v1653
      %v1733 = vpop.f32.mrf.mxu0
      %v1734 = vadd.f32 0.0, %v1733
      %v1735 = vpop.f32.mrf.mxu0
      %v1736 = vpop.f32.mrf.mxu0
      %v1737 = vadd.f32 0.0, %v1736
      %v1738 = vpop.f32.mrf.mxu0
      %1739 = vmatprep.mubr.bf16.mxu0 0
      %1740 = vmatmul.mubr.bf16.gmra.mxu0 %v1656
      %v1741 = vpop.f32.mrf.mxu0
      %v1742 = vadd.f32 0.0, %v1741
      %v1743 = vpop.f32.mrf.mxu0
      %v1744 = vpop.f32.mrf.mxu0
      %v1745 = vadd.f32 0.0, %v1744
      %v1746 = vpop.f32.mrf.mxu0
      %1747 = vmatprep.mubr.bf16.mxu0 0
      %1748 = vmatmul.mubr.bf16.gmra.mxu0 %v1659
      %v1749 = vpop.f32.mrf.mxu0
      %v1750 = vadd.f32 0.0, %v1749
      %v1751 = vpop.f32.mrf.mxu0
      %v1752 = vpop.f32.mrf.mxu0
      %v1753 = vadd.f32 0.0, %v1752
      %v1754 = vpop.f32.mrf.mxu0
      %1755 = vmatprep.mubr.bf16.mxu0 0
      %1756 = vmatmul.mubr.bf16.gmra.mxu0 %v1662
      %v1757 = vpop.f32.mrf.mxu0
      %v1758 = vadd.f32 0.0, %v1757
      %v1759 = vpop.f32.mrf.mxu0
      %v1760 = vpop.f32.mrf.mxu0
      %v1761 = vadd.f32 0.0, %v1760
      %v1762 = vpop.f32.mrf.mxu0
      %1763 = vdwg.mxu0
      %v1764 = vadd.f32 %v1523, %v1702
      %v1765 = vadd.f32 %v1524, %v1705
      %v1766 = vadd.f32 %v1525, %v1710
      %v1767 = vadd.f32 %v1526, %v1713
      %v1768 = vadd.f32 %v1527, %v1718
      %v1769 = vadd.f32 %v1528, %v1721
      %v1770 = vadd.f32 %v1529, %v1726
      %v1771 = vadd.f32 %v1530, %v1729
      %v1772 = vadd.f32 %v1531, %v1734
      %v1773 = vadd.f32 %v1532, %v1737
      %v1774 = vadd.f32 %v1533, %v1742
      %v1775 = vadd.f32 %v1534, %v1745
      %v1776 = vadd.f32 %v1535, %v1750
      %v1777 = vadd.f32 %v1536, %v1753
      %v1778 = vadd.f32 %v1537, %v1758
      %v1779 = vadd.f32 %v1538, %v1761
      %vm1780 = vsmask.f32 1280
      %vm1781 = vsmask.f32 5392
      %vm1782 = vmor %vm1780, %vm1781
      %v1784 = vshrl.u32 %v242, 16
      %v1786 = vrot.slane %v1784, 6
      %v1787 = vshll.u32 %v242, 16
      %v1789 = vrot.slane %v1787, 7
      %v1790 = vor.u32 %v1786, %v1789
      %v1791 = vrot.slane %v1790, 4
      %v1792 = vrot.slane %v451, 6
      %v1793 = vrot.slane %v447, 7
      %v1794 = vor.u32 %v1792, %v1793
      %v1795 = vsel %vm1782, %v1791, %v1794
      %v1796 = vrot.slane %v1794, 4
      %v1798 = vshrl.u32 %v250, 16
      %v1800 = vrot.slane %v1798, 6
      %v1801 = vshll.u32 %v250, 16
      %v1803 = vrot.slane %v1801, 7
      %v1804 = vor.u32 %v1800, %v1803
      %v1805 = vsel %vm1782, %v1796, %v1804
      %v1807 = vshrl.u32 %v243, 16
      %v1809 = vrot.slane %v1807, 6
      %v1810 = vshll.u32 %v243, 16
      %v1812 = vrot.slane %v1810, 7
      %v1813 = vor.u32 %v1809, %v1812
      %v1814 = vrot.slane %v1813, 4
      %v1815 = vrot.slane %v475, 6
      %v1816 = vrot.slane %v471, 7
      %v1817 = vor.u32 %v1815, %v1816
      %v1818 = vsel %vm1782, %v1814, %v1817
      %v1819 = vrot.slane %v1817, 4
      %v1821 = vshrl.u32 %v251, 16
      %v1823 = vrot.slane %v1821, 6
      %v1824 = vshll.u32 %v251, 16
      %v1826 = vrot.slane %v1824, 7
      %v1827 = vor.u32 %v1823, %v1826
      %v1828 = vsel %vm1782, %v1819, %v1827
      %v1830 = vshrl.u32 %v244, 16
      %v1832 = vrot.slane %v1830, 6
      %v1833 = vshll.u32 %v244, 16
      %v1835 = vrot.slane %v1833, 7
      %v1836 = vor.u32 %v1832, %v1835
      %v1837 = vrot.slane %v1836, 4
      %v1838 = vrot.slane %v499, 6
      %v1839 = vrot.slane %v495, 7
      %v1840 = vor.u32 %v1838, %v1839
      %v1841 = vsel %vm1782, %v1837, %v1840
      %v1842 = vrot.slane %v1840, 4
      %v1844 = vshrl.u32 %v252, 16
      %v1846 = vrot.slane %v1844, 6
      %v1847 = vshll.u32 %v252, 16
      %v1849 = vrot.slane %v1847, 7
      %v1850 = vor.u32 %v1846, %v1849
      %v1851 = vsel %vm1782, %v1842, %v1850
      %v1853 = vshrl.u32 %v245, 16
      %v1855 = vrot.slane %v1853, 6
      %v1856 = vshll.u32 %v245, 16
      %v1858 = vrot.slane %v1856, 7
      %v1859 = vor.u32 %v1855, %v1858
      %v1860 = vrot.slane %v1859, 4
      %v1861 = vrot.slane %v523, 6
      %v1862 = vrot.slane %v519, 7
      %v1863 = vor.u32 %v1861, %v1862
      %v1864 = vsel %vm1782, %v1860, %v1863
      %v1865 = vrot.slane %v1863, 4
      %v1867 = vshrl.u32 %v253, 16
      %v1869 = vrot.slane %v1867, 6
      %v1870 = vshll.u32 %v253, 16
      %v1872 = vrot.slane %v1870, 7
      %v1873 = vor.u32 %v1869, %v1872
      %v1874 = vsel %vm1782, %v1865, %v1873
      %v1876 = vshrl.u32 %v246, 16
      %v1878 = vrot.slane %v1876, 6
      %v1879 = vshll.u32 %v246, 16
      %v1881 = vrot.slane %v1879, 7
      %v1882 = vor.u32 %v1878, %v1881
      %v1883 = vrot.slane %v1882, 4
      %v1884 = vrot.slane %v547, 6
      %v1885 = vrot.slane %v543, 7
      %v1886 = vor.u32 %v1884, %v1885
      %v1887 = vsel %vm1782, %v1883, %v1886
      %v1888 = vrot.slane %v1886, 4
      %v1890 = vshrl.u32 %v254, 16
      %v1892 = vrot.slane %v1890, 6
      %v1893 = vshll.u32 %v254, 16
      %v1895 = vrot.slane %v1893, 7
      %v1896 = vor.u32 %v1892, %v1895
      %v1897 = vsel %vm1782, %v1888, %v1896
      %v1899 = vshrl.u32 %v247, 16
      %v1901 = vrot.slane %v1899, 6
      %v1902 = vshll.u32 %v247, 16
      %v1904 = vrot.slane %v1902, 7
      %v1905 = vor.u32 %v1901, %v1904
      %v1906 = vrot.slane %v1905, 4
      %v1907 = vrot.slane %v571, 6
      %v1908 = vrot.slane %v567, 7
      %v1909 = vor.u32 %v1907, %v1908
      %v1910 = vsel %vm1782, %v1906, %v1909
      %v1911 = vrot.slane %v1909, 4
      %v1913 = vshrl.u32 %v255, 16
      %v1915 = vrot.slane %v1913, 6
      %v1916 = vshll.u32 %v255, 16
      %v1918 = vrot.slane %v1916, 7
      %v1919 = vor.u32 %v1915, %v1918
      %v1920 = vsel %vm1782, %v1911, %v1919
      %v1922 = vshrl.u32 %v248, 16
      %v1924 = vrot.slane %v1922, 6
      %v1925 = vshll.u32 %v248, 16
      %v1927 = vrot.slane %v1925, 7
      %v1928 = vor.u32 %v1924, %v1927
      %v1929 = vrot.slane %v1928, 4
      %v1930 = vrot.slane %v595, 6
      %v1931 = vrot.slane %v591, 7
      %v1932 = vor.u32 %v1930, %v1931
      %v1933 = vsel %vm1782, %v1929, %v1932
      %v1934 = vrot.slane %v1932, 4
      %v1936 = vshrl.u32 %v256, 16
      %v1938 = vrot.slane %v1936, 6
      %v1939 = vshll.u32 %v256, 16
      %v1941 = vrot.slane %v1939, 7
      %v1942 = vor.u32 %v1938, %v1941
      %v1943 = vsel %vm1782, %v1934, %v1942
      %v1945 = vshrl.u32 %v249, 16
      %v1947 = vrot.slane %v1945, 6
      %v1948 = vshll.u32 %v249, 16
      %v1950 = vrot.slane %v1948, 7
      %v1951 = vor.u32 %v1947, %v1950
      %v1952 = vrot.slane %v1951, 4
      %v1953 = vrot.slane %v619, 6
      %v1954 = vrot.slane %v615, 7
      %v1955 = vor.u32 %v1953, %v1954
      %v1956 = vsel %vm1782, %v1952, %v1955
      %v1957 = vrot.slane %v1955, 4
      %v1959 = vshrl.u32 %v257, 16
      %v1961 = vrot.slane %v1959, 6
      %v1962 = vshll.u32 %v257, 16
      %v1964 = vrot.slane %v1962, 7
      %v1965 = vor.u32 %v1961, %v1964
      %v1966 = vsel %vm1782, %v1957, %v1965
      %s1967 = scalar_lea.vmem %s1, 10
      %v1968 = vld [vmem:[%s1967] sm:$0x3]
      %v1969 = vunpack.c.l.b16 %v1795
      %v1970 = vunpack.c.l.b16 %v1805
      %v1971 = vunpack.c.l.b16 %v1818
      %v1972 = vunpack.c.l.b16 %v1828
      %v1973 = vunpack.c.l.b16 %v1841
      %v1974 = vunpack.c.l.b16 %v1851
      %v1975 = vunpack.c.l.b16 %v1864
      %v1976 = vunpack.c.l.b16 %v1874
      %v1977 = vunpack.c.l.b16 %v1887
      %v1978 = vunpack.c.l.b16 %v1897
      %v1979 = vunpack.c.l.b16 %v1910
      %v1980 = vunpack.c.l.b16 %v1920
      %v1981 = vunpack.c.l.b16 %v1933
      %v1982 = vunpack.c.l.b16 %v1943
      %v1983 = vunpack.c.l.b16 %v1956
      %v1984 = vunpack.c.l.b16 %v1966
      %v1985 = vpack.c.b16 %v1970, %v1969
      %v1986 = vpack.c.b16 %v1972, %v1971
      %v1987 = vpack.c.b16 %v1974, %v1973
      %v1988 = vpack.c.b16 %v1976, %v1975
      %v1989 = vpack.c.b16 %v1978, %v1977
      %v1990 = vpack.c.b16 %v1980, %v1979
      %v1991 = vpack.c.b16 %v1982, %v1981
      %v1992 = vpack.c.b16 %v1984, %v1983
      %v1994 = vsel %vm655, %v1985, 0
      %v1997 = vsel %vm655, %v1986, 0
      %v2000 = vsel %vm655, %v1987, 0
      %v2003 = vsel %vm655, %v1988, 0
      %v2006 = vsel %vm655, %v1989, 0
      %v2009 = vsel %vm655, %v1990, 0
      %v2012 = vsel %vm655, %v1991, 0
      %v2015 = vsel %vm655, %v1992, 0
      %v2018 = vsel %vm680, %v1968, 0
      %2020 = vmatprep.subr.bf16.mxu0 0
      %2021 = vmatpush1.bf16.msra.mxu0 0
      %2022 = vmatprep.subr.bf16.mxu0 0
      %2023 = vmatpush1.bf16.msra.mxu0 0
      %2024 = vmatprep.subr.bf16.mxu0 0
      %2025 = vmatpush1.bf16.msra.mxu0 0
      %2026 = vmatprep.subr.bf16.mxu0 0
      %2027 = vmatpush1.bf16.msra.mxu0 0
      %2028 = vmatprep.subr.bf16.mxu0 0
      %2029 = vmatpush1.bf16.msra.mxu0 0
      %2030 = vmatprep.subr.bf16.mxu0 0
      %2031 = vmatpush1.bf16.msra.mxu0 0
      %2032 = vmatprep.subr.bf16.mxu0 0
      %2033 = vmatpush1.bf16.msra.mxu0 0
      %2034 = vmatprep.subr.bf16.mxu0 0
      %2035 = vmatpush1.bf16.msra.mxu0 %v2018
      %2036 = vmatprep.subr.bf16.mxu0 0
      %2037 = vmatpush2.bf16.msra.mxu0 0
      %2038 = vmatprep.subr.bf16.mxu0 0
      %2039 = vmatpush2.bf16.msra.mxu0 0
      %2040 = vmatprep.subr.bf16.mxu0 0
      %2041 = vmatpush2.bf16.msra.mxu0 0
      %2042 = vmatprep.subr.bf16.mxu0 0
      %2043 = vmatpush2.bf16.msra.mxu0 0
      %2044 = vmatprep.subr.bf16.mxu0 0
      %2045 = vmatpush2.bf16.msra.mxu0 0
      %2046 = vmatprep.subr.bf16.mxu0 0
      %2047 = vmatpush2.bf16.msra.mxu0 0
      %2048 = vmatprep.subr.bf16.mxu0 0
      %2049 = vmatpush2.bf16.msra.mxu0 0
      %2050 = vmatprep.subr.bf16.mxu0 0
      %2051 = vmatpush2.bf16.msra.mxu0 0
      %2052 = vmatprep.mubr.bf16.mxu0 0
      %2053 = vmatmul.mubr.bf16.gmra.mxu0 %v1994
      %v2054 = vpop.f32.mrf.mxu0
      %v2055 = vadd.f32 0.0, %v2054
      %v2056 = vpop.f32.mrf.mxu0
      %v2057 = vpop.f32.mrf.mxu0
      %v2058 = vadd.f32 0.0, %v2057
      %v2059 = vpop.f32.mrf.mxu0
      %2060 = vmatprep.mubr.bf16.mxu0 0
      %2061 = vmatmul.mubr.bf16.gmra.mxu0 %v1997
      %v2062 = vpop.f32.mrf.mxu0
      %v2063 = vadd.f32 0.0, %v2062
      %v2064 = vpop.f32.mrf.mxu0
      %v2065 = vpop.f32.mrf.mxu0
      %v2066 = vadd.f32 0.0, %v2065
      %v2067 = vpop.f32.mrf.mxu0
      %2068 = vmatprep.mubr.bf16.mxu0 0
      %2069 = vmatmul.mubr.bf16.gmra.mxu0 %v2000
      %v2070 = vpop.f32.mrf.mxu0
      %v2071 = vadd.f32 0.0, %v2070
      %v2072 = vpop.f32.mrf.mxu0
      %v2073 = vpop.f32.mrf.mxu0
      %v2074 = vadd.f32 0.0, %v2073
      %v2075 = vpop.f32.mrf.mxu0
      %2076 = vmatprep.mubr.bf16.mxu0 0
      %2077 = vmatmul.mubr.bf16.gmra.mxu0 %v2003
      %v2078 = vpop.f32.mrf.mxu0
      %v2079 = vadd.f32 0.0, %v2078
      %v2080 = vpop.f32.mrf.mxu0
      %v2081 = vpop.f32.mrf.mxu0
      %v2082 = vadd.f32 0.0, %v2081
      %v2083 = vpop.f32.mrf.mxu0
      %2084 = vmatprep.mubr.bf16.mxu0 0
      %2085 = vmatmul.mubr.bf16.gmra.mxu0 %v2006
      %v2086 = vpop.f32.mrf.mxu0
      %v2087 = vadd.f32 0.0, %v2086
      %v2088 = vpop.f32.mrf.mxu0
      %v2089 = vpop.f32.mrf.mxu0
      %v2090 = vadd.f32 0.0, %v2089
      %v2091 = vpop.f32.mrf.mxu0
      %2092 = vmatprep.mubr.bf16.mxu0 0
      %2093 = vmatmul.mubr.bf16.gmra.mxu0 %v2009
      %v2094 = vpop.f32.mrf.mxu0
      %v2095 = vadd.f32 0.0, %v2094
      %v2096 = vpop.f32.mrf.mxu0
      %v2097 = vpop.f32.mrf.mxu0
      %v2098 = vadd.f32 0.0, %v2097
      %v2099 = vpop.f32.mrf.mxu0
      %2100 = vmatprep.mubr.bf16.mxu0 0
      %2101 = vmatmul.mubr.bf16.gmra.mxu0 %v2012
      %v2102 = vpop.f32.mrf.mxu0
      %v2103 = vadd.f32 0.0, %v2102
      %v2104 = vpop.f32.mrf.mxu0
      %v2105 = vpop.f32.mrf.mxu0
      %v2106 = vadd.f32 0.0, %v2105
      %v2107 = vpop.f32.mrf.mxu0
      %2108 = vmatprep.mubr.bf16.mxu0 0
      %2109 = vmatmul.mubr.bf16.gmra.mxu0 %v2015
      %v2110 = vpop.f32.mrf.mxu0
      %v2111 = vadd.f32 0.0, %v2110
      %v2112 = vpop.f32.mrf.mxu0
      %v2113 = vpop.f32.mrf.mxu0
      %v2114 = vadd.f32 0.0, %v2113
      %v2115 = vpop.f32.mrf.mxu0
      %2116 = vdwg.mxu0
      %v2117 = vadd.f32 %v1764, %v2055
      %v2118 = vadd.f32 %v1765, %v2058
      %v2119 = vadd.f32 %v1766, %v2063
      %v2120 = vadd.f32 %v1767, %v2066
      %v2121 = vadd.f32 %v1768, %v2071
      %v2122 = vadd.f32 %v1769, %v2074
      %v2123 = vadd.f32 %v1770, %v2079
      %v2124 = vadd.f32 %v1771, %v2082
      %v2125 = vadd.f32 %v1772, %v2087
      %v2126 = vadd.f32 %v1773, %v2090
      %v2127 = vadd.f32 %v1774, %v2095
      %v2128 = vadd.f32 %v1775, %v2098
      %v2129 = vadd.f32 %v1776, %v2103
      %v2130 = vadd.f32 %v1777, %v2106
      %v2131 = vadd.f32 %v1778, %v2111
      %v2132 = vadd.f32 %v1779, %v2114
      %vm2149 = vcmask 1040384
      %vm2150 = vcmask 1044484
      %vm2151 = vmor %vm2149, %vm2150
      %v2152 = vrot.slane %v258, 7
      %v2153 = vrot.slane %v2152, 4
      %v2154 = vrot.slane %v203, 7
      %v2155 = vsel %vm2151, %v2153, %v2154
      %v2156 = vrot.slane %v2154, 4
      %v2157 = vrot.slane %v250, 7
      %v2158 = vsel %vm2151, %v2156, %v2157
      %v2159 = vrot.slane %v259, 7
      %v2160 = vrot.slane %v2159, 4
      %v2161 = vrot.slane %v205, 7
      %v2162 = vsel %vm2151, %v2160, %v2161
      %v2163 = vrot.slane %v2161, 4
      %v2164 = vrot.slane %v251, 7
      %v2165 = vsel %vm2151, %v2163, %v2164
      %v2166 = vrot.slane %v260, 7
      %v2167 = vrot.slane %v2166, 4
      %v2168 = vrot.slane %v207, 7
      %v2169 = vsel %vm2151, %v2167, %v2168
      %v2170 = vrot.slane %v2168, 4
      %v2171 = vrot.slane %v252, 7
      %v2172 = vsel %vm2151, %v2170, %v2171
      %v2173 = vrot.slane %v261, 7
      %v2174 = vrot.slane %v2173, 4
      %v2175 = vrot.slane %v209, 7
      %v2176 = vsel %vm2151, %v2174, %v2175
      %v2177 = vrot.slane %v2175, 4
      %v2178 = vrot.slane %v253, 7
      %v2179 = vsel %vm2151, %v2177, %v2178
      %v2180 = vrot.slane %v262, 7
      %v2181 = vrot.slane %v2180, 4
      %v2182 = vrot.slane %v211, 7
      %v2183 = vsel %vm2151, %v2181, %v2182
      %v2184 = vrot.slane %v2182, 4
      %v2185 = vrot.slane %v254, 7
      %v2186 = vsel %vm2151, %v2184, %v2185
      %v2187 = vrot.slane %v263, 7
      %v2188 = vrot.slane %v2187, 4
      %v2189 = vrot.slane %v213, 7
      %v2190 = vsel %vm2151, %v2188, %v2189
      %v2191 = vrot.slane %v2189, 4
      %v2192 = vrot.slane %v255, 7
      %v2193 = vsel %vm2151, %v2191, %v2192
      %v2194 = vrot.slane %v264, 7
      %v2195 = vrot.slane %v2194, 4
      %v2196 = vrot.slane %v215, 7
      %v2197 = vsel %vm2151, %v2195, %v2196
      %v2198 = vrot.slane %v2196, 4
      %v2199 = vrot.slane %v256, 7
      %v2200 = vsel %vm2151, %v2198, %v2199
      %v2201 = vrot.slane %v265, 7
      %v2202 = vrot.slane %v2201, 4
      %v2203 = vrot.slane %v217, 7
      %v2204 = vsel %vm2151, %v2202, %v2203
      %v2205 = vrot.slane %v2203, 4
      %v2206 = vrot.slane %v257, 7
      %v2207 = vsel %vm2151, %v2205, %v2206
      %s2208 = scalar_lea.vmem %s1, 12
      %v2209 = vld [vmem:[%s2208] sm:$0x3]
      %v2210 = vunpack.c.l.b16 %v2155
      %v2211 = vunpack.c.l.b16 %v2158
      %v2212 = vunpack.c.l.b16 %v2162
      %v2213 = vunpack.c.l.b16 %v2165
      %v2214 = vunpack.c.l.b16 %v2169
      %v2215 = vunpack.c.l.b16 %v2172
      %v2216 = vunpack.c.l.b16 %v2176
      %v2217 = vunpack.c.l.b16 %v2179
      %v2218 = vunpack.c.l.b16 %v2183
      %v2219 = vunpack.c.l.b16 %v2186
      %v2220 = vunpack.c.l.b16 %v2190
      %v2221 = vunpack.c.l.b16 %v2193
      %v2222 = vunpack.c.l.b16 %v2197
      %v2223 = vunpack.c.l.b16 %v2200
      %v2224 = vunpack.c.l.b16 %v2204
      %v2225 = vunpack.c.l.b16 %v2207
      %v2226 = vpack.c.b16 %v2211, %v2210
      %v2227 = vpack.c.b16 %v2213, %v2212
      %v2228 = vpack.c.b16 %v2215, %v2214
      %v2229 = vpack.c.b16 %v2217, %v2216
      %v2230 = vpack.c.b16 %v2219, %v2218
      %v2231 = vpack.c.b16 %v2221, %v2220
      %v2232 = vpack.c.b16 %v2223, %v2222
      %v2233 = vpack.c.b16 %v2225, %v2224
      %v2235 = vsel %vm655, %v2226, 0
      %v2238 = vsel %vm655, %v2227, 0
      %v2241 = vsel %vm655, %v2228, 0
      %v2244 = vsel %vm655, %v2229, 0
      %v2247 = vsel %vm655, %v2230, 0
      %v2250 = vsel %vm655, %v2231, 0
      %v2253 = vsel %vm655, %v2232, 0
      %v2256 = vsel %vm655, %v2233, 0
      %v2259 = vsel %vm680, %v2209, 0
      %2261 = vmatprep.subr.bf16.mxu0 0
      %2262 = vmatpush1.bf16.msra.mxu0 0
      %2263 = vmatprep.subr.bf16.mxu0 0
      %2264 = vmatpush1.bf16.msra.mxu0 0
      %2265 = vmatprep.subr.bf16.mxu0 0
      %2266 = vmatpush1.bf16.msra.mxu0 0
      %2267 = vmatprep.subr.bf16.mxu0 0
      %2268 = vmatpush1.bf16.msra.mxu0 0
      %2269 = vmatprep.subr.bf16.mxu0 0
      %2270 = vmatpush1.bf16.msra.mxu0 0
      %2271 = vmatprep.subr.bf16.mxu0 0
      %2272 = vmatpush1.bf16.msra.mxu0 0
      %2273 = vmatprep.subr.bf16.mxu0 0
      %2274 = vmatpush1.bf16.msra.mxu0 0
      %2275 = vmatprep.subr.bf16.mxu0 0
      %2276 = vmatpush1.bf16.msra.mxu0 %v2259
      %2277 = vmatprep.subr.bf16.mxu0 0
      %2278 = vmatpush2.bf16.msra.mxu0 0
      %2279 = vmatprep.subr.bf16.mxu0 0
      %2280 = vmatpush2.bf16.msra.mxu0 0
      %2281 = vmatprep.subr.bf16.mxu0 0
      %2282 = vmatpush2.bf16.msra.mxu0 0
      %2283 = vmatprep.subr.bf16.mxu0 0
      %2284 = vmatpush2.bf16.msra.mxu0 0
      %2285 = vmatprep.subr.bf16.mxu0 0
      %2286 = vmatpush2.bf16.msra.mxu0 0
      %2287 = vmatprep.subr.bf16.mxu0 0
      %2288 = vmatpush2.bf16.msra.mxu0 0
      %2289 = vmatprep.subr.bf16.mxu0 0
      %2290 = vmatpush2.bf16.msra.mxu0 0
      %2291 = vmatprep.subr.bf16.mxu0 0
      %2292 = vmatpush2.bf16.msra.mxu0 0
      %2293 = vmatprep.mubr.bf16.mxu0 0
      %2294 = vmatmul.mubr.bf16.gmra.mxu0 %v2235
      %v2295 = vpop.f32.mrf.mxu0
      %v2296 = vadd.f32 0.0, %v2295
      %v2297 = vpop.f32.mrf.mxu0
      %v2298 = vpop.f32.mrf.mxu0
      %v2299 = vadd.f32 0.0, %v2298
      %v2300 = vpop.f32.mrf.mxu0
      %2301 = vmatprep.mubr.bf16.mxu0 0
      %2302 = vmatmul.mubr.bf16.gmra.mxu0 %v2238
      %v2303 = vpop.f32.mrf.mxu0
      %v2304 = vadd.f32 0.0, %v2303
      %v2305 = vpop.f32.mrf.mxu0
      %v2306 = vpop.f32.mrf.mxu0
      %v2307 = vadd.f32 0.0, %v2306
      %v2308 = vpop.f32.mrf.mxu0
      %2309 = vmatprep.mubr.bf16.mxu0 0
      %2310 = vmatmul.mubr.bf16.gmra.mxu0 %v2241
      %v2311 = vpop.f32.mrf.mxu0
      %v2312 = vadd.f32 0.0, %v2311
      %v2313 = vpop.f32.mrf.mxu0
      %v2314 = vpop.f32.mrf.mxu0
      %v2315 = vadd.f32 0.0, %v2314
      %v2316 = vpop.f32.mrf.mxu0
      %2317 = vmatprep.mubr.bf16.mxu0 0
      %2318 = vmatmul.mubr.bf16.gmra.mxu0 %v2244
      %v2319 = vpop.f32.mrf.mxu0
      %v2320 = vadd.f32 0.0, %v2319
      %v2321 = vpop.f32.mrf.mxu0
      %v2322 = vpop.f32.mrf.mxu0
      %v2323 = vadd.f32 0.0, %v2322
      %v2324 = vpop.f32.mrf.mxu0
      %2325 = vmatprep.mubr.bf16.mxu0 0
      %2326 = vmatmul.mubr.bf16.gmra.mxu0 %v2247
      %v2327 = vpop.f32.mrf.mxu0
      %v2328 = vadd.f32 0.0, %v2327
      %v2329 = vpop.f32.mrf.mxu0
      %v2330 = vpop.f32.mrf.mxu0
      %v2331 = vadd.f32 0.0, %v2330
      %v2332 = vpop.f32.mrf.mxu0
      %2333 = vmatprep.mubr.bf16.mxu0 0
      %2334 = vmatmul.mubr.bf16.gmra.mxu0 %v2250
      %v2335 = vpop.f32.mrf.mxu0
      %v2336 = vadd.f32 0.0, %v2335
      %v2337 = vpop.f32.mrf.mxu0
      %v2338 = vpop.f32.mrf.mxu0
      %v2339 = vadd.f32 0.0, %v2338
      %v2340 = vpop.f32.mrf.mxu0
      %2341 = vmatprep.mubr.bf16.mxu0 0
      %2342 = vmatmul.mubr.bf16.gmra.mxu0 %v2253
      %v2343 = vpop.f32.mrf.mxu0
      %v2344 = vadd.f32 0.0, %v2343
      %v2345 = vpop.f32.mrf.mxu0
      %v2346 = vpop.f32.mrf.mxu0
      %v2347 = vadd.f32 0.0, %v2346
      %v2348 = vpop.f32.mrf.mxu0
      %2349 = vmatprep.mubr.bf16.mxu0 0
      %2350 = vmatmul.mubr.bf16.gmra.mxu0 %v2256
      %v2351 = vpop.f32.mrf.mxu0
      %v2352 = vadd.f32 0.0, %v2351
      %v2353 = vpop.f32.mrf.mxu0
      %v2354 = vpop.f32.mrf.mxu0
      %v2355 = vadd.f32 0.0, %v2354
      %v2356 = vpop.f32.mrf.mxu0
      %2357 = vdwg.mxu0
      %v2358 = vadd.f32 %v2117, %v2296
      %v2359 = vadd.f32 %v2118, %v2299
      %v2360 = vadd.f32 %v2119, %v2304
      %v2361 = vadd.f32 %v2120, %v2307
      %v2362 = vadd.f32 %v2121, %v2312
      %v2363 = vadd.f32 %v2122, %v2315
      %v2364 = vadd.f32 %v2123, %v2320
      %v2365 = vadd.f32 %v2124, %v2323
      %v2366 = vadd.f32 %v2125, %v2328
      %v2367 = vadd.f32 %v2126, %v2331
      %v2368 = vadd.f32 %v2127, %v2336
      %v2369 = vadd.f32 %v2128, %v2339
      %v2370 = vadd.f32 %v2129, %v2344
      %v2371 = vadd.f32 %v2130, %v2347
      %v2372 = vadd.f32 %v2131, %v2352
      %v2373 = vadd.f32 %v2132, %v2355
      %v2375 = vshrl.u32 %v269, 16
      %v2377 = vrot.slane %v2375, 5
      %v2378 = vshll.u32 %v269, 16
      %v2380 = vrot.slane %v2378, 6
      %v2381 = vor.u32 %v2377, %v2380
      %v2382 = vrot.slane %v2381, 4
      %v2384 = vshrl.u32 %v270, 16
      %v2386 = vrot.slane %v2384, 5
      %v2387 = vshll.u32 %v270, 16
      %v2389 = vrot.slane %v2387, 6
      %v2390 = vor.u32 %v2386, %v2389
      %v2391 = vsel %vm1188, %v2382, %v2390
      %v2392 = vrot.slane %v2390, 4
      %v2394 = vshrl.u32 %v271, 16
      %v2396 = vrot.slane %v2394, 5
      %v2397 = vshll.u32 %v271, 16
      %v2399 = vrot.slane %v2397, 6
      %v2400 = vor.u32 %v2396, %v2399
      %v2401 = vsel %vm1188, %v2392, %v2400
      %v2403 = vshrl.u32 %v272, 16
      %v2405 = vrot.slane %v2403, 5
      %v2406 = vshll.u32 %v272, 16
      %v2408 = vrot.slane %v2406, 6
      %v2409 = vor.u32 %v2405, %v2408
      %v2410 = vrot.slane %v2409, 4
      %v2412 = vshrl.u32 %v273, 16
      %v2414 = vrot.slane %v2412, 5
      %v2415 = vshll.u32 %v273, 16
      %v2417 = vrot.slane %v2415, 6
      %v2418 = vor.u32 %v2414, %v2417
      %v2419 = vsel %vm1188, %v2410, %v2418
      %v2420 = vrot.slane %v2418, 4
      %v2422 = vshrl.u32 %v274, 16
      %v2424 = vrot.slane %v2422, 5
      %v2425 = vshll.u32 %v274, 16
      %v2427 = vrot.slane %v2425, 6
      %v2428 = vor.u32 %v2424, %v2427
      %v2429 = vsel %vm1188, %v2420, %v2428
      %v2431 = vshrl.u32 %v275, 16
      %v2433 = vrot.slane %v2431, 5
      %v2434 = vshll.u32 %v275, 16
      %v2436 = vrot.slane %v2434, 6
      %v2437 = vor.u32 %v2433, %v2436
      %v2438 = vrot.slane %v2437, 4
      %v2440 = vshrl.u32 %v276, 16
      %v2442 = vrot.slane %v2440, 5
      %v2443 = vshll.u32 %v276, 16
      %v2445 = vrot.slane %v2443, 6
      %v2446 = vor.u32 %v2442, %v2445
      %v2447 = vsel %vm1188, %v2438, %v2446
      %v2448 = vrot.slane %v2446, 4
      %v2450 = vshrl.u32 %v277, 16
      %v2452 = vrot.slane %v2450, 5
      %v2453 = vshll.u32 %v277, 16
      %v2455 = vrot.slane %v2453, 6
      %v2456 = vor.u32 %v2452, %v2455
      %v2457 = vsel %vm1188, %v2448, %v2456
      %v2459 = vshrl.u32 %v278, 16
      %v2461 = vrot.slane %v2459, 5
      %v2462 = vshll.u32 %v278, 16
      %v2464 = vrot.slane %v2462, 6
      %v2465 = vor.u32 %v2461, %v2464
      %v2466 = vrot.slane %v2465, 4
      %v2468 = vshrl.u32 %v279, 16
      %v2470 = vrot.slane %v2468, 5
      %v2471 = vshll.u32 %v279, 16
      %v2473 = vrot.slane %v2471, 6
      %v2474 = vor.u32 %v2470, %v2473
      %v2475 = vsel %vm1188, %v2466, %v2474
      %v2476 = vrot.slane %v2474, 4
      %v2478 = vshrl.u32 %v280, 16
      %v2480 = vrot.slane %v2478, 5
      %v2481 = vshll.u32 %v280, 16
      %v2483 = vrot.slane %v2481, 6
      %v2484 = vor.u32 %v2480, %v2483
      %v2485 = vsel %vm1188, %v2476, %v2484
      %v2487 = vshrl.u32 %v281, 16
      %v2489 = vrot.slane %v2487, 5
      %v2490 = vshll.u32 %v281, 16
      %v2492 = vrot.slane %v2490, 6
      %v2493 = vor.u32 %v2489, %v2492
      %v2494 = vrot.slane %v2493, 4
      %v2496 = vshrl.u32 %v282, 16
      %v2498 = vrot.slane %v2496, 5
      %v2499 = vshll.u32 %v282, 16
      %v2501 = vrot.slane %v2499, 6
      %v2502 = vor.u32 %v2498, %v2501
      %v2503 = vsel %vm1188, %v2494, %v2502
      %v2504 = vrot.slane %v2502, 4
      %v2506 = vshrl.u32 %v283, 16
      %v2508 = vrot.slane %v2506, 5
      %v2509 = vshll.u32 %v283, 16
      %v2511 = vrot.slane %v2509, 6
      %v2512 = vor.u32 %v2508, %v2511
      %v2513 = vsel %vm1188, %v2504, %v2512
      %v2515 = vshrl.u32 %v284, 16
      %v2517 = vrot.slane %v2515, 5
      %v2518 = vshll.u32 %v284, 16
      %v2520 = vrot.slane %v2518, 6
      %v2521 = vor.u32 %v2517, %v2520
      %v2522 = vrot.slane %v2521, 4
      %v2524 = vshrl.u32 %v285, 16
      %v2526 = vrot.slane %v2524, 5
      %v2527 = vshll.u32 %v285, 16
      %v2529 = vrot.slane %v2527, 6
      %v2530 = vor.u32 %v2526, %v2529
      %v2531 = vsel %vm1188, %v2522, %v2530
      %v2532 = vrot.slane %v2530, 4
      %v2534 = vshrl.u32 %v286, 16
      %v2536 = vrot.slane %v2534, 5
      %v2537 = vshll.u32 %v286, 16
      %v2539 = vrot.slane %v2537, 6
      %v2540 = vor.u32 %v2536, %v2539
      %v2541 = vsel %vm1188, %v2532, %v2540
      %v2543 = vshrl.u32 %v287, 16
      %v2545 = vrot.slane %v2543, 5
      %v2546 = vshll.u32 %v287, 16
      %v2548 = vrot.slane %v2546, 6
      %v2549 = vor.u32 %v2545, %v2548
      %v2550 = vrot.slane %v2549, 4
      %v2552 = vshrl.u32 %v288, 16
      %v2554 = vrot.slane %v2552, 5
      %v2555 = vshll.u32 %v288, 16
      %v2557 = vrot.slane %v2555, 6
      %v2558 = vor.u32 %v2554, %v2557
      %v2559 = vsel %vm1188, %v2550, %v2558
      %v2560 = vrot.slane %v2558, 4
      %v2562 = vshrl.u32 %v289, 16
      %v2564 = vrot.slane %v2562, 5
      %v2565 = vshll.u32 %v289, 16
      %v2567 = vrot.slane %v2565, 6
      %v2568 = vor.u32 %v2564, %v2567
      %v2569 = vsel %vm1188, %v2560, %v2568
      %v2571 = vshrl.u32 %v290, 16
      %v2573 = vrot.slane %v2571, 5
      %v2574 = vshll.u32 %v290, 16
      %v2576 = vrot.slane %v2574, 6
      %v2577 = vor.u32 %v2573, %v2576
      %v2578 = vrot.slane %v2577, 4
      %v2580 = vshrl.u32 %v291, 16
      %v2582 = vrot.slane %v2580, 5
      %v2583 = vshll.u32 %v291, 16
      %v2585 = vrot.slane %v2583, 6
      %v2586 = vor.u32 %v2582, %v2585
      %v2587 = vsel %vm1188, %v2578, %v2586
      %v2588 = vrot.slane %v2586, 4
      %v2590 = vshrl.u32 %v292, 16
      %v2592 = vrot.slane %v2590, 5
      %v2593 = vshll.u32 %v292, 16
      %v2595 = vrot.slane %v2593, 6
      %v2596 = vor.u32 %v2592, %v2595
      %v2597 = vsel %vm1188, %v2588, %v2596
      %s2598 = scalar_lea.vmem %s1, 14
      %v2599 = vld [vmem:[%s2598] sm:$0x3]
      %v2600 = vunpack.c.l.b16 %v2391
      %v2601 = vunpack.c.l.b16 %v2401
      %v2602 = vunpack.c.l.b16 %v2419
      %v2603 = vunpack.c.l.b16 %v2429
      %v2604 = vunpack.c.l.b16 %v2447
      %v2605 = vunpack.c.l.b16 %v2457
      %v2606 = vunpack.c.l.b16 %v2475
      %v2607 = vunpack.c.l.b16 %v2485
      %v2608 = vunpack.c.l.b16 %v2503
      %v2609 = vunpack.c.l.b16 %v2513
      %v2610 = vunpack.c.l.b16 %v2531
      %v2611 = vunpack.c.l.b16 %v2541
      %v2612 = vunpack.c.l.b16 %v2559
      %v2613 = vunpack.c.l.b16 %v2569
      %v2614 = vunpack.c.l.b16 %v2587
      %v2615 = vunpack.c.l.b16 %v2597
      %v2616 = vpack.c.b16 %v2601, %v2600
      %v2617 = vpack.c.b16 %v2603, %v2602
      %v2618 = vpack.c.b16 %v2605, %v2604
      %v2619 = vpack.c.b16 %v2607, %v2606
      %v2620 = vpack.c.b16 %v2609, %v2608
      %v2621 = vpack.c.b16 %v2611, %v2610
      %v2622 = vpack.c.b16 %v2613, %v2612
      %v2623 = vpack.c.b16 %v2615, %v2614
      %v2625 = vsel %vm655, %v2616, 0
      %v2628 = vsel %vm655, %v2617, 0
      %v2631 = vsel %vm655, %v2618, 0
      %v2634 = vsel %vm655, %v2619, 0
      %v2637 = vsel %vm655, %v2620, 0
      %v2640 = vsel %vm655, %v2621, 0
      %v2643 = vsel %vm655, %v2622, 0
      %v2646 = vsel %vm655, %v2623, 0
      %v2649 = vsel %vm680, %v2599, 0
      %2651 = vmatprep.subr.bf16.mxu0 0
      %2652 = vmatpush1.bf16.msra.mxu0 0
      %2653 = vmatprep.subr.bf16.mxu0 0
      %2654 = vmatpush1.bf16.msra.mxu0 0
      %2655 = vmatprep.subr.bf16.mxu0 0
      %2656 = vmatpush1.bf16.msra.mxu0 0
      %2657 = vmatprep.subr.bf16.mxu0 0
      %2658 = vmatpush1.bf16.msra.mxu0 0
      %2659 = vmatprep.subr.bf16.mxu0 0
      %2660 = vmatpush1.bf16.msra.mxu0 0
      %2661 = vmatprep.subr.bf16.mxu0 0
      %2662 = vmatpush1.bf16.msra.mxu0 0
      %2663 = vmatprep.subr.bf16.mxu0 0
      %2664 = vmatpush1.bf16.msra.mxu0 0
      %2665 = vmatprep.subr.bf16.mxu0 0
      %2666 = vmatpush1.bf16.msra.mxu0 %v2649
      %2667 = vmatprep.subr.bf16.mxu0 0
      %2668 = vmatpush2.bf16.msra.mxu0 0
      %2669 = vmatprep.subr.bf16.mxu0 0
      %2670 = vmatpush2.bf16.msra.mxu0 0
      %2671 = vmatprep.subr.bf16.mxu0 0
      %2672 = vmatpush2.bf16.msra.mxu0 0
      %2673 = vmatprep.subr.bf16.mxu0 0
      %2674 = vmatpush2.bf16.msra.mxu0 0
      %2675 = vmatprep.subr.bf16.mxu0 0
      %2676 = vmatpush2.bf16.msra.mxu0 0
      %2677 = vmatprep.subr.bf16.mxu0 0
      %2678 = vmatpush2.bf16.msra.mxu0 0
      %2679 = vmatprep.subr.bf16.mxu0 0
      %2680 = vmatpush2.bf16.msra.mxu0 0
      %2681 = vmatprep.subr.bf16.mxu0 0
      %2682 = vmatpush2.bf16.msra.mxu0 0
      %2683 = vmatprep.mubr.bf16.mxu0 0
      %2684 = vmatmul.mubr.bf16.gmra.mxu0 %v2625
      %v2685 = vpop.f32.mrf.mxu0
      %v2686 = vadd.f32 0.0, %v2685
      %v2687 = vpop.f32.mrf.mxu0
      %v2688 = vpop.f32.mrf.mxu0
      %v2689 = vadd.f32 0.0, %v2688
      %v2690 = vpop.f32.mrf.mxu0
      %2691 = vmatprep.mubr.bf16.mxu0 0
      %2692 = vmatmul.mubr.bf16.gmra.mxu0 %v2628
      %v2693 = vpop.f32.mrf.mxu0
      %v2694 = vadd.f32 0.0, %v2693
      %v2695 = vpop.f32.mrf.mxu0
      %v2696 = vpop.f32.mrf.mxu0
      %v2697 = vadd.f32 0.0, %v2696
      %v2698 = vpop.f32.mrf.mxu0
      %2699 = vmatprep.mubr.bf16.mxu0 0
      %2700 = vmatmul.mubr.bf16.gmra.mxu0 %v2631
      %v2701 = vpop.f32.mrf.mxu0
      %v2702 = vadd.f32 0.0, %v2701
      %v2703 = vpop.f32.mrf.mxu0
      %v2704 = vpop.f32.mrf.mxu0
      %v2705 = vadd.f32 0.0, %v2704
      %v2706 = vpop.f32.mrf.mxu0
      %2707 = vmatprep.mubr.bf16.mxu0 0
      %2708 = vmatmul.mubr.bf16.gmra.mxu0 %v2634
      %v2709 = vpop.f32.mrf.mxu0
      %v2710 = vadd.f32 0.0, %v2709
      %v2711 = vpop.f32.mrf.mxu0
      %v2712 = vpop.f32.mrf.mxu0
      %v2713 = vadd.f32 0.0, %v2712
      %v2714 = vpop.f32.mrf.mxu0
      %2715 = vmatprep.mubr.bf16.mxu0 0
      %2716 = vmatmul.mubr.bf16.gmra.mxu0 %v2637
      %v2717 = vpop.f32.mrf.mxu0
      %v2718 = vadd.f32 0.0, %v2717
      %v2719 = vpop.f32.mrf.mxu0
      %v2720 = vpop.f32.mrf.mxu0
      %v2721 = vadd.f32 0.0, %v2720
      %v2722 = vpop.f32.mrf.mxu0
      %2723 = vmatprep.mubr.bf16.mxu0 0
      %2724 = vmatmul.mubr.bf16.gmra.mxu0 %v2640
      %v2725 = vpop.f32.mrf.mxu0
      %v2726 = vadd.f32 0.0, %v2725
      %v2727 = vpop.f32.mrf.mxu0
      %v2728 = vpop.f32.mrf.mxu0
      %v2729 = vadd.f32 0.0, %v2728
      %v2730 = vpop.f32.mrf.mxu0
      %2731 = vmatprep.mubr.bf16.mxu0 0
      %2732 = vmatmul.mubr.bf16.gmra.mxu0 %v2643
      %v2733 = vpop.f32.mrf.mxu0
      %v2734 = vadd.f32 0.0, %v2733
      %v2735 = vpop.f32.mrf.mxu0
      %v2736 = vpop.f32.mrf.mxu0
      %v2737 = vadd.f32 0.0, %v2736
      %v2738 = vpop.f32.mrf.mxu0
      %2739 = vmatprep.mubr.bf16.mxu0 0
      %2740 = vmatmul.mubr.bf16.gmra.mxu0 %v2646
      %v2741 = vpop.f32.mrf.mxu0
      %v2742 = vadd.f32 0.0, %v2741
      %v2743 = vpop.f32.mrf.mxu0
      %v2744 = vpop.f32.mrf.mxu0
      %v2745 = vadd.f32 0.0, %v2744
      %v2746 = vpop.f32.mrf.mxu0
      %2747 = vdwg.mxu0
      %v2748 = vadd.f32 %v2358, %v2686
      %v2749 = vadd.f32 %v2359, %v2689
      %v2750 = vadd.f32 %v2360, %v2694
      %v2751 = vadd.f32 %v2361, %v2697
      %v2752 = vadd.f32 %v2362, %v2702
      %v2753 = vadd.f32 %v2363, %v2705
      %v2754 = vadd.f32 %v2364, %v2710
      %v2755 = vadd.f32 %v2365, %v2713
      %v2756 = vadd.f32 %v2366, %v2718
      %v2757 = vadd.f32 %v2367, %v2721
      %v2758 = vadd.f32 %v2368, %v2726
      %v2759 = vadd.f32 %v2369, %v2729
      %v2760 = vadd.f32 %v2370, %v2734
      %v2761 = vadd.f32 %v2371, %v2737
      %v2762 = vadd.f32 %v2372, %v2742
      %v2763 = vadd.f32 %v2373, %v2745
      %v2765 = vshrl.u32 %v297, 16
      %v2767 = vrot.slane %v2765, 5
      %v2768 = vshll.u32 %v297, 16
      %v2770 = vrot.slane %v2768, 6
      %v2771 = vor.u32 %v2767, %v2770
      %v2772 = vrot.slane %v2771, 4
      %v2774 = vshrl.u32 %v298, 16
      %v2776 = vrot.slane %v2774, 5
      %v2777 = vshll.u32 %v298, 16
      %v2779 = vrot.slane %v2777, 6
      %v2780 = vor.u32 %v2776, %v2779
      %v2781 = vsel %vm1188, %v2772, %v2780
      %v2782 = vrot.slane %v2780, 4
      %v2784 = vshrl.u32 %v299, 16
      %v2786 = vrot.slane %v2784, 5
      %v2787 = vshll.u32 %v299, 16
      %v2789 = vrot.slane %v2787, 6
      %v2790 = vor.u32 %v2786, %v2789
      %v2791 = vsel %vm1188, %v2782, %v2790
      %v2793 = vshrl.u32 %v300, 16
      %v2795 = vrot.slane %v2793, 5
      %v2796 = vshll.u32 %v300, 16
      %v2798 = vrot.slane %v2796, 6
      %v2799 = vor.u32 %v2795, %v2798
      %v2800 = vrot.slane %v2799, 4
      %v2802 = vshrl.u32 %v301, 16
      %v2804 = vrot.slane %v2802, 5
      %v2805 = vshll.u32 %v301, 16
      %v2807 = vrot.slane %v2805, 6
      %v2808 = vor.u32 %v2804, %v2807
      %v2809 = vsel %vm1188, %v2800, %v2808
      %v2810 = vrot.slane %v2808, 4
      %v2812 = vshrl.u32 %v302, 16
      %v2814 = vrot.slane %v2812, 5
      %v2815 = vshll.u32 %v302, 16
      %v2817 = vrot.slane %v2815, 6
      %v2818 = vor.u32 %v2814, %v2817
      %v2819 = vsel %vm1188, %v2810, %v2818
      %v2821 = vshrl.u32 %v303, 16
      %v2823 = vrot.slane %v2821, 5
      %v2824 = vshll.u32 %v303, 16
      %v2826 = vrot.slane %v2824, 6
      %v2827 = vor.u32 %v2823, %v2826
      %v2828 = vrot.slane %v2827, 4
      %v2830 = vshrl.u32 %v304, 16
      %v2832 = vrot.slane %v2830, 5
      %v2833 = vshll.u32 %v304, 16
      %v2835 = vrot.slane %v2833, 6
      %v2836 = vor.u32 %v2832, %v2835
      %v2837 = vsel %vm1188, %v2828, %v2836
      %v2838 = vrot.slane %v2836, 4
      %v2840 = vshrl.u32 %v305, 16
      %v2842 = vrot.slane %v2840, 5
      %v2843 = vshll.u32 %v305, 16
      %v2845 = vrot.slane %v2843, 6
      %v2846 = vor.u32 %v2842, %v2845
      %v2847 = vsel %vm1188, %v2838, %v2846
      %v2849 = vshrl.u32 %v306, 16
      %v2851 = vrot.slane %v2849, 5
      %v2852 = vshll.u32 %v306, 16
      %v2854 = vrot.slane %v2852, 6
      %v2855 = vor.u32 %v2851, %v2854
      %v2856 = vrot.slane %v2855, 4
      %v2858 = vshrl.u32 %v307, 16
      %v2860 = vrot.slane %v2858, 5
      %v2861 = vshll.u32 %v307, 16
      %v2863 = vrot.slane %v2861, 6
      %v2864 = vor.u32 %v2860, %v2863
      %v2865 = vsel %vm1188, %v2856, %v2864
      %v2866 = vrot.slane %v2864, 4
      %v2868 = vshrl.u32 %v308, 16
      %v2870 = vrot.slane %v2868, 5
      %v2871 = vshll.u32 %v308, 16
      %v2873 = vrot.slane %v2871, 6
      %v2874 = vor.u32 %v2870, %v2873
      %v2875 = vsel %vm1188, %v2866, %v2874
      %v2877 = vshrl.u32 %v309, 16
      %v2879 = vrot.slane %v2877, 5
      %v2880 = vshll.u32 %v309, 16
      %v2882 = vrot.slane %v2880, 6
      %v2883 = vor.u32 %v2879, %v2882
      %v2884 = vrot.slane %v2883, 4
      %v2886 = vshrl.u32 %v310, 16
      %v2888 = vrot.slane %v2886, 5
      %v2889 = vshll.u32 %v310, 16
      %v2891 = vrot.slane %v2889, 6
      %v2892 = vor.u32 %v2888, %v2891
      %v2893 = vsel %vm1188, %v2884, %v2892
      %v2894 = vrot.slane %v2892, 4
      %v2896 = vshrl.u32 %v311, 16
      %v2898 = vrot.slane %v2896, 5
      %v2899 = vshll.u32 %v311, 16
      %v2901 = vrot.slane %v2899, 6
      %v2902 = vor.u32 %v2898, %v2901
      %v2903 = vsel %vm1188, %v2894, %v2902
      %v2905 = vshrl.u32 %v312, 16
      %v2907 = vrot.slane %v2905, 5
      %v2908 = vshll.u32 %v312, 16
      %v2910 = vrot.slane %v2908, 6
      %v2911 = vor.u32 %v2907, %v2910
      %v2912 = vrot.slane %v2911, 4
      %v2914 = vshrl.u32 %v313, 16
      %v2916 = vrot.slane %v2914, 5
      %v2917 = vshll.u32 %v313, 16
      %v2919 = vrot.slane %v2917, 6
      %v2920 = vor.u32 %v2916, %v2919
      %v2921 = vsel %vm1188, %v2912, %v2920
      %v2922 = vrot.slane %v2920, 4
      %v2924 = vshrl.u32 %v314, 16
      %v2926 = vrot.slane %v2924, 5
      %v2927 = vshll.u32 %v314, 16
      %v2929 = vrot.slane %v2927, 6
      %v2930 = vor.u32 %v2926, %v2929
      %v2931 = vsel %vm1188, %v2922, %v2930
      %v2933 = vshrl.u32 %v315, 16
      %v2935 = vrot.slane %v2933, 5
      %v2936 = vshll.u32 %v315, 16
      %v2938 = vrot.slane %v2936, 6
      %v2939 = vor.u32 %v2935, %v2938
      %v2940 = vrot.slane %v2939, 4
      %v2942 = vshrl.u32 %v316, 16
      %v2944 = vrot.slane %v2942, 5
      %v2945 = vshll.u32 %v316, 16
      %v2947 = vrot.slane %v2945, 6
      %v2948 = vor.u32 %v2944, %v2947
      %v2949 = vsel %vm1188, %v2940, %v2948
      %v2950 = vrot.slane %v2948, 4
      %v2952 = vshrl.u32 %v317, 16
      %v2954 = vrot.slane %v2952, 5
      %v2955 = vshll.u32 %v317, 16
      %v2957 = vrot.slane %v2955, 6
      %v2958 = vor.u32 %v2954, %v2957
      %v2959 = vsel %vm1188, %v2950, %v2958
      %v2961 = vshrl.u32 %v318, 16
      %v2963 = vrot.slane %v2961, 5
      %v2964 = vshll.u32 %v318, 16
      %v2966 = vrot.slane %v2964, 6
      %v2967 = vor.u32 %v2963, %v2966
      %v2968 = vrot.slane %v2967, 4
      %v2970 = vshrl.u32 %v319, 16
      %v2972 = vrot.slane %v2970, 5
      %v2973 = vshll.u32 %v319, 16
      %v2975 = vrot.slane %v2973, 6
      %v2976 = vor.u32 %v2972, %v2975
      %v2977 = vsel %vm1188, %v2968, %v2976
      %v2978 = vrot.slane %v2976, 4
      %v2980 = vshrl.u32 %v320, 16
      %v2982 = vrot.slane %v2980, 5
      %v2983 = vshll.u32 %v320, 16
      %v2985 = vrot.slane %v2983, 6
      %v2986 = vor.u32 %v2982, %v2985
      %v2987 = vsel %vm1188, %v2978, %v2986
      %s2988 = scalar_lea.vmem %s1, 16
      %v2989 = vld [vmem:[%s2988] sm:$0x3]
      %v2990 = vunpack.c.l.b16 %v2781
      %v2991 = vunpack.c.l.b16 %v2791
      %v2992 = vunpack.c.l.b16 %v2809
      %v2993 = vunpack.c.l.b16 %v2819
      %v2994 = vunpack.c.l.b16 %v2837
      %v2995 = vunpack.c.l.b16 %v2847
      %v2996 = vunpack.c.l.b16 %v2865
      %v2997 = vunpack.c.l.b16 %v2875
      %v2998 = vunpack.c.l.b16 %v2893
      %v2999 = vunpack.c.l.b16 %v2903
      %v3000 = vunpack.c.l.b16 %v2921
      %v3001 = vunpack.c.l.b16 %v2931
      %v3002 = vunpack.c.l.b16 %v2949
      %v3003 = vunpack.c.l.b16 %v2959
      %v3004 = vunpack.c.l.b16 %v2977
      %v3005 = vunpack.c.l.b16 %v2987
      %v3006 = vpack.c.b16 %v2991, %v2990
      %v3007 = vpack.c.b16 %v2993, %v2992
      %v3008 = vpack.c.b16 %v2995, %v2994
      %v3009 = vpack.c.b16 %v2997, %v2996
      %v3010 = vpack.c.b16 %v2999, %v2998
      %v3011 = vpack.c.b16 %v3001, %v3000
      %v3012 = vpack.c.b16 %v3003, %v3002
      %v3013 = vpack.c.b16 %v3005, %v3004
      %v3015 = vsel %vm655, %v3006, 0
      %v3018 = vsel %vm655, %v3007, 0
      %v3021 = vsel %vm655, %v3008, 0
      %v3024 = vsel %vm655, %v3009, 0
      %v3027 = vsel %vm655, %v3010, 0
      %v3030 = vsel %vm655, %v3011, 0
      %v3033 = vsel %vm655, %v3012, 0
      %v3036 = vsel %vm655, %v3013, 0
      %v3039 = vsel %vm680, %v2989, 0
      %3041 = vmatprep.subr.bf16.mxu0 0
      %3042 = vmatpush1.bf16.msra.mxu0 0
      %3043 = vmatprep.subr.bf16.mxu0 0
      %3044 = vmatpush1.bf16.msra.mxu0 0
      %3045 = vmatprep.subr.bf16.mxu0 0
      %3046 = vmatpush1.bf16.msra.mxu0 0
      %3047 = vmatprep.subr.bf16.mxu0 0
      %3048 = vmatpush1.bf16.msra.mxu0 0
      %3049 = vmatprep.subr.bf16.mxu0 0
      %3050 = vmatpush1.bf16.msra.mxu0 0
      %3051 = vmatprep.subr.bf16.mxu0 0
      %3052 = vmatpush1.bf16.msra.mxu0 0
      %3053 = vmatprep.subr.bf16.mxu0 0
      %3054 = vmatpush1.bf16.msra.mxu0 0
      %3055 = vmatprep.subr.bf16.mxu0 0
      %3056 = vmatpush1.bf16.msra.mxu0 %v3039
      %3057 = vmatprep.subr.bf16.mxu0 0
      %3058 = vmatpush2.bf16.msra.mxu0 0
      %3059 = vmatprep.subr.bf16.mxu0 0
      %3060 = vmatpush2.bf16.msra.mxu0 0
      %3061 = vmatprep.subr.bf16.mxu0 0
      %3062 = vmatpush2.bf16.msra.mxu0 0
      %3063 = vmatprep.subr.bf16.mxu0 0
      %3064 = vmatpush2.bf16.msra.mxu0 0
      %3065 = vmatprep.subr.bf16.mxu0 0
      %3066 = vmatpush2.bf16.msra.mxu0 0
      %3067 = vmatprep.subr.bf16.mxu0 0
      %3068 = vmatpush2.bf16.msra.mxu0 0
      %3069 = vmatprep.subr.bf16.mxu0 0
      %3070 = vmatpush2.bf16.msra.mxu0 0
      %3071 = vmatprep.subr.bf16.mxu0 0
      %3072 = vmatpush2.bf16.msra.mxu0 0
      %3073 = vmatprep.mubr.bf16.mxu0 0
      %3074 = vmatmul.mubr.bf16.gmra.mxu0 %v3015
      %v3075 = vpop.f32.mrf.mxu0
      %v3076 = vadd.f32 0.0, %v3075
      %v3077 = vpop.f32.mrf.mxu0
      %v3078 = vpop.f32.mrf.mxu0
      %v3079 = vadd.f32 0.0, %v3078
      %v3080 = vpop.f32.mrf.mxu0
      %3081 = vmatprep.mubr.bf16.mxu0 0
      %3082 = vmatmul.mubr.bf16.gmra.mxu0 %v3018
      %v3083 = vpop.f32.mrf.mxu0
      %v3084 = vadd.f32 0.0, %v3083
      %v3085 = vpop.f32.mrf.mxu0
      %v3086 = vpop.f32.mrf.mxu0
      %v3087 = vadd.f32 0.0, %v3086
      %v3088 = vpop.f32.mrf.mxu0
      %3089 = vmatprep.mubr.bf16.mxu0 0
      %3090 = vmatmul.mubr.bf16.gmra.mxu0 %v3021
      %v3091 = vpop.f32.mrf.mxu0
      %v3092 = vadd.f32 0.0, %v3091
      %v3093 = vpop.f32.mrf.mxu0
      %v3094 = vpop.f32.mrf.mxu0
      %v3095 = vadd.f32 0.0, %v3094
      %v3096 = vpop.f32.mrf.mxu0
      %3097 = vmatprep.mubr.bf16.mxu0 0
      %3098 = vmatmul.mubr.bf16.gmra.mxu0 %v3024
      %v3099 = vpop.f32.mrf.mxu0
      %v3100 = vadd.f32 0.0, %v3099
      %v3101 = vpop.f32.mrf.mxu0
      %v3102 = vpop.f32.mrf.mxu0
      %v3103 = vadd.f32 0.0, %v3102
      %v3104 = vpop.f32.mrf.mxu0
      %3105 = vmatprep.mubr.bf16.mxu0 0
      %3106 = vmatmul.mubr.bf16.gmra.mxu0 %v3027
      %v3107 = vpop.f32.mrf.mxu0
      %v3108 = vadd.f32 0.0, %v3107
      %v3109 = vpop.f32.mrf.mxu0
      %v3110 = vpop.f32.mrf.mxu0
      %v3111 = vadd.f32 0.0, %v3110
      %v3112 = vpop.f32.mrf.mxu0
      %3113 = vmatprep.mubr.bf16.mxu0 0
      %3114 = vmatmul.mubr.bf16.gmra.mxu0 %v3030
      %v3115 = vpop.f32.mrf.mxu0
      %v3116 = vadd.f32 0.0, %v3115
      %v3117 = vpop.f32.mrf.mxu0
      %v3118 = vpop.f32.mrf.mxu0
      %v3119 = vadd.f32 0.0, %v3118
      %v3120 = vpop.f32.mrf.mxu0
      %3121 = vmatprep.mubr.bf16.mxu0 0
      %3122 = vmatmul.mubr.bf16.gmra.mxu0 %v3033
      %v3123 = vpop.f32.mrf.mxu0
      %v3124 = vadd.f32 0.0, %v3123
      %v3125 = vpop.f32.mrf.mxu0
      %v3126 = vpop.f32.mrf.mxu0
      %v3127 = vadd.f32 0.0, %v3126
      %v3128 = vpop.f32.mrf.mxu0
      %3129 = vmatprep.mubr.bf16.mxu0 0
      %3130 = vmatmul.mubr.bf16.gmra.mxu0 %v3036
      %v3131 = vpop.f32.mrf.mxu0
      %v3132 = vadd.f32 0.0, %v3131
      %v3133 = vpop.f32.mrf.mxu0
      %v3134 = vpop.f32.mrf.mxu0
      %v3135 = vadd.f32 0.0, %v3134
      %v3136 = vpop.f32.mrf.mxu0
      %3137 = vdwg.mxu0
      %v3138 = vadd.f32 %v2748, %v3076
      %v3139 = vadd.f32 %v2749, %v3079
      %v3140 = vadd.f32 %v2750, %v3084
      %v3141 = vadd.f32 %v2751, %v3087
      %v3142 = vadd.f32 %v2752, %v3092
      %v3143 = vadd.f32 %v2753, %v3095
      %v3144 = vadd.f32 %v2754, %v3100
      %v3145 = vadd.f32 %v2755, %v3103
      %v3146 = vadd.f32 %v2756, %v3108
      %v3147 = vadd.f32 %v2757, %v3111
      %v3148 = vadd.f32 %v2758, %v3116
      %v3149 = vadd.f32 %v2759, %v3119
      %v3150 = vadd.f32 %v2760, %v3124
      %v3151 = vadd.f32 %v2761, %v3127
      %v3152 = vadd.f32 %v2762, %v3132
      %v3153 = vadd.f32 %v2763, %v3135
      %v3155 = vshrl.u32 %v325, 16
      %v3157 = vrot.slane %v3155, 5
      %v3158 = vshll.u32 %v325, 16
      %v3160 = vrot.slane %v3158, 6
      %v3161 = vor.u32 %v3157, %v3160
      %v3162 = vrot.slane %v3161, 4
      %v3164 = vshrl.u32 %v326, 16
      %v3166 = vrot.slane %v3164, 5
      %v3167 = vshll.u32 %v326, 16
      %v3169 = vrot.slane %v3167, 6
      %v3170 = vor.u32 %v3166, %v3169
      %v3171 = vsel %vm1188, %v3162, %v3170
      %v3172 = vrot.slane %v3170, 4
      %v3174 = vshrl.u32 %v327, 16
      %v3176 = vrot.slane %v3174, 5
      %v3177 = vshll.u32 %v327, 16
      %v3179 = vrot.slane %v3177, 6
      %v3180 = vor.u32 %v3176, %v3179
      %v3181 = vsel %vm1188, %v3172, %v3180
      %v3183 = vshrl.u32 %v328, 16
      %v3185 = vrot.slane %v3183, 5
      %v3186 = vshll.u32 %v328, 16
      %v3188 = vrot.slane %v3186, 6
      %v3189 = vor.u32 %v3185, %v3188
      %v3190 = vrot.slane %v3189, 4
      %v3192 = vshrl.u32 %v329, 16
      %v3194 = vrot.slane %v3192, 5
      %v3195 = vshll.u32 %v329, 16
      %v3197 = vrot.slane %v3195, 6
      %v3198 = vor.u32 %v3194, %v3197
      %v3199 = vsel %vm1188, %v3190, %v3198
      %v3200 = vrot.slane %v3198, 4
      %v3202 = vshrl.u32 %v330, 16
      %v3204 = vrot.slane %v3202, 5
      %v3205 = vshll.u32 %v330, 16
      %v3207 = vrot.slane %v3205, 6
      %v3208 = vor.u32 %v3204, %v3207
      %v3209 = vsel %vm1188, %v3200, %v3208
      %v3211 = vshrl.u32 %v331, 16
      %v3213 = vrot.slane %v3211, 5
      %v3214 = vshll.u32 %v331, 16
      %v3216 = vrot.slane %v3214, 6
      %v3217 = vor.u32 %v3213, %v3216
      %v3218 = vrot.slane %v3217, 4
      %v3220 = vshrl.u32 %v332, 16
      %v3222 = vrot.slane %v3220, 5
      %v3223 = vshll.u32 %v332, 16
      %v3225 = vrot.slane %v3223, 6
      %v3226 = vor.u32 %v3222, %v3225
      %v3227 = vsel %vm1188, %v3218, %v3226
      %v3228 = vrot.slane %v3226, 4
      %v3230 = vshrl.u32 %v333, 16
      %v3232 = vrot.slane %v3230, 5
      %v3233 = vshll.u32 %v333, 16
      %v3235 = vrot.slane %v3233, 6
      %v3236 = vor.u32 %v3232, %v3235
      %v3237 = vsel %vm1188, %v3228, %v3236
      %v3239 = vshrl.u32 %v334, 16
      %v3241 = vrot.slane %v3239, 5
      %v3242 = vshll.u32 %v334, 16
      %v3244 = vrot.slane %v3242, 6
      %v3245 = vor.u32 %v3241, %v3244
      %v3246 = vrot.slane %v3245, 4
      %v3248 = vshrl.u32 %v335, 16
      %v3250 = vrot.slane %v3248, 5
      %v3251 = vshll.u32 %v335, 16
      %v3253 = vrot.slane %v3251, 6
      %v3254 = vor.u32 %v3250, %v3253
      %v3255 = vsel %vm1188, %v3246, %v3254
      %v3256 = vrot.slane %v3254, 4
      %v3258 = vshrl.u32 %v336, 16
      %v3260 = vrot.slane %v3258, 5
      %v3261 = vshll.u32 %v336, 16
      %v3263 = vrot.slane %v3261, 6
      %v3264 = vor.u32 %v3260, %v3263
      %v3265 = vsel %vm1188, %v3256, %v3264
      %v3267 = vshrl.u32 %v337, 16
      %v3269 = vrot.slane %v3267, 5
      %v3270 = vshll.u32 %v337, 16
      %v3272 = vrot.slane %v3270, 6
      %v3273 = vor.u32 %v3269, %v3272
      %v3274 = vrot.slane %v3273, 4
      %v3276 = vshrl.u32 %v338, 16
      %v3278 = vrot.slane %v3276, 5
      %v3279 = vshll.u32 %v338, 16
      %v3281 = vrot.slane %v3279, 6
      %v3282 = vor.u32 %v3278, %v3281
      %v3283 = vsel %vm1188, %v3274, %v3282
      %v3284 = vrot.slane %v3282, 4
      %v3286 = vshrl.u32 %v339, 16
      %v3288 = vrot.slane %v3286, 5
      %v3289 = vshll.u32 %v339, 16
      %v3291 = vrot.slane %v3289, 6
      %v3292 = vor.u32 %v3288, %v3291
      %v3293 = vsel %vm1188, %v3284, %v3292
      %v3295 = vshrl.u32 %v340, 16
      %v3297 = vrot.slane %v3295, 5
      %v3298 = vshll.u32 %v340, 16
      %v3300 = vrot.slane %v3298, 6
      %v3301 = vor.u32 %v3297, %v3300
      %v3302 = vrot.slane %v3301, 4
      %v3304 = vshrl.u32 %v341, 16
      %v3306 = vrot.slane %v3304, 5
      %v3307 = vshll.u32 %v341, 16
      %v3309 = vrot.slane %v3307, 6
      %v3310 = vor.u32 %v3306, %v3309
      %v3311 = vsel %vm1188, %v3302, %v3310
      %v3312 = vrot.slane %v3310, 4
      %v3314 = vshrl.u32 %v342, 16
      %v3316 = vrot.slane %v3314, 5
      %v3317 = vshll.u32 %v342, 16
      %v3319 = vrot.slane %v3317, 6
      %v3320 = vor.u32 %v3316, %v3319
      %v3321 = vsel %vm1188, %v3312, %v3320
      %v3323 = vshrl.u32 %v343, 16
      %v3325 = vrot.slane %v3323, 5
      %v3326 = vshll.u32 %v343, 16
      %v3328 = vrot.slane %v3326, 6
      %v3329 = vor.u32 %v3325, %v3328
      %v3330 = vrot.slane %v3329, 4
      %v3332 = vshrl.u32 %v344, 16
      %v3334 = vrot.slane %v3332, 5
      %v3335 = vshll.u32 %v344, 16
      %v3337 = vrot.slane %v3335, 6
      %v3338 = vor.u32 %v3334, %v3337
      %v3339 = vsel %vm1188, %v3330, %v3338
      %v3340 = vrot.slane %v3338, 4
      %v3342 = vshrl.u32 %v345, 16
      %v3344 = vrot.slane %v3342, 5
      %v3345 = vshll.u32 %v345, 16
      %v3347 = vrot.slane %v3345, 6
      %v3348 = vor.u32 %v3344, %v3347
      %v3349 = vsel %vm1188, %v3340, %v3348
      %v3351 = vshrl.u32 %v346, 16
      %v3353 = vrot.slane %v3351, 5
      %v3354 = vshll.u32 %v346, 16
      %v3356 = vrot.slane %v3354, 6
      %v3357 = vor.u32 %v3353, %v3356
      %v3358 = vrot.slane %v3357, 4
      %v3360 = vshrl.u32 %v347, 16
      %v3362 = vrot.slane %v3360, 5
      %v3363 = vshll.u32 %v347, 16
      %v3365 = vrot.slane %v3363, 6
      %v3366 = vor.u32 %v3362, %v3365
      %v3367 = vsel %vm1188, %v3358, %v3366
      %v3368 = vrot.slane %v3366, 4
      %v3370 = vshrl.u32 %v348, 16
      %v3372 = vrot.slane %v3370, 5
      %v3373 = vshll.u32 %v348, 16
      %v3375 = vrot.slane %v3373, 6
      %v3376 = vor.u32 %v3372, %v3375
      %v3377 = vsel %vm1188, %v3368, %v3376
      %s3378 = scalar_lea.vmem %s1, 18
      %v3379 = vld [vmem:[%s3378] sm:$0x3]
      %v3380 = vunpack.c.l.b16 %v3171
      %v3381 = vunpack.c.l.b16 %v3181
      %v3382 = vunpack.c.l.b16 %v3199
      %v3383 = vunpack.c.l.b16 %v3209
      %v3384 = vunpack.c.l.b16 %v3227
      %v3385 = vunpack.c.l.b16 %v3237
      %v3386 = vunpack.c.l.b16 %v3255
      %v3387 = vunpack.c.l.b16 %v3265
      %v3388 = vunpack.c.l.b16 %v3283
      %v3389 = vunpack.c.l.b16 %v3293
      %v3390 = vunpack.c.l.b16 %v3311
      %v3391 = vunpack.c.l.b16 %v3321
      %v3392 = vunpack.c.l.b16 %v3339
      %v3393 = vunpack.c.l.b16 %v3349
      %v3394 = vunpack.c.l.b16 %v3367
      %v3395 = vunpack.c.l.b16 %v3377
      %v3396 = vpack.c.b16 %v3381, %v3380
      %v3397 = vpack.c.b16 %v3383, %v3382
      %v3398 = vpack.c.b16 %v3385, %v3384
      %v3399 = vpack.c.b16 %v3387, %v3386
      %v3400 = vpack.c.b16 %v3389, %v3388
      %v3401 = vpack.c.b16 %v3391, %v3390
      %v3402 = vpack.c.b16 %v3393, %v3392
      %v3403 = vpack.c.b16 %v3395, %v3394
      %v3405 = vsel %vm655, %v3396, 0
      %v3408 = vsel %vm655, %v3397, 0
      %v3411 = vsel %vm655, %v3398, 0
      %v3414 = vsel %vm655, %v3399, 0
      %v3417 = vsel %vm655, %v3400, 0
      %v3420 = vsel %vm655, %v3401, 0
      %v3423 = vsel %vm655, %v3402, 0
      %v3426 = vsel %vm655, %v3403, 0
      %v3429 = vsel %vm680, %v3379, 0
      %3431 = vmatprep.subr.bf16.mxu0 0
      %3432 = vmatpush1.bf16.msra.mxu0 0
      %3433 = vmatprep.subr.bf16.mxu0 0
      %3434 = vmatpush1.bf16.msra.mxu0 0
      %3435 = vmatprep.subr.bf16.mxu0 0
      %3436 = vmatpush1.bf16.msra.mxu0 0
      %3437 = vmatprep.subr.bf16.mxu0 0
      %3438 = vmatpush1.bf16.msra.mxu0 0
      %3439 = vmatprep.subr.bf16.mxu0 0
      %3440 = vmatpush1.bf16.msra.mxu0 0
      %3441 = vmatprep.subr.bf16.mxu0 0
      %3442 = vmatpush1.bf16.msra.mxu0 0
      %3443 = vmatprep.subr.bf16.mxu0 0
      %3444 = vmatpush1.bf16.msra.mxu0 0
      %3445 = vmatprep.subr.bf16.mxu0 0
      %3446 = vmatpush1.bf16.msra.mxu0 %v3429
      %3447 = vmatprep.subr.bf16.mxu0 0
      %3448 = vmatpush2.bf16.msra.mxu0 0
      %3449 = vmatprep.subr.bf16.mxu0 0
      %3450 = vmatpush2.bf16.msra.mxu0 0
      %3451 = vmatprep.subr.bf16.mxu0 0
      %3452 = vmatpush2.bf16.msra.mxu0 0
      %3453 = vmatprep.subr.bf16.mxu0 0
      %3454 = vmatpush2.bf16.msra.mxu0 0
      %3455 = vmatprep.subr.bf16.mxu0 0
      %3456 = vmatpush2.bf16.msra.mxu0 0
      %3457 = vmatprep.subr.bf16.mxu0 0
      %3458 = vmatpush2.bf16.msra.mxu0 0
      %3459 = vmatprep.subr.bf16.mxu0 0
      %3460 = vmatpush2.bf16.msra.mxu0 0
      %3461 = vmatprep.subr.bf16.mxu0 0
      %3462 = vmatpush2.bf16.msra.mxu0 0
      %3463 = vmatprep.mubr.bf16.mxu0 0
      %3464 = vmatmul.mubr.bf16.gmra.mxu0 %v3405
      %v3465 = vpop.f32.mrf.mxu0
      %v3466 = vadd.f32 0.0, %v3465
      %v3467 = vpop.f32.mrf.mxu0
      %v3468 = vpop.f32.mrf.mxu0
      %v3469 = vadd.f32 0.0, %v3468
      %v3470 = vpop.f32.mrf.mxu0
      %3471 = vmatprep.mubr.bf16.mxu0 0
      %3472 = vmatmul.mubr.bf16.gmra.mxu0 %v3408
      %v3473 = vpop.f32.mrf.mxu0
      %v3474 = vadd.f32 0.0, %v3473
      %v3475 = vpop.f32.mrf.mxu0
      %v3476 = vpop.f32.mrf.mxu0
      %v3477 = vadd.f32 0.0, %v3476
      %v3478 = vpop.f32.mrf.mxu0
      %3479 = vmatprep.mubr.bf16.mxu0 0
      %3480 = vmatmul.mubr.bf16.gmra.mxu0 %v3411
      %v3481 = vpop.f32.mrf.mxu0
      %v3482 = vadd.f32 0.0, %v3481
      %v3483 = vpop.f32.mrf.mxu0
      %v3484 = vpop.f32.mrf.mxu0
      %v3485 = vadd.f32 0.0, %v3484
      %v3486 = vpop.f32.mrf.mxu0
      %3487 = vmatprep.mubr.bf16.mxu0 0
      %3488 = vmatmul.mubr.bf16.gmra.mxu0 %v3414
      %v3489 = vpop.f32.mrf.mxu0
      %v3490 = vadd.f32 0.0, %v3489
      %v3491 = vpop.f32.mrf.mxu0
      %v3492 = vpop.f32.mrf.mxu0
      %v3493 = vadd.f32 0.0, %v3492
      %v3494 = vpop.f32.mrf.mxu0
      %3495 = vmatprep.mubr.bf16.mxu0 0
      %3496 = vmatmul.mubr.bf16.gmra.mxu0 %v3417
      %v3497 = vpop.f32.mrf.mxu0
      %v3498 = vadd.f32 0.0, %v3497
      %v3499 = vpop.f32.mrf.mxu0
      %v3500 = vpop.f32.mrf.mxu0
      %v3501 = vadd.f32 0.0, %v3500
      %v3502 = vpop.f32.mrf.mxu0
      %3503 = vmatprep.mubr.bf16.mxu0 0
      %3504 = vmatmul.mubr.bf16.gmra.mxu0 %v3420
      %v3505 = vpop.f32.mrf.mxu0
      %v3506 = vadd.f32 0.0, %v3505
      %v3507 = vpop.f32.mrf.mxu0
      %v3508 = vpop.f32.mrf.mxu0
      %v3509 = vadd.f32 0.0, %v3508
      %v3510 = vpop.f32.mrf.mxu0
      %3511 = vmatprep.mubr.bf16.mxu0 0
      %3512 = vmatmul.mubr.bf16.gmra.mxu0 %v3423
      %v3513 = vpop.f32.mrf.mxu0
      %v3514 = vadd.f32 0.0, %v3513
      %v3515 = vpop.f32.mrf.mxu0
      %v3516 = vpop.f32.mrf.mxu0
      %v3517 = vadd.f32 0.0, %v3516
      %v3518 = vpop.f32.mrf.mxu0
      %3519 = vmatprep.mubr.bf16.mxu0 0
      %3520 = vmatmul.mubr.bf16.gmra.mxu0 %v3426
      %v3521 = vpop.f32.mrf.mxu0
      %v3522 = vadd.f32 0.0, %v3521
      %v3523 = vpop.f32.mrf.mxu0
      %v3524 = vpop.f32.mrf.mxu0
      %v3525 = vadd.f32 0.0, %v3524
      %v3526 = vpop.f32.mrf.mxu0
      %3527 = vdwg.mxu0
      %v3528 = vadd.f32 %v3138, %v3466
      %v3529 = vadd.f32 %v3139, %v3469
      %v3530 = vadd.f32 %v3140, %v3474
      %v3531 = vadd.f32 %v3141, %v3477
      %v3532 = vadd.f32 %v3142, %v3482
      %v3533 = vadd.f32 %v3143, %v3485
      %v3534 = vadd.f32 %v3144, %v3490
      %v3535 = vadd.f32 %v3145, %v3493
      %v3536 = vadd.f32 %v3146, %v3498
      %v3537 = vadd.f32 %v3147, %v3501
      %v3538 = vadd.f32 %v3148, %v3506
      %v3539 = vadd.f32 %v3149, %v3509
      %v3540 = vadd.f32 %v3150, %v3514
      %v3541 = vadd.f32 %v3151, %v3517
      %v3542 = vadd.f32 %v3152, %v3522
      %v3543 = vadd.f32 %v3153, %v3525
      %s3544 = scalar_lea.vmem %s1, 20
      %v3545 = vld [vmem:[%s3544] sm:$0x3]
      %v3547 = vsel %vm680, %v3545, 0
      %3549 = vmatprep.subr.bf16.mxu0 0
      %3550 = vmatpush1.bf16.msra.mxu0 0
      %3551 = vmatprep.subr.bf16.mxu0 0
      %3552 = vmatpush1.bf16.msra.mxu0 0
      %3553 = vmatprep.subr.bf16.mxu0 0
      %3554 = vmatpush1.bf16.msra.mxu0 0
      %3555 = vmatprep.subr.bf16.mxu0 0
      %3556 = vmatpush1.bf16.msra.mxu0 0
      %3557 = vmatprep.subr.bf16.mxu0 0
      %3558 = vmatpush1.bf16.msra.mxu0 0
      %3559 = vmatprep.subr.bf16.mxu0 0
      %3560 = vmatpush1.bf16.msra.mxu0 0
      %3561 = vmatprep.subr.bf16.mxu0 0
      %3562 = vmatpush1.bf16.msra.mxu0 0
      %3563 = vmatprep.subr.bf16.mxu0 0
      %3564 = vmatpush1.bf16.msra.mxu0 %v3547
      %3565 = vmatprep.subr.bf16.mxu0 0
      %3566 = vmatpush2.bf16.msra.mxu0 0
      %3567 = vmatprep.subr.bf16.mxu0 0
      %3568 = vmatpush2.bf16.msra.mxu0 0
      %3569 = vmatprep.subr.bf16.mxu0 0
      %3570 = vmatpush2.bf16.msra.mxu0 0
      %3571 = vmatprep.subr.bf16.mxu0 0
      %3572 = vmatpush2.bf16.msra.mxu0 0
      %3573 = vmatprep.subr.bf16.mxu0 0
      %3574 = vmatpush2.bf16.msra.mxu0 0
      %3575 = vmatprep.subr.bf16.mxu0 0
      %3576 = vmatpush2.bf16.msra.mxu0 0
      %3577 = vmatprep.subr.bf16.mxu0 0
      %3578 = vmatpush2.bf16.msra.mxu0 0
      %3579 = vmatprep.subr.bf16.mxu0 0
      %3580 = vmatpush2.bf16.msra.mxu0 0
      %3581 = vmatprep.mubr.bf16.mxu0 0
      %3582 = vmatmul.mubr.bf16.gmra.mxu0 %v1400
      %v3583 = vpop.f32.mrf.mxu0
      %v3584 = vadd.f32 0.0, %v3583
      %v3585 = vpop.f32.mrf.mxu0
      %v3586 = vpop.f32.mrf.mxu0
      %v3587 = vadd.f32 0.0, %v3586
      %v3588 = vpop.f32.mrf.mxu0
      %3589 = vmatprep.mubr.bf16.mxu0 0
      %3590 = vmatmul.mubr.bf16.gmra.mxu0 %v1403
      %v3591 = vpop.f32.mrf.mxu0
      %v3592 = vadd.f32 0.0, %v3591
      %v3593 = vpop.f32.mrf.mxu0
      %v3594 = vpop.f32.mrf.mxu0
      %v3595 = vadd.f32 0.0, %v3594
      %v3596 = vpop.f32.mrf.mxu0
      %3597 = vmatprep.mubr.bf16.mxu0 0
      %3598 = vmatmul.mubr.bf16.gmra.mxu0 %v1406
      %v3599 = vpop.f32.mrf.mxu0
      %v3600 = vadd.f32 0.0, %v3599
      %v3601 = vpop.f32.mrf.mxu0
      %v3602 = vpop.f32.mrf.mxu0
      %v3603 = vadd.f32 0.0, %v3602
      %v3604 = vpop.f32.mrf.mxu0
      %3605 = vmatprep.mubr.bf16.mxu0 0
      %3606 = vmatmul.mubr.bf16.gmra.mxu0 %v1409
      %v3607 = vpop.f32.mrf.mxu0
      %v3608 = vadd.f32 0.0, %v3607
      %v3609 = vpop.f32.mrf.mxu0
      %v3610 = vpop.f32.mrf.mxu0
      %v3611 = vadd.f32 0.0, %v3610
      %v3612 = vpop.f32.mrf.mxu0
      %3613 = vmatprep.mubr.bf16.mxu0 0
      %3614 = vmatmul.mubr.bf16.gmra.mxu0 %v1412
      %v3615 = vpop.f32.mrf.mxu0
      %v3616 = vadd.f32 0.0, %v3615
      %v3617 = vpop.f32.mrf.mxu0
      %v3618 = vpop.f32.mrf.mxu0
      %v3619 = vadd.f32 0.0, %v3618
      %v3620 = vpop.f32.mrf.mxu0
      %3621 = vmatprep.mubr.bf16.mxu0 0
      %3622 = vmatmul.mubr.bf16.gmra.mxu0 %v1415
      %v3623 = vpop.f32.mrf.mxu0
      %v3624 = vadd.f32 0.0, %v3623
      %v3625 = vpop.f32.mrf.mxu0
      %v3626 = vpop.f32.mrf.mxu0
      %v3627 = vadd.f32 0.0, %v3626
      %v3628 = vpop.f32.mrf.mxu0
      %3629 = vmatprep.mubr.bf16.mxu0 0
      %3630 = vmatmul.mubr.bf16.gmra.mxu0 %v1418
      %v3631 = vpop.f32.mrf.mxu0
      %v3632 = vadd.f32 0.0, %v3631
      %v3633 = vpop.f32.mrf.mxu0
      %v3634 = vpop.f32.mrf.mxu0
      %v3635 = vadd.f32 0.0, %v3634
      %v3636 = vpop.f32.mrf.mxu0
      %3637 = vmatprep.mubr.bf16.mxu0 0
      %3638 = vmatmul.mubr.bf16.gmra.mxu0 %v1421
      %v3639 = vpop.f32.mrf.mxu0
      %v3640 = vadd.f32 0.0, %v3639
      %v3641 = vpop.f32.mrf.mxu0
      %v3642 = vpop.f32.mrf.mxu0
      %v3643 = vadd.f32 0.0, %v3642
      %v3644 = vpop.f32.mrf.mxu0
      %3645 = vdwg.mxu0
      %v3646 = vadd.f32 %v3528, %v3584
      %v3647 = vadd.f32 %v3529, %v3587
      %v3648 = vadd.f32 %v3530, %v3592
      %v3649 = vadd.f32 %v3531, %v3595
      %v3650 = vadd.f32 %v3532, %v3600
      %v3651 = vadd.f32 %v3533, %v3603
      %v3652 = vadd.f32 %v3534, %v3608
      %v3653 = vadd.f32 %v3535, %v3611
      %v3654 = vadd.f32 %v3536, %v3616
      %v3655 = vadd.f32 %v3537, %v3619
      %v3656 = vadd.f32 %v3538, %v3624
      %v3657 = vadd.f32 %v3539, %v3627
      %v3658 = vadd.f32 %v3540, %v3632
      %v3659 = vadd.f32 %v3541, %v3635
      %v3660 = vadd.f32 %v3542, %v3640
      %v3661 = vadd.f32 %v3543, %v3643
      %v3663 = vshrl.u32 %v353, 16
      %v3665 = vrot.slane %v3663, 5
      %v3666 = vshll.u32 %v353, 16
      %v3668 = vrot.slane %v3666, 6
      %v3669 = vor.u32 %v3665, %v3668
      %v3670 = vrot.slane %v3669, 4
      %v3672 = vshrl.u32 %v354, 16
      %v3674 = vrot.slane %v3672, 5
      %v3675 = vshll.u32 %v354, 16
      %v3677 = vrot.slane %v3675, 6
      %v3678 = vor.u32 %v3674, %v3677
      %v3679 = vsel %vm1188, %v3670, %v3678
      %v3680 = vrot.slane %v3678, 4
      %v3682 = vshrl.u32 %v355, 16
      %v3684 = vrot.slane %v3682, 5
      %v3685 = vshll.u32 %v355, 16
      %v3687 = vrot.slane %v3685, 6
      %v3688 = vor.u32 %v3684, %v3687
      %v3689 = vsel %vm1188, %v3680, %v3688
      %v3691 = vshrl.u32 %v356, 16
      %v3693 = vrot.slane %v3691, 5
      %v3694 = vshll.u32 %v356, 16
      %v3696 = vrot.slane %v3694, 6
      %v3697 = vor.u32 %v3693, %v3696
      %v3698 = vrot.slane %v3697, 4
      %v3700 = vshrl.u32 %v357, 16
      %v3702 = vrot.slane %v3700, 5
      %v3703 = vshll.u32 %v357, 16
      %v3705 = vrot.slane %v3703, 6
      %v3706 = vor.u32 %v3702, %v3705
      %v3707 = vsel %vm1188, %v3698, %v3706
      %v3708 = vrot.slane %v3706, 4
      %v3710 = vshrl.u32 %v358, 16
      %v3712 = vrot.slane %v3710, 5
      %v3713 = vshll.u32 %v358, 16
      %v3715 = vrot.slane %v3713, 6
      %v3716 = vor.u32 %v3712, %v3715
      %v3717 = vsel %vm1188, %v3708, %v3716
      %v3719 = vshrl.u32 %v359, 16
      %v3721 = vrot.slane %v3719, 5
      %v3722 = vshll.u32 %v359, 16
      %v3724 = vrot.slane %v3722, 6
      %v3725 = vor.u32 %v3721, %v3724
      %v3726 = vrot.slane %v3725, 4
      %v3728 = vshrl.u32 %v360, 16
      %v3730 = vrot.slane %v3728, 5
      %v3731 = vshll.u32 %v360, 16
      %v3733 = vrot.slane %v3731, 6
      %v3734 = vor.u32 %v3730, %v3733
      %v3735 = vsel %vm1188, %v3726, %v3734
      %v3736 = vrot.slane %v3734, 4
      %v3738 = vshrl.u32 %v361, 16
      %v3740 = vrot.slane %v3738, 5
      %v3741 = vshll.u32 %v361, 16
      %v3743 = vrot.slane %v3741, 6
      %v3744 = vor.u32 %v3740, %v3743
      %v3745 = vsel %vm1188, %v3736, %v3744
      %v3747 = vshrl.u32 %v362, 16
      %v3749 = vrot.slane %v3747, 5
      %v3750 = vshll.u32 %v362, 16
      %v3752 = vrot.slane %v3750, 6
      %v3753 = vor.u32 %v3749, %v3752
      %v3754 = vrot.slane %v3753, 4
      %v3756 = vshrl.u32 %v363, 16
      %v3758 = vrot.slane %v3756, 5
      %v3759 = vshll.u32 %v363, 16
      %v3761 = vrot.slane %v3759, 6
      %v3762 = vor.u32 %v3758, %v3761
      %v3763 = vsel %vm1188, %v3754, %v3762
      %v3764 = vrot.slane %v3762, 4
      %v3766 = vshrl.u32 %v364, 16
      %v3768 = vrot.slane %v3766, 5
      %v3769 = vshll.u32 %v364, 16
      %v3771 = vrot.slane %v3769, 6
      %v3772 = vor.u32 %v3768, %v3771
      %v3773 = vsel %vm1188, %v3764, %v3772
      %v3775 = vshrl.u32 %v365, 16
      %v3777 = vrot.slane %v3775, 5
      %v3778 = vshll.u32 %v365, 16
      %v3780 = vrot.slane %v3778, 6
      %v3781 = vor.u32 %v3777, %v3780
      %v3782 = vrot.slane %v3781, 4
      %v3784 = vshrl.u32 %v366, 16
      %v3786 = vrot.slane %v3784, 5
      %v3787 = vshll.u32 %v366, 16
      %v3789 = vrot.slane %v3787, 6
      %v3790 = vor.u32 %v3786, %v3789
      %v3791 = vsel %vm1188, %v3782, %v3790
      %v3792 = vrot.slane %v3790, 4
      %v3794 = vshrl.u32 %v367, 16
      %v3796 = vrot.slane %v3794, 5
      %v3797 = vshll.u32 %v367, 16
      %v3799 = vrot.slane %v3797, 6
      %v3800 = vor.u32 %v3796, %v3799
      %v3801 = vsel %vm1188, %v3792, %v3800
      %v3803 = vshrl.u32 %v368, 16
      %v3805 = vrot.slane %v3803, 5
      %v3806 = vshll.u32 %v368, 16
      %v3808 = vrot.slane %v3806, 6
      %v3809 = vor.u32 %v3805, %v3808
      %v3810 = vrot.slane %v3809, 4
      %v3812 = vshrl.u32 %v369, 16
      %v3814 = vrot.slane %v3812, 5
      %v3815 = vshll.u32 %v369, 16
      %v3817 = vrot.slane %v3815, 6
      %v3818 = vor.u32 %v3814, %v3817
      %v3819 = vsel %vm1188, %v3810, %v3818
      %v3820 = vrot.slane %v3818, 4
      %v3822 = vshrl.u32 %v370, 16
      %v3824 = vrot.slane %v3822, 5
      %v3825 = vshll.u32 %v370, 16
      %v3827 = vrot.slane %v3825, 6
      %v3828 = vor.u32 %v3824, %v3827
      %v3829 = vsel %vm1188, %v3820, %v3828
      %v3831 = vshrl.u32 %v371, 16
      %v3833 = vrot.slane %v3831, 5
      %v3834 = vshll.u32 %v371, 16
      %v3836 = vrot.slane %v3834, 6
      %v3837 = vor.u32 %v3833, %v3836
      %v3838 = vrot.slane %v3837, 4
      %v3840 = vshrl.u32 %v372, 16
      %v3842 = vrot.slane %v3840, 5
      %v3843 = vshll.u32 %v372, 16
      %v3845 = vrot.slane %v3843, 6
      %v3846 = vor.u32 %v3842, %v3845
      %v3847 = vsel %vm1188, %v3838, %v3846
      %v3848 = vrot.slane %v3846, 4
      %v3850 = vshrl.u32 %v373, 16
      %v3852 = vrot.slane %v3850, 5
      %v3853 = vshll.u32 %v373, 16
      %v3855 = vrot.slane %v3853, 6
      %v3856 = vor.u32 %v3852, %v3855
      %v3857 = vsel %vm1188, %v3848, %v3856
      %v3859 = vshrl.u32 %v374, 16
      %v3861 = vrot.slane %v3859, 5
      %v3862 = vshll.u32 %v374, 16
      %v3864 = vrot.slane %v3862, 6
      %v3865 = vor.u32 %v3861, %v3864
      %v3866 = vrot.slane %v3865, 4
      %v3868 = vshrl.u32 %v375, 16
      %v3870 = vrot.slane %v3868, 5
      %v3871 = vshll.u32 %v375, 16
      %v3873 = vrot.slane %v3871, 6
      %v3874 = vor.u32 %v3870, %v3873
      %v3875 = vsel %vm1188, %v3866, %v3874
      %v3876 = vrot.slane %v3874, 4
      %v3878 = vshrl.u32 %v376, 16
      %v3880 = vrot.slane %v3878, 5
      %v3881 = vshll.u32 %v376, 16
      %v3883 = vrot.slane %v3881, 6
      %v3884 = vor.u32 %v3880, %v3883
      %v3885 = vsel %vm1188, %v3876, %v3884
      %s3886 = scalar_lea.vmem %s1, 22
      %v3887 = vld [vmem:[%s3886] sm:$0x3]
      %v3888 = vunpack.c.l.b16 %v3679
      %v3889 = vunpack.c.l.b16 %v3689
      %v3890 = vunpack.c.l.b16 %v3707
      %v3891 = vunpack.c.l.b16 %v3717
      %v3892 = vunpack.c.l.b16 %v3735
      %v3893 = vunpack.c.l.b16 %v3745
      %v3894 = vunpack.c.l.b16 %v3763
      %v3895 = vunpack.c.l.b16 %v3773
      %v3896 = vunpack.c.l.b16 %v3791
      %v3897 = vunpack.c.l.b16 %v3801
      %v3898 = vunpack.c.l.b16 %v3819
      %v3899 = vunpack.c.l.b16 %v3829
      %v3900 = vunpack.c.l.b16 %v3847
      %v3901 = vunpack.c.l.b16 %v3857
      %v3902 = vunpack.c.l.b16 %v3875
      %v3903 = vunpack.c.l.b16 %v3885
      %v3904 = vpack.c.b16 %v3889, %v3888
      %v3905 = vpack.c.b16 %v3891, %v3890
      %v3906 = vpack.c.b16 %v3893, %v3892
      %v3907 = vpack.c.b16 %v3895, %v3894
      %v3908 = vpack.c.b16 %v3897, %v3896
      %v3909 = vpack.c.b16 %v3899, %v3898
      %v3910 = vpack.c.b16 %v3901, %v3900
      %v3911 = vpack.c.b16 %v3903, %v3902
      %v3913 = vsel %vm655, %v3904, 0
      %v3916 = vsel %vm655, %v3905, 0
      %v3919 = vsel %vm655, %v3906, 0
      %v3922 = vsel %vm655, %v3907, 0
      %v3925 = vsel %vm655, %v3908, 0
      %v3928 = vsel %vm655, %v3909, 0
      %v3931 = vsel %vm655, %v3910, 0
      %v3934 = vsel %vm655, %v3911, 0
      %v3937 = vsel %vm680, %v3887, 0
      %3939 = vmatprep.subr.bf16.mxu0 0
      %3940 = vmatpush1.bf16.msra.mxu0 0
      %3941 = vmatprep.subr.bf16.mxu0 0
      %3942 = vmatpush1.bf16.msra.mxu0 0
      %3943 = vmatprep.subr.bf16.mxu0 0
      %3944 = vmatpush1.bf16.msra.mxu0 0
      %3945 = vmatprep.subr.bf16.mxu0 0
      %3946 = vmatpush1.bf16.msra.mxu0 0
      %3947 = vmatprep.subr.bf16.mxu0 0
      %3948 = vmatpush1.bf16.msra.mxu0 0
      %3949 = vmatprep.subr.bf16.mxu0 0
      %3950 = vmatpush1.bf16.msra.mxu0 0
      %3951 = vmatprep.subr.bf16.mxu0 0
      %3952 = vmatpush1.bf16.msra.mxu0 0
      %3953 = vmatprep.subr.bf16.mxu0 0
      %3954 = vmatpush1.bf16.msra.mxu0 %v3937
      %3955 = vmatprep.subr.bf16.mxu0 0
      %3956 = vmatpush2.bf16.msra.mxu0 0
      %3957 = vmatprep.subr.bf16.mxu0 0
      %3958 = vmatpush2.bf16.msra.mxu0 0
      %3959 = vmatprep.subr.bf16.mxu0 0
      %3960 = vmatpush2.bf16.msra.mxu0 0
      %3961 = vmatprep.subr.bf16.mxu0 0
      %3962 = vmatpush2.bf16.msra.mxu0 0
      %3963 = vmatprep.subr.bf16.mxu0 0
      %3964 = vmatpush2.bf16.msra.mxu0 0
      %3965 = vmatprep.subr.bf16.mxu0 0
      %3966 = vmatpush2.bf16.msra.mxu0 0
      %3967 = vmatprep.subr.bf16.mxu0 0
      %3968 = vmatpush2.bf16.msra.mxu0 0
      %3969 = vmatprep.subr.bf16.mxu0 0
      %3970 = vmatpush2.bf16.msra.mxu0 0
      %3971 = vmatprep.mubr.bf16.mxu0 0
      %3972 = vmatmul.mubr.bf16.gmra.mxu0 %v3913
      %v3973 = vpop.f32.mrf.mxu0
      %v3974 = vadd.f32 0.0, %v3973
      %v3975 = vpop.f32.mrf.mxu0
      %v3976 = vpop.f32.mrf.mxu0
      %v3977 = vadd.f32 0.0, %v3976
      %v3978 = vpop.f32.mrf.mxu0
      %3979 = vmatprep.mubr.bf16.mxu0 0
      %3980 = vmatmul.mubr.bf16.gmra.mxu0 %v3916
      %v3981 = vpop.f32.mrf.mxu0
      %v3982 = vadd.f32 0.0, %v3981
      %v3983 = vpop.f32.mrf.mxu0
      %v3984 = vpop.f32.mrf.mxu0
      %v3985 = vadd.f32 0.0, %v3984
      %v3986 = vpop.f32.mrf.mxu0
      %3987 = vmatprep.mubr.bf16.mxu0 0
      %3988 = vmatmul.mubr.bf16.gmra.mxu0 %v3919
      %v3989 = vpop.f32.mrf.mxu0
      %v3990 = vadd.f32 0.0, %v3989
      %v3991 = vpop.f32.mrf.mxu0
      %v3992 = vpop.f32.mrf.mxu0
      %v3993 = vadd.f32 0.0, %v3992
      %v3994 = vpop.f32.mrf.mxu0
      %3995 = vmatprep.mubr.bf16.mxu0 0
      %3996 = vmatmul.mubr.bf16.gmra.mxu0 %v3922
      %v3997 = vpop.f32.mrf.mxu0
      %v3998 = vadd.f32 0.0, %v3997
      %v3999 = vpop.f32.mrf.mxu0
      %v4000 = vpop.f32.mrf.mxu0
      %v4001 = vadd.f32 0.0, %v4000
      %v4002 = vpop.f32.mrf.mxu0
      %4003 = vmatprep.mubr.bf16.mxu0 0
      %4004 = vmatmul.mubr.bf16.gmra.mxu0 %v3925
      %v4005 = vpop.f32.mrf.mxu0
      %v4006 = vadd.f32 0.0, %v4005
      %v4007 = vpop.f32.mrf.mxu0
      %v4008 = vpop.f32.mrf.mxu0
      %v4009 = vadd.f32 0.0, %v4008
      %v4010 = vpop.f32.mrf.mxu0
      %4011 = vmatprep.mubr.bf16.mxu0 0
      %4012 = vmatmul.mubr.bf16.gmra.mxu0 %v3928
      %v4013 = vpop.f32.mrf.mxu0
      %v4014 = vadd.f32 0.0, %v4013
      %v4015 = vpop.f32.mrf.mxu0
      %v4016 = vpop.f32.mrf.mxu0
      %v4017 = vadd.f32 0.0, %v4016
      %v4018 = vpop.f32.mrf.mxu0
      %4019 = vmatprep.mubr.bf16.mxu0 0
      %4020 = vmatmul.mubr.bf16.gmra.mxu0 %v3931
      %v4021 = vpop.f32.mrf.mxu0
      %v4022 = vadd.f32 0.0, %v4021
      %v4023 = vpop.f32.mrf.mxu0
      %v4024 = vpop.f32.mrf.mxu0
      %v4025 = vadd.f32 0.0, %v4024
      %v4026 = vpop.f32.mrf.mxu0
      %4027 = vmatprep.mubr.bf16.mxu0 0
      %4028 = vmatmul.mubr.bf16.gmra.mxu0 %v3934
      %v4029 = vpop.f32.mrf.mxu0
      %v4030 = vadd.f32 0.0, %v4029
      %v4031 = vpop.f32.mrf.mxu0
      %v4032 = vpop.f32.mrf.mxu0
      %v4033 = vadd.f32 0.0, %v4032
      %v4034 = vpop.f32.mrf.mxu0
      %4035 = vdwg.mxu0
      %v4036 = vadd.f32 %v3646, %v3974
      %v4037 = vadd.f32 %v3647, %v3977
      %v4038 = vadd.f32 %v3648, %v3982
      %v4039 = vadd.f32 %v3649, %v3985
      %v4040 = vadd.f32 %v3650, %v3990
      %v4041 = vadd.f32 %v3651, %v3993
      %v4042 = vadd.f32 %v3652, %v3998
      %v4043 = vadd.f32 %v3653, %v4001
      %v4044 = vadd.f32 %v3654, %v4006
      %v4045 = vadd.f32 %v3655, %v4009
      %v4046 = vadd.f32 %v3656, %v4014
      %v4047 = vadd.f32 %v3657, %v4017
      %v4048 = vadd.f32 %v3658, %v4022
      %v4049 = vadd.f32 %v3659, %v4025
      %v4050 = vadd.f32 %v3660, %v4030
      %v4051 = vadd.f32 %v3661, %v4033
      %v4053 = vshrl.u32 %v381, 16
      %v4055 = vrot.slane %v4053, 5
      %v4056 = vshll.u32 %v381, 16
      %v4058 = vrot.slane %v4056, 6
      %v4059 = vor.u32 %v4055, %v4058
      %v4060 = vrot.slane %v4059, 4
      %v4062 = vshrl.u32 %v382, 16
      %v4064 = vrot.slane %v4062, 5
      %v4065 = vshll.u32 %v382, 16
      %v4067 = vrot.slane %v4065, 6
      %v4068 = vor.u32 %v4064, %v4067
      %v4069 = vsel %vm1188, %v4060, %v4068
      %v4070 = vrot.slane %v4068, 4
      %v4072 = vshrl.u32 %v383, 16
      %v4074 = vrot.slane %v4072, 5
      %v4075 = vshll.u32 %v383, 16
      %v4077 = vrot.slane %v4075, 6
      %v4078 = vor.u32 %v4074, %v4077
      %v4079 = vsel %vm1188, %v4070, %v4078
      %v4081 = vshrl.u32 %v384, 16
      %v4083 = vrot.slane %v4081, 5
      %v4084 = vshll.u32 %v384, 16
      %v4086 = vrot.slane %v4084, 6
      %v4087 = vor.u32 %v4083, %v4086
      %v4088 = vrot.slane %v4087, 4
      %v4090 = vshrl.u32 %v385, 16
      %v4092 = vrot.slane %v4090, 5
      %v4093 = vshll.u32 %v385, 16
      %v4095 = vrot.slane %v4093, 6
      %v4096 = vor.u32 %v4092, %v4095
      %v4097 = vsel %vm1188, %v4088, %v4096
      %v4098 = vrot.slane %v4096, 4
      %v4100 = vshrl.u32 %v386, 16
      %v4102 = vrot.slane %v4100, 5
      %v4103 = vshll.u32 %v386, 16
      %v4105 = vrot.slane %v4103, 6
      %v4106 = vor.u32 %v4102, %v4105
      %v4107 = vsel %vm1188, %v4098, %v4106
      %v4109 = vshrl.u32 %v387, 16
      %v4111 = vrot.slane %v4109, 5
      %v4112 = vshll.u32 %v387, 16
      %v4114 = vrot.slane %v4112, 6
      %v4115 = vor.u32 %v4111, %v4114
      %v4116 = vrot.slane %v4115, 4
      %v4118 = vshrl.u32 %v388, 16
      %v4120 = vrot.slane %v4118, 5
      %v4121 = vshll.u32 %v388, 16
      %v4123 = vrot.slane %v4121, 6
      %v4124 = vor.u32 %v4120, %v4123
      %v4125 = vsel %vm1188, %v4116, %v4124
      %v4126 = vrot.slane %v4124, 4
      %v4128 = vshrl.u32 %v389, 16
      %v4130 = vrot.slane %v4128, 5
      %v4131 = vshll.u32 %v389, 16
      %v4133 = vrot.slane %v4131, 6
      %v4134 = vor.u32 %v4130, %v4133
      %v4135 = vsel %vm1188, %v4126, %v4134
      %v4137 = vshrl.u32 %v390, 16
      %v4139 = vrot.slane %v4137, 5
      %v4140 = vshll.u32 %v390, 16
      %v4142 = vrot.slane %v4140, 6
      %v4143 = vor.u32 %v4139, %v4142
      %v4144 = vrot.slane %v4143, 4
      %v4146 = vshrl.u32 %v391, 16
      %v4148 = vrot.slane %v4146, 5
      %v4149 = vshll.u32 %v391, 16
      %v4151 = vrot.slane %v4149, 6
      %v4152 = vor.u32 %v4148, %v4151
      %v4153 = vsel %vm1188, %v4144, %v4152
      %v4154 = vrot.slane %v4152, 4
      %v4156 = vshrl.u32 %v392, 16
      %v4158 = vrot.slane %v4156, 5
      %v4159 = vshll.u32 %v392, 16
      %v4161 = vrot.slane %v4159, 6
      %v4162 = vor.u32 %v4158, %v4161
      %v4163 = vsel %vm1188, %v4154, %v4162
      %v4165 = vshrl.u32 %v393, 16
      %v4167 = vrot.slane %v4165, 5
      %v4168 = vshll.u32 %v393, 16
      %v4170 = vrot.slane %v4168, 6
      %v4171 = vor.u32 %v4167, %v4170
      %v4172 = vrot.slane %v4171, 4
      %v4174 = vshrl.u32 %v394, 16
      %v4176 = vrot.slane %v4174, 5
      %v4177 = vshll.u32 %v394, 16
      %v4179 = vrot.slane %v4177, 6
      %v4180 = vor.u32 %v4176, %v4179
      %v4181 = vsel %vm1188, %v4172, %v4180
      %v4182 = vrot.slane %v4180, 4
      %v4184 = vshrl.u32 %v395, 16
      %v4186 = vrot.slane %v4184, 5
      %v4187 = vshll.u32 %v395, 16
      %v4189 = vrot.slane %v4187, 6
      %v4190 = vor.u32 %v4186, %v4189
      %v4191 = vsel %vm1188, %v4182, %v4190
      %v4193 = vshrl.u32 %v396, 16
      %v4195 = vrot.slane %v4193, 5
      %v4196 = vshll.u32 %v396, 16
      %v4198 = vrot.slane %v4196, 6
      %v4199 = vor.u32 %v4195, %v4198
      %v4200 = vrot.slane %v4199, 4
      %v4202 = vshrl.u32 %v397, 16
      %v4204 = vrot.slane %v4202, 5
      %v4205 = vshll.u32 %v397, 16
      %v4207 = vrot.slane %v4205, 6
      %v4208 = vor.u32 %v4204, %v4207
      %v4209 = vsel %vm1188, %v4200, %v4208
      %v4210 = vrot.slane %v4208, 4
      %v4212 = vshrl.u32 %v398, 16
      %v4214 = vrot.slane %v4212, 5
      %v4215 = vshll.u32 %v398, 16
      %v4217 = vrot.slane %v4215, 6
      %v4218 = vor.u32 %v4214, %v4217
      %v4219 = vsel %vm1188, %v4210, %v4218
      %v4221 = vshrl.u32 %v399, 16
      %v4223 = vrot.slane %v4221, 5
      %v4224 = vshll.u32 %v399, 16
      %v4226 = vrot.slane %v4224, 6
      %v4227 = vor.u32 %v4223, %v4226
      %v4228 = vrot.slane %v4227, 4
      %v4230 = vshrl.u32 %v400, 16
      %v4232 = vrot.slane %v4230, 5
      %v4233 = vshll.u32 %v400, 16
      %v4235 = vrot.slane %v4233, 6
      %v4236 = vor.u32 %v4232, %v4235
      %v4237 = vsel %vm1188, %v4228, %v4236
      %v4238 = vrot.slane %v4236, 4
      %v4240 = vshrl.u32 %v401, 16
      %v4242 = vrot.slane %v4240, 5
      %v4243 = vshll.u32 %v401, 16
      %v4245 = vrot.slane %v4243, 6
      %v4246 = vor.u32 %v4242, %v4245
      %v4247 = vsel %vm1188, %v4238, %v4246
      %v4249 = vshrl.u32 %v402, 16
      %v4251 = vrot.slane %v4249, 5
      %v4252 = vshll.u32 %v402, 16
      %v4254 = vrot.slane %v4252, 6
      %v4255 = vor.u32 %v4251, %v4254
      %v4256 = vrot.slane %v4255, 4
      %v4258 = vshrl.u32 %v403, 16
      %v4260 = vrot.slane %v4258, 5
      %v4261 = vshll.u32 %v403, 16
      %v4263 = vrot.slane %v4261, 6
      %v4264 = vor.u32 %v4260, %v4263
      %v4265 = vsel %vm1188, %v4256, %v4264
      %v4266 = vrot.slane %v4264, 4
      %v4268 = vshrl.u32 %v404, 16
      %v4270 = vrot.slane %v4268, 5
      %v4271 = vshll.u32 %v404, 16
      %v4273 = vrot.slane %v4271, 6
      %v4274 = vor.u32 %v4270, %v4273
      %v4275 = vsel %vm1188, %v4266, %v4274
      %s4276 = scalar_lea.vmem %s1, 24
      %v4277 = vld [vmem:[%s4276] sm:$0x3]
      %v4278 = vunpack.c.l.b16 %v4069
      %v4279 = vunpack.c.l.b16 %v4079
      %v4280 = vunpack.c.l.b16 %v4097
      %v4281 = vunpack.c.l.b16 %v4107
      %v4282 = vunpack.c.l.b16 %v4125
      %v4283 = vunpack.c.l.b16 %v4135
      %v4284 = vunpack.c.l.b16 %v4153
      %v4285 = vunpack.c.l.b16 %v4163
      %v4286 = vunpack.c.l.b16 %v4181
      %v4287 = vunpack.c.l.b16 %v4191
      %v4288 = vunpack.c.l.b16 %v4209
      %v4289 = vunpack.c.l.b16 %v4219
      %v4290 = vunpack.c.l.b16 %v4237
      %v4291 = vunpack.c.l.b16 %v4247
      %v4292 = vunpack.c.l.b16 %v4265
      %v4293 = vunpack.c.l.b16 %v4275
      %v4294 = vpack.c.b16 %v4279, %v4278
      %v4295 = vpack.c.b16 %v4281, %v4280
      %v4296 = vpack.c.b16 %v4283, %v4282
      %v4297 = vpack.c.b16 %v4285, %v4284
      %v4298 = vpack.c.b16 %v4287, %v4286
      %v4299 = vpack.c.b16 %v4289, %v4288
      %v4300 = vpack.c.b16 %v4291, %v4290
      %v4301 = vpack.c.b16 %v4293, %v4292
      %v4303 = vsel %vm655, %v4294, 0
      %v4306 = vsel %vm655, %v4295, 0
      %v4309 = vsel %vm655, %v4296, 0
      %v4312 = vsel %vm655, %v4297, 0
      %v4315 = vsel %vm655, %v4298, 0
      %v4318 = vsel %vm655, %v4299, 0
      %v4321 = vsel %vm655, %v4300, 0
      %v4324 = vsel %vm655, %v4301, 0
      %v4327 = vsel %vm680, %v4277, 0
      %4329 = vmatprep.subr.bf16.mxu0 0
      %4330 = vmatpush1.bf16.msra.mxu0 0
      %4331 = vmatprep.subr.bf16.mxu0 0
      %4332 = vmatpush1.bf16.msra.mxu0 0
      %4333 = vmatprep.subr.bf16.mxu0 0
      %4334 = vmatpush1.bf16.msra.mxu0 0
      %4335 = vmatprep.subr.bf16.mxu0 0
      %4336 = vmatpush1.bf16.msra.mxu0 0
      %4337 = vmatprep.subr.bf16.mxu0 0
      %4338 = vmatpush1.bf16.msra.mxu0 0
      %4339 = vmatprep.subr.bf16.mxu0 0
      %4340 = vmatpush1.bf16.msra.mxu0 0
      %4341 = vmatprep.subr.bf16.mxu0 0
      %4342 = vmatpush1.bf16.msra.mxu0 0
      %4343 = vmatprep.subr.bf16.mxu0 0
      %4344 = vmatpush1.bf16.msra.mxu0 %v4327
      %4345 = vmatprep.subr.bf16.mxu0 0
      %4346 = vmatpush2.bf16.msra.mxu0 0
      %4347 = vmatprep.subr.bf16.mxu0 0
      %4348 = vmatpush2.bf16.msra.mxu0 0
      %4349 = vmatprep.subr.bf16.mxu0 0
      %4350 = vmatpush2.bf16.msra.mxu0 0
      %4351 = vmatprep.subr.bf16.mxu0 0
      %4352 = vmatpush2.bf16.msra.mxu0 0
      %4353 = vmatprep.subr.bf16.mxu0 0
      %4354 = vmatpush2.bf16.msra.mxu0 0
      %4355 = vmatprep.subr.bf16.mxu0 0
      %4356 = vmatpush2.bf16.msra.mxu0 0
      %4357 = vmatprep.subr.bf16.mxu0 0
      %4358 = vmatpush2.bf16.msra.mxu0 0
      %4359 = vmatprep.subr.bf16.mxu0 0
      %4360 = vmatpush2.bf16.msra.mxu0 0
      %4361 = vmatprep.mubr.bf16.mxu0 0
      %4362 = vmatmul.mubr.bf16.gmra.mxu0 %v4303
      %v4363 = vpop.f32.mrf.mxu0
      %v4364 = vadd.f32 0.0, %v4363
      %v4365 = vpop.f32.mrf.mxu0
      %v4366 = vpop.f32.mrf.mxu0
      %v4367 = vadd.f32 0.0, %v4366
      %v4368 = vpop.f32.mrf.mxu0
      %4369 = vmatprep.mubr.bf16.mxu0 0
      %4370 = vmatmul.mubr.bf16.gmra.mxu0 %v4306
      %v4371 = vpop.f32.mrf.mxu0
      %v4372 = vadd.f32 0.0, %v4371
      %v4373 = vpop.f32.mrf.mxu0
      %v4374 = vpop.f32.mrf.mxu0
      %v4375 = vadd.f32 0.0, %v4374
      %v4376 = vpop.f32.mrf.mxu0
      %4377 = vmatprep.mubr.bf16.mxu0 0
      %4378 = vmatmul.mubr.bf16.gmra.mxu0 %v4309
      %v4379 = vpop.f32.mrf.mxu0
      %v4380 = vadd.f32 0.0, %v4379
      %v4381 = vpop.f32.mrf.mxu0
      %v4382 = vpop.f32.mrf.mxu0
      %v4383 = vadd.f32 0.0, %v4382
      %v4384 = vpop.f32.mrf.mxu0
      %4385 = vmatprep.mubr.bf16.mxu0 0
      %4386 = vmatmul.mubr.bf16.gmra.mxu0 %v4312
      %v4387 = vpop.f32.mrf.mxu0
      %v4388 = vadd.f32 0.0, %v4387
      %v4389 = vpop.f32.mrf.mxu0
      %v4390 = vpop.f32.mrf.mxu0
      %v4391 = vadd.f32 0.0, %v4390
      %v4392 = vpop.f32.mrf.mxu0
      %4393 = vmatprep.mubr.bf16.mxu0 0
      %4394 = vmatmul.mubr.bf16.gmra.mxu0 %v4315
      %v4395 = vpop.f32.mrf.mxu0
      %v4396 = vadd.f32 0.0, %v4395
      %v4397 = vpop.f32.mrf.mxu0
      %v4398 = vpop.f32.mrf.mxu0
      %v4399 = vadd.f32 0.0, %v4398
      %v4400 = vpop.f32.mrf.mxu0
      %4401 = vmatprep.mubr.bf16.mxu0 0
      %4402 = vmatmul.mubr.bf16.gmra.mxu0 %v4318
      %v4403 = vpop.f32.mrf.mxu0
      %v4404 = vadd.f32 0.0, %v4403
      %v4405 = vpop.f32.mrf.mxu0
      %v4406 = vpop.f32.mrf.mxu0
      %v4407 = vadd.f32 0.0, %v4406
      %v4408 = vpop.f32.mrf.mxu0
      %4409 = vmatprep.mubr.bf16.mxu0 0
      %4410 = vmatmul.mubr.bf16.gmra.mxu0 %v4321
      %v4411 = vpop.f32.mrf.mxu0
      %v4412 = vadd.f32 0.0, %v4411
      %v4413 = vpop.f32.mrf.mxu0
      %v4414 = vpop.f32.mrf.mxu0
      %v4415 = vadd.f32 0.0, %v4414
      %v4416 = vpop.f32.mrf.mxu0
      %4417 = vmatprep.mubr.bf16.mxu0 0
      %4418 = vmatmul.mubr.bf16.gmra.mxu0 %v4324
      %v4419 = vpop.f32.mrf.mxu0
      %v4420 = vadd.f32 0.0, %v4419
      %v4421 = vpop.f32.mrf.mxu0
      %v4422 = vpop.f32.mrf.mxu0
      %v4423 = vadd.f32 0.0, %v4422
      %v4424 = vpop.f32.mrf.mxu0
      %4425 = vdwg.mxu0
      %v4426 = vadd.f32 %v4036, %v4364
      %v4427 = vadd.f32 %v4037, %v4367
      %v4428 = vadd.f32 %v4038, %v4372
      %v4429 = vadd.f32 %v4039, %v4375
      %v4430 = vadd.f32 %v4040, %v4380
      %v4431 = vadd.f32 %v4041, %v4383
      %v4432 = vadd.f32 %v4042, %v4388
      %v4433 = vadd.f32 %v4043, %v4391
      %v4434 = vadd.f32 %v4044, %v4396
      %v4435 = vadd.f32 %v4045, %v4399
      %v4436 = vadd.f32 %v4046, %v4404
      %v4437 = vadd.f32 %v4047, %v4407
      %v4438 = vadd.f32 %v4048, %v4412
      %v4439 = vadd.f32 %v4049, %v4415
      %v4440 = vadd.f32 %v4050, %v4420
      %v4441 = vadd.f32 %v4051, %v4423
      %v4443 = vshrl.u32 %v409, 16
      %v4445 = vrot.slane %v4443, 5
      %v4446 = vshll.u32 %v409, 16
      %v4448 = vrot.slane %v4446, 6
      %v4449 = vor.u32 %v4445, %v4448
      %v4450 = vrot.slane %v4449, 4
      %v4452 = vshrl.u32 %v410, 16
      %v4454 = vrot.slane %v4452, 5
      %v4455 = vshll.u32 %v410, 16
      %v4457 = vrot.slane %v4455, 6
      %v4458 = vor.u32 %v4454, %v4457
      %v4459 = vsel %vm1188, %v4450, %v4458
      %v4460 = vrot.slane %v4458, 4
      %v4462 = vshrl.u32 %v411, 16
      %v4464 = vrot.slane %v4462, 5
      %v4465 = vshll.u32 %v411, 16
      %v4467 = vrot.slane %v4465, 6
      %v4468 = vor.u32 %v4464, %v4467
      %v4469 = vsel %vm1188, %v4460, %v4468
      %v4471 = vshrl.u32 %v412, 16
      %v4473 = vrot.slane %v4471, 5
      %v4474 = vshll.u32 %v412, 16
      %v4476 = vrot.slane %v4474, 6
      %v4477 = vor.u32 %v4473, %v4476
      %v4478 = vrot.slane %v4477, 4
      %v4480 = vshrl.u32 %v413, 16
      %v4482 = vrot.slane %v4480, 5
      %v4483 = vshll.u32 %v413, 16
      %v4485 = vrot.slane %v4483, 6
      %v4486 = vor.u32 %v4482, %v4485
      %v4487 = vsel %vm1188, %v4478, %v4486
      %v4488 = vrot.slane %v4486, 4
      %v4490 = vshrl.u32 %v414, 16
      %v4492 = vrot.slane %v4490, 5
      %v4493 = vshll.u32 %v414, 16
      %v4495 = vrot.slane %v4493, 6
      %v4496 = vor.u32 %v4492, %v4495
      %v4497 = vsel %vm1188, %v4488, %v4496
      %v4499 = vshrl.u32 %v415, 16
      %v4501 = vrot.slane %v4499, 5
      %v4502 = vshll.u32 %v415, 16
      %v4504 = vrot.slane %v4502, 6
      %v4505 = vor.u32 %v4501, %v4504
      %v4506 = vrot.slane %v4505, 4
      %v4508 = vshrl.u32 %v416, 16
      %v4510 = vrot.slane %v4508, 5
      %v4511 = vshll.u32 %v416, 16
      %v4513 = vrot.slane %v4511, 6
      %v4514 = vor.u32 %v4510, %v4513
      %v4515 = vsel %vm1188, %v4506, %v4514
      %v4516 = vrot.slane %v4514, 4
      %v4518 = vshrl.u32 %v417, 16
      %v4520 = vrot.slane %v4518, 5
      %v4521 = vshll.u32 %v417, 16
      %v4523 = vrot.slane %v4521, 6
      %v4524 = vor.u32 %v4520, %v4523
      %v4525 = vsel %vm1188, %v4516, %v4524
      %v4527 = vshrl.u32 %v418, 16
      %v4529 = vrot.slane %v4527, 5
      %v4530 = vshll.u32 %v418, 16
      %v4532 = vrot.slane %v4530, 6
      %v4533 = vor.u32 %v4529, %v4532
      %v4534 = vrot.slane %v4533, 4
      %v4536 = vshrl.u32 %v419, 16
      %v4538 = vrot.slane %v4536, 5
      %v4539 = vshll.u32 %v419, 16
      %v4541 = vrot.slane %v4539, 6
      %v4542 = vor.u32 %v4538, %v4541
      %v4543 = vsel %vm1188, %v4534, %v4542
      %v4544 = vrot.slane %v4542, 4
      %v4546 = vshrl.u32 %v420, 16
      %v4548 = vrot.slane %v4546, 5
      %v4549 = vshll.u32 %v420, 16
      %v4551 = vrot.slane %v4549, 6
      %v4552 = vor.u32 %v4548, %v4551
      %v4553 = vsel %vm1188, %v4544, %v4552
      %v4555 = vshrl.u32 %v421, 16
      %v4557 = vrot.slane %v4555, 5
      %v4558 = vshll.u32 %v421, 16
      %v4560 = vrot.slane %v4558, 6
      %v4561 = vor.u32 %v4557, %v4560
      %v4562 = vrot.slane %v4561, 4
      %v4564 = vshrl.u32 %v422, 16
      %v4566 = vrot.slane %v4564, 5
      %v4567 = vshll.u32 %v422, 16
      %v4569 = vrot.slane %v4567, 6
      %v4570 = vor.u32 %v4566, %v4569
      %v4571 = vsel %vm1188, %v4562, %v4570
      %v4572 = vrot.slane %v4570, 4
      %v4574 = vshrl.u32 %v423, 16
      %v4576 = vrot.slane %v4574, 5
      %v4577 = vshll.u32 %v423, 16
      %v4579 = vrot.slane %v4577, 6
      %v4580 = vor.u32 %v4576, %v4579
      %v4581 = vsel %vm1188, %v4572, %v4580
      %v4583 = vshrl.u32 %v424, 16
      %v4585 = vrot.slane %v4583, 5
      %v4586 = vshll.u32 %v424, 16
      %v4588 = vrot.slane %v4586, 6
      %v4589 = vor.u32 %v4585, %v4588
      %v4590 = vrot.slane %v4589, 4
      %v4592 = vshrl.u32 %v425, 16
      %v4594 = vrot.slane %v4592, 5
      %v4595 = vshll.u32 %v425, 16
      %v4597 = vrot.slane %v4595, 6
      %v4598 = vor.u32 %v4594, %v4597
      %v4599 = vsel %vm1188, %v4590, %v4598
      %v4600 = vrot.slane %v4598, 4
      %v4602 = vshrl.u32 %v426, 16
      %v4604 = vrot.slane %v4602, 5
      %v4605 = vshll.u32 %v426, 16
      %v4607 = vrot.slane %v4605, 6
      %v4608 = vor.u32 %v4604, %v4607
      %v4609 = vsel %vm1188, %v4600, %v4608
      %v4611 = vshrl.u32 %v427, 16
      %v4613 = vrot.slane %v4611, 5
      %v4614 = vshll.u32 %v427, 16
      %v4616 = vrot.slane %v4614, 6
      %v4617 = vor.u32 %v4613, %v4616
      %v4618 = vrot.slane %v4617, 4
      %v4620 = vshrl.u32 %v428, 16
      %v4622 = vrot.slane %v4620, 5
      %v4623 = vshll.u32 %v428, 16
      %v4625 = vrot.slane %v4623, 6
      %v4626 = vor.u32 %v4622, %v4625
      %v4627 = vsel %vm1188, %v4618, %v4626
      %v4628 = vrot.slane %v4626, 4
      %v4630 = vshrl.u32 %v429, 16
      %v4632 = vrot.slane %v4630, 5
      %v4633 = vshll.u32 %v429, 16
      %v4635 = vrot.slane %v4633, 6
      %v4636 = vor.u32 %v4632, %v4635
      %v4637 = vsel %vm1188, %v4628, %v4636
      %v4639 = vshrl.u32 %v430, 16
      %v4641 = vrot.slane %v4639, 5
      %v4642 = vshll.u32 %v430, 16
      %v4644 = vrot.slane %v4642, 6
      %v4645 = vor.u32 %v4641, %v4644
      %v4646 = vrot.slane %v4645, 4
      %v4648 = vshrl.u32 %v431, 16
      %v4650 = vrot.slane %v4648, 5
      %v4651 = vshll.u32 %v431, 16
      %v4653 = vrot.slane %v4651, 6
      %v4654 = vor.u32 %v4650, %v4653
      %v4655 = vsel %vm1188, %v4646, %v4654
      %v4656 = vrot.slane %v4654, 4
      %v4658 = vshrl.u32 %v432, 16
      %v4660 = vrot.slane %v4658, 5
      %v4661 = vshll.u32 %v432, 16
      %v4663 = vrot.slane %v4661, 6
      %v4664 = vor.u32 %v4660, %v4663
      %v4665 = vsel %vm1188, %v4656, %v4664
      %s4666 = scalar_lea.vmem %s1, 26
      %v4667 = vld [vmem:[%s4666] sm:$0x3]
      %v4668 = vunpack.c.l.b16 %v4459
      %v4669 = vunpack.c.l.b16 %v4469
      %v4670 = vunpack.c.l.b16 %v4487
      %v4671 = vunpack.c.l.b16 %v4497
      %v4672 = vunpack.c.l.b16 %v4515
      %v4673 = vunpack.c.l.b16 %v4525
      %v4674 = vunpack.c.l.b16 %v4543
      %v4675 = vunpack.c.l.b16 %v4553
      %v4676 = vunpack.c.l.b16 %v4571
      %v4677 = vunpack.c.l.b16 %v4581
      %v4678 = vunpack.c.l.b16 %v4599
      %v4679 = vunpack.c.l.b16 %v4609
      %v4680 = vunpack.c.l.b16 %v4627
      %v4681 = vunpack.c.l.b16 %v4637
      %v4682 = vunpack.c.l.b16 %v4655
      %v4683 = vunpack.c.l.b16 %v4665
      %v4684 = vpack.c.b16 %v4669, %v4668
      %v4685 = vpack.c.b16 %v4671, %v4670
      %v4686 = vpack.c.b16 %v4673, %v4672
      %v4687 = vpack.c.b16 %v4675, %v4674
      %v4688 = vpack.c.b16 %v4677, %v4676
      %v4689 = vpack.c.b16 %v4679, %v4678
      %v4690 = vpack.c.b16 %v4681, %v4680
      %v4691 = vpack.c.b16 %v4683, %v4682
      %v4693 = vsel %vm655, %v4684, 0
      %v4696 = vsel %vm655, %v4685, 0
      %v4699 = vsel %vm655, %v4686, 0
      %v4702 = vsel %vm655, %v4687, 0
      %v4705 = vsel %vm655, %v4688, 0
      %v4708 = vsel %vm655, %v4689, 0
      %v4711 = vsel %vm655, %v4690, 0
      %v4714 = vsel %vm655, %v4691, 0
      %v4717 = vsel %vm680, %v4667, 0
      %4719 = vmatprep.subr.bf16.mxu0 0
      %4720 = vmatpush1.bf16.msra.mxu0 0
      %4721 = vmatprep.subr.bf16.mxu0 0
      %4722 = vmatpush1.bf16.msra.mxu0 0
      %4723 = vmatprep.subr.bf16.mxu0 0
      %4724 = vmatpush1.bf16.msra.mxu0 0
      %4725 = vmatprep.subr.bf16.mxu0 0
      %4726 = vmatpush1.bf16.msra.mxu0 0
      %4727 = vmatprep.subr.bf16.mxu0 0
      %4728 = vmatpush1.bf16.msra.mxu0 0
      %4729 = vmatprep.subr.bf16.mxu0 0
      %4730 = vmatpush1.bf16.msra.mxu0 0
      %4731 = vmatprep.subr.bf16.mxu0 0
      %4732 = vmatpush1.bf16.msra.mxu0 0
      %4733 = vmatprep.subr.bf16.mxu0 0
      %4734 = vmatpush1.bf16.msra.mxu0 %v4717
      %4735 = vmatprep.subr.bf16.mxu0 0
      %4736 = vmatpush2.bf16.msra.mxu0 0
      %4737 = vmatprep.subr.bf16.mxu0 0
      %4738 = vmatpush2.bf16.msra.mxu0 0
      %4739 = vmatprep.subr.bf16.mxu0 0
      %4740 = vmatpush2.bf16.msra.mxu0 0
      %4741 = vmatprep.subr.bf16.mxu0 0
      %4742 = vmatpush2.bf16.msra.mxu0 0
      %4743 = vmatprep.subr.bf16.mxu0 0
      %4744 = vmatpush2.bf16.msra.mxu0 0
      %4745 = vmatprep.subr.bf16.mxu0 0
      %4746 = vmatpush2.bf16.msra.mxu0 0
      %4747 = vmatprep.subr.bf16.mxu0 0
      %4748 = vmatpush2.bf16.msra.mxu0 0
      %4749 = vmatprep.subr.bf16.mxu0 0
      %4750 = vmatpush2.bf16.msra.mxu0 0
      %4751 = vmatprep.mubr.bf16.mxu0 0
      %4752 = vmatmul.mubr.bf16.gmra.mxu0 %v4693
      %v4753 = vpop.f32.mrf.mxu0
      %v4754 = vadd.f32 0.0, %v4753
      %v4755 = vpop.f32.mrf.mxu0
      %v4756 = vpop.f32.mrf.mxu0
      %v4757 = vadd.f32 0.0, %v4756
      %v4758 = vpop.f32.mrf.mxu0
      %4759 = vmatprep.mubr.bf16.mxu0 0
      %4760 = vmatmul.mubr.bf16.gmra.mxu0 %v4696
      %v4761 = vpop.f32.mrf.mxu0
      %v4762 = vadd.f32 0.0, %v4761
      %v4763 = vpop.f32.mrf.mxu0
      %v4764 = vpop.f32.mrf.mxu0
      %v4765 = vadd.f32 0.0, %v4764
      %v4766 = vpop.f32.mrf.mxu0
      %4767 = vmatprep.mubr.bf16.mxu0 0
      %4768 = vmatmul.mubr.bf16.gmra.mxu0 %v4699
      %v4769 = vpop.f32.mrf.mxu0
      %v4770 = vadd.f32 0.0, %v4769
      %v4771 = vpop.f32.mrf.mxu0
      %v4772 = vpop.f32.mrf.mxu0
      %v4773 = vadd.f32 0.0, %v4772
      %v4774 = vpop.f32.mrf.mxu0
      %4775 = vmatprep.mubr.bf16.mxu0 0
      %4776 = vmatmul.mubr.bf16.gmra.mxu0 %v4702
      %v4777 = vpop.f32.mrf.mxu0
      %v4778 = vadd.f32 0.0, %v4777
      %v4779 = vpop.f32.mrf.mxu0
      %v4780 = vpop.f32.mrf.mxu0
      %v4781 = vadd.f32 0.0, %v4780
      %v4782 = vpop.f32.mrf.mxu0
      %4783 = vmatprep.mubr.bf16.mxu0 0
      %4784 = vmatmul.mubr.bf16.gmra.mxu0 %v4705
      %v4785 = vpop.f32.mrf.mxu0
      %v4786 = vadd.f32 0.0, %v4785
      %v4787 = vpop.f32.mrf.mxu0
      %v4788 = vpop.f32.mrf.mxu0
      %v4789 = vadd.f32 0.0, %v4788
      %v4790 = vpop.f32.mrf.mxu0
      %4791 = vmatprep.mubr.bf16.mxu0 0
      %4792 = vmatmul.mubr.bf16.gmra.mxu0 %v4708
      %v4793 = vpop.f32.mrf.mxu0
      %v4794 = vadd.f32 0.0, %v4793
      %v4795 = vpop.f32.mrf.mxu0
      %v4796 = vpop.f32.mrf.mxu0
      %v4797 = vadd.f32 0.0, %v4796
      %v4798 = vpop.f32.mrf.mxu0
      %4799 = vmatprep.mubr.bf16.mxu0 0
      %4800 = vmatmul.mubr.bf16.gmra.mxu0 %v4711
      %v4801 = vpop.f32.mrf.mxu0
      %v4802 = vadd.f32 0.0, %v4801
      %v4803 = vpop.f32.mrf.mxu0
      %v4804 = vpop.f32.mrf.mxu0
      %v4805 = vadd.f32 0.0, %v4804
      %v4806 = vpop.f32.mrf.mxu0
      %4807 = vmatprep.mubr.bf16.mxu0 0
      %4808 = vmatmul.mubr.bf16.gmra.mxu0 %v4714
      %v4809 = vpop.f32.mrf.mxu0
      %v4810 = vadd.f32 0.0, %v4809
      %v4811 = vpop.f32.mrf.mxu0
      %v4812 = vpop.f32.mrf.mxu0
      %v4813 = vadd.f32 0.0, %v4812
      %v4814 = vpop.f32.mrf.mxu0
      %4815 = vdwg.mxu0
      %v4816 = vadd.f32 %v4426, %v4754
      %v4817 = vadd.f32 %v4427, %v4757
      %v4818 = vadd.f32 %v4428, %v4762
      %v4819 = vadd.f32 %v4429, %v4765
      %v4820 = vadd.f32 %v4430, %v4770
      %v4821 = vadd.f32 %v4431, %v4773
      %v4822 = vadd.f32 %v4432, %v4778
      %v4823 = vadd.f32 %v4433, %v4781
      %v4824 = vadd.f32 %v4434, %v4786
      %v4825 = vadd.f32 %v4435, %v4789
      %v4826 = vadd.f32 %v4436, %v4794
      %v4827 = vadd.f32 %v4437, %v4797
      %v4828 = vadd.f32 %v4438, %v4802
      %v4829 = vadd.f32 %v4439, %v4805
      %v4830 = vadd.f32 %v4440, %v4810
      %v4831 = vadd.f32 %v4441, %v4813
      %v4832 = vld [vmem:[%s2] sm:$0x1]
      %v4834 = vlaneseq
      %v4835 = vshrl.u32 %v4834, 7
      %v4836 = vsub.s32 0, %v4835
      %v4837 = vrot.slane %v4832, %v4836
      %v4839 = vadd.f32 %v4816, %v4837
      %v4840 = vadd.f32 %v4817, %v4837
      %v4841 = vadd.f32 %v4818, %v4837
      %v4842 = vadd.f32 %v4819, %v4837
      %v4843 = vadd.f32 %v4820, %v4837
      %v4844 = vadd.f32 %v4821, %v4837
      %v4845 = vadd.f32 %v4822, %v4837
      %v4846 = vadd.f32 %v4823, %v4837
      %v4847 = vadd.f32 %v4824, %v4837
      %v4848 = vadd.f32 %v4825, %v4837
      %v4849 = vadd.f32 %v4826, %v4837
      %v4850 = vadd.f32 %v4827, %v4837
      %v4851 = vadd.f32 %v4828, %v4837
      %v4852 = vadd.f32 %v4829, %v4837
      %v4853 = vadd.f32 %v4830, %v4837
      %v4854 = vadd.f32 %v4831, %v4837
      %v4855 = vpack.c.bf16 %v4840, %v4839
      %v4856 = vpack.c.bf16 %v4842, %v4841
      %v4857 = vpack.c.bf16 %v4844, %v4843
      %v4858 = vpack.c.bf16 %v4846, %v4845
      %v4859 = vpack.c.bf16 %v4848, %v4847
      %v4860 = vpack.c.bf16 %v4850, %v4849
      %v4861 = vpack.c.bf16 %v4852, %v4851
      %v4862 = vpack.c.bf16 %v4854, %v4853
      %v4871 = vunpack.c.l.b16 %v4855
      %v4872 = vunpack.c.h.b16 %v4855
      %v4873 = vunpack.c.l.b16 %v4856
      %v4874 = vunpack.c.h.b16 %v4856
      %v4875 = vunpack.c.l.b16 %v4857
      %v4876 = vunpack.c.h.b16 %v4857
      %v4877 = vunpack.c.l.b16 %v4858
      %v4878 = vunpack.c.h.b16 %v4858
      %v4879 = vunpack.c.l.b16 %v4859
      %v4880 = vunpack.c.h.b16 %v4859
      %v4881 = vunpack.c.l.b16 %v4860
      %v4882 = vunpack.c.h.b16 %v4860
      %v4883 = vunpack.c.l.b16 %v4861
      %v4884 = vunpack.c.h.b16 %v4861
      %v4885 = vunpack.c.l.b16 %v4862
      %v4886 = vunpack.c.h.b16 %v4862
      %v4887 = vpack.c.b16 %v4871, %v4871
      %v4888 = vpack.c.b16 %v4872, %v4872
      %v4889 = vpack.c.b16 %v4873, %v4873
      %v4890 = vpack.c.b16 %v4874, %v4874
      %v4891 = vpack.c.b16 %v4875, %v4875
      %v4892 = vpack.c.b16 %v4876, %v4876
      %v4893 = vpack.c.b16 %v4877, %v4877
      %v4894 = vpack.c.b16 %v4878, %v4878
      %v4895 = vpack.c.b16 %v4879, %v4879
      %v4896 = vpack.c.b16 %v4880, %v4880
      %v4897 = vpack.c.b16 %v4881, %v4881
      %v4898 = vpack.c.b16 %v4882, %v4882
      %v4899 = vpack.c.b16 %v4883, %v4883
      %v4900 = vpack.c.b16 %v4884, %v4884
      %v4901 = vpack.c.b16 %v4885, %v4885
      %v4902 = vpack.c.b16 %v4886, %v4886
      %vm4919 = vcmask 60416
      %4920 = vst.msk [vmem:[%s194] sm:$0xf] %vm4919, %v4887
      %4921 = vst.msk [vmem:[%s194 + $0x4] sm:$0xf] %vm4919, %v4888
      %4922 = vst.msk [vmem:[%s194 + $0x8] sm:$0xf] %vm4919, %v4889
      %4923 = vst.msk [vmem:[%s194 + $0xc] sm:$0xf] %vm4919, %v4890
      %4924 = vst.msk [vmem:[%s194 + $0x10] sm:$0xf] %vm4919, %v4891
      %4925 = vst.msk [vmem:[%s194 + $0x14] sm:$0xf] %vm4919, %v4892
      %4926 = vst.msk [vmem:[%s194 + $0x18] sm:$0xf] %vm4919, %v4893
      %4927 = vst.msk [vmem:[%s194 + $0x1c] sm:$0xf] %vm4919, %v4894
      %4928 = vst.msk [vmem:[%s194 + $0x20] sm:$0xf] %vm4919, %v4895
      %4929 = vst.msk [vmem:[%s194 + $0x24] sm:$0xf] %vm4919, %v4896
      %4930 = vst.msk [vmem:[%s194 + $0x28] sm:$0xf] %vm4919, %v4897
      %4931 = vst.msk [vmem:[%s194 + $0x2c] sm:$0xf] %vm4919, %v4898
      %4932 = vst.msk [vmem:[%s194 + $0x30] sm:$0xf] %vm4919, %v4899
      %4933 = vst.msk [vmem:[%s194 + $0x34] sm:$0xf] %vm4919, %v4900
      %4934 = vst.msk [vmem:[%s194 + $0x38] sm:$0xf] %vm4919, %v4901
      %4935 = vst.msk [vmem:[%s194 + $0x3c] sm:$0xf] %vm4919, %v4902
      %s4936 = smul.u32 8, %s19
      %p4937 = scmp.lt.s32.totalorder %s18, 1
      %s4938 = scalar_select %p4937, %s18, 1
      %p4939 = scmp.lt.s32.totalorder %s4936, 15
      %s4940 = scalar_select %p4939, %s4936, 15
      %s4941 = smul.addr %s4940, 2
      %s4942 = smul.addr %s4938, 32
      %s4943 = sadd.s32 %s4941, %s4942
      %s4944 = smul.addr %s4943, 4
      %s4945 = scalar_lea.vmem %s3, %s4944
      // Predicated region
      $region33: #{tpu_custom_call.1} parent=31 // pred_check
        %p4946 = pneg %p114
      $region34: #{tpu_custom_call.1} parent=31 // pred_check_branch
        %4948 = sbr.rel (%p4946) target = $region36
      $region35: #{tpu_custom_call.1} parent=31 // pred_region
        %s4949 = smul.u32 8, %s19
      $region36: #{tpu_custom_call.1} parent=31 // pred_fallthru
        _
    $region32: #{tpu_custom_call.1} parent=5 // pred_fallthru
      _
    %p4950 = scmp.le.s32.totalorder 2, %s9
    // Predicated region
    $region37: #{tpu_custom_call.1} parent=5 // pred_check
      %p4951 = pneg %p4950
    $region38: #{tpu_custom_call.1} parent=5 // pred_check_branch
      %4953 = sbr.rel (%p4951) target = $region40
    $region39: #{tpu_custom_call.1} parent=5 // pred_region
      %s4954 = ssub.s32 %s9, 2
      // Predicated region
      $region41: #{tpu_custom_call.1} parent=39 // pred_check
        %p4955 = pneg %p120
      $region42: #{tpu_custom_call.1} parent=39 // pred_check_branch
        %4957 = sbr.rel (%p4955) target = $region44
      $region43: #{tpu_custom_call.1} parent=39 // pred_region
        %s4958 = smul.u32 8, %s21
        %p4959 = scmp.lt.s32.totalorder %s20, 1
        %s4960 = scalar_select %p4959, %s20, 1
        %p4961 = scmp.lt.s32.totalorder %s4958, 15
        %s4962 = scalar_select %p4961, %s4958, 15
        %s4963 = smul.addr %s4962, 2
        %s4964 = smul.addr %s4960, 32
        %s4965 = sadd.s32 %s4963, %s4964
        %s4966 = smul.addr %s4965, 4
        %s4967 = scalar_lea.vmem %s3, %s4966
      $region44: #{tpu_custom_call.1} parent=39 // pred_fallthru
        _
    $region40: #{tpu_custom_call.1} parent=5 // pred_fallthru
      _
  $region6: #{tpu_custom_call.1} parent=0 // loop_footer
    %s13 = sadd.s32 1, %s9
  $region7: #{tpu_custom_call.1} parent=0 // loop_footer_branch
    %8 = sbr.rel target = $region3
  $region8: #{tpu_custom_call.1} parent=0 // loop_exit
    _

</llo_original>
